<compile_context>
chip_gen: v7x
topology: tpu7x:2x2x1
jax: 0.10.0
libtpu: 0.0.40
codegen_flags: <defaults>
</compile_context>

<pallas_src>
import functools

import jax
import jax.numpy as jnp
import numpy as np
from jax.experimental import pallas as pl
from jax.experimental.pallas import tpu as pltpu

LANE = 128


def _round_up(a, b):
    return (a + b - 1) // b * b


# ---------------------------------------------------------------------------
# Fused kernel: streamed masked edge-softmax (online/flash style) over src tiles,
# with per-tile feat recompute on the MXU, then tanh + fused LSTM step at the last tile.
# ---------------------------------------------------------------------------
def _geniepath_kernel(er_ref, elt_ref, adj_ref, x_ref, wfc_ref, gb_ref,
                      h_ref, c_ref, wih_ref, whh_ref, b_ref,
                      hout_ref, cout_ref,
                      m_scr, l_scr, acc_scr):
    j = pl.program_id(1)
    nj = pl.num_programs(1)

    @pl.when(j == 0)
    def _init():
        m_scr[...] = jnp.full_like(m_scr, -1e30)
        l_scr[...] = jnp.zeros_like(l_scr)
        acc_scr[...] = jnp.zeros_like(acc_scr)

    # Recompute feat for this src tile on the (otherwise idle) MXU; K = in_dim is tiny,
    # far cheaper than round-tripping a (N, H_pad) feat array through HBM.
    feat = jnp.dot(x_ref[...], wfc_ref[...],
                   preferred_element_type=jnp.float32).astype(jnp.bfloat16)   # (ts, H_pad)

    # e[dst, src] = leaky_relu(er[dst] + el[src], 0.2), masked softmax over incoming edges.
    e = er_ref[...] + elt_ref[...]                         # (tm, 1) + (1, ts) -> (tm, ts)
    leaky = jnp.maximum(e, 0.2 * e)                        # slope 0.2 > 0 -> max form
    a = adj_ref[...].astype(jnp.float32)                   # int8 {0,1} -> f32
    masked = jnp.where(a > 0.0, leaky, jnp.float32(-1e30))

    m_prev = m_scr[...]
    m_new = jnp.maximum(m_prev, jnp.max(masked, axis=-1, keepdims=True))
    alpha = jnp.exp(m_prev - m_new)
    # exp of the -1e30 sentinel underflows to 0 once a real edge has been seen; pre-edge
    # garbage is wiped by alpha = exp(-1e30 - finite) = 0 (self-loops / padding analysis).
    p = jnp.exp(masked - m_new)

    l_scr[...] = alpha * l_scr[...] + jnp.sum(p, axis=-1, keepdims=True)
    acc_scr[...] = alpha * acc_scr[...] + jnp.dot(
        p.astype(jnp.bfloat16), feat, preferred_element_type=jnp.float32)
    m_scr[...] = m_new

    @pl.when(j == nj - 1)
    def _finalize():
        # Normalize (EUP reciprocal), GAT bias, tanh; mean over heads is identity (1 head).
        inv = pl.reciprocal(jnp.maximum(l_scr[...], jnp.float32(1e-9)), approx=True)
        xb = jnp.tanh(acc_scr[...] * inv + gb_ref[...])    # (tm, H_pad) f32

        # LSTM gates as two dots (no lane-concat copy); i/f/g/o blocks padded to D_pad lanes.
        gates = (jnp.dot(xb.astype(wih_ref.dtype), wih_ref[...],
                         preferred_element_type=jnp.float32)
                 + jnp.dot(h_ref[...].astype(whh_ref.dtype), whh_ref[...],
                           preferred_element_type=jnp.float32)
                 + b_ref[...])
        d = hout_ref.shape[-1]                             # D_pad: 128-aligned gate slices
        i_g = jax.nn.sigmoid(gates[:, 0:d])
        f_g = jax.nn.sigmoid(gates[:, d:2 * d])
        g_g = jnp.tanh(gates[:, 2 * d:3 * d])
        o_g = jax.nn.sigmoid(gates[:, 3 * d:4 * d])

        c_new = f_g * c_ref[...] + i_g * g_g
        h_new = o_g * jnp.tanh(c_new)
        hout_ref[...] = h_new      # LSTM output (seq len 1) == new hidden state
        cout_ref[...] = c_new


def _pad_gate_blocks(w, d, d_pad):
    """(..., 4*d) -> (..., 4*d_pad): zero-pad each of the i/f/g/o gate blocks to d_pad lanes."""
    parts = []
    for k in range(4):
        blk = w[..., k * d:(k + 1) * d]
        pad = [(0, 0)] * (w.ndim - 1) + [(0, d_pad - d)]
        parts.append(jnp.pad(blk, pad))
    return jnp.concatenate(parts, axis=-1)


@functools.partial(jax.jit, static_argnames=("tm", "ts"))
def geniepath_conv(x, adj, params, h, c, *, tm=256, ts=512):
    # tm multiple of 32 (int8 sublane tiling of adj), ts multiple of 128 (lanes).
    # For v7x, pick tm so that ceil(N/tm) >= 2 (2 TensorCores share the "parallel" dst axis).
    # On v5e/v6e (128 MiB VMEM) ts can be raised to 2048+ for large graphs.
    assert tm % 32 == 0 and ts % 128 == 0, "tm must be a multiple of 32, ts of 128"
    f32, bf16 = jnp.float32, jnp.bfloat16

    N, in_dim = x.shape
    H = params["w_fc"].shape[1]
    D = h.shape[-1]
    H_pad = _round_up(H, LANE)
    D_pad = _round_up(D, LANE)
    nd_pad = _round_up(N, tm)       # dst axis padded to tm
    ns_pad = _round_up(N, ts)       # src axis padded to ts (independent; no lcm inflation)
    nI, nJ = nd_pad // tm, ns_pad // ts

    # ---- parameter prep: attention vectors, 128-lane padding, fused gate padding ----
    w_fc = params["w_fc"].astype(f32)                           # (in_dim, H)
    v_l = w_fc @ params["attn_l"].astype(f32).T                 # (in_dim, 1): el = x @ v_l
    v_r = w_fc @ params["attn_r"].astype(f32).T                 # (in_dim, 1): er = x @ v_r
    w_fc_p = jnp.pad(w_fc, ((0, 0), (0, H_pad - H))).astype(bf16)   # (in_dim, H_pad) bf16

    gat_bias = jnp.pad(params["gat_bias"].astype(f32), ((0, 0), (0, H_pad - H)))

    w_ih = _pad_gate_blocks(params["w_ih"].astype(f32), D, D_pad)       # (H,  4*D_pad)
    w_hh = _pad_gate_blocks(params["w_hh"].astype(f32), D, D_pad)       # (D,  4*D_pad)
    w_ih = jnp.pad(w_ih, ((0, H_pad - H), (0, 0))).astype(bf16)         # (H_pad, 4*D_pad)
    w_hh = jnp.pad(w_hh, ((0, D_pad - D), (0, 0))).astype(bf16)         # (D_pad, 4*D_pad)
    b_cat = _pad_gate_blocks((params["b_ih"] + params["b_hh"]).astype(f32), D, D_pad)

    # ---- tiny f32 attention scores in the wrapper (N floats each) ----
    xf = x.astype(f32)
    el = xf @ v_l                                               # (N, 1) src scores
    er = xf @ v_r                                               # (N, 1) dst scores
    el_t = jnp.pad(el.T, ((0, 0), (0, ns_pad - N)))             # (1, ns_pad)
    er_p = jnp.pad(er, ((0, nd_pad - N), (0, 0)))               # (nd_pad, 1)

    # ---- data padding / casting (adj streamed as int8 0/1: halves the dominant stream) ----
    x_src = jnp.pad(xf, ((0, ns_pad - N), (0, 0))).astype(bf16)          # (ns_pad, in_dim)
    adj_p = jnp.pad((adj > 0).astype(jnp.int8),
                    ((0, nd_pad - N), (0, ns_pad - N)))                  # (nd_pad, ns_pad)
    h_p = jnp.pad(h.astype(f32), ((0, nd_pad - N), (0, D_pad - D)))
    c_p = jnp.pad(c.astype(f32), ((0, nd_pad - N), (0, D_pad - D)))

    h_out, c_out = pl.pallas_call(
        _geniepath_kernel,
        out_shape=(jax.ShapeDtypeStruct((nd_pad, D_pad), f32),
                   jax.ShapeDtypeStruct((nd_pad, D_pad), f32)),
        grid=(nI, nJ),
        in_specs=[
            pl.BlockSpec((tm, 1), lambda i, j: (i, 0)),                  # er   (dst scores)
            pl.BlockSpec((1, ts), lambda i, j: (0, j)),                  # el^T (src scores)
            pl.BlockSpec((tm, ts), lambda i, j: (i, j)),                 # adj tile (int8)
            pl.BlockSpec((ts, in_dim), lambda i, j: (j, 0)),             # raw x src tile (bf16)
            pl.BlockSpec((in_dim, H_pad), lambda i, j: (0, 0)),          # w_fc (bf16)
            pl.BlockSpec((1, H_pad), lambda i, j: (0, 0)),               # gat bias
            pl.BlockSpec((tm, D_pad), lambda i, j: (i, 0)),              # h
            pl.BlockSpec((tm, D_pad), lambda i, j: (i, 0)),              # c
            pl.BlockSpec((H_pad, 4 * D_pad), lambda i, j: (0, 0)),       # LSTM w_ih (padded)
            pl.BlockSpec((D_pad, 4 * D_pad), lambda i, j: (0, 0)),       # LSTM w_hh (padded)
            pl.BlockSpec((1, 4 * D_pad), lambda i, j: (0, 0)),           # LSTM bias (padded)
        ],
        out_specs=(pl.BlockSpec((tm, D_pad), lambda i, j: (i, 0)),
                   pl.BlockSpec((tm, D_pad), lambda i, j: (i, 0))),
        scratch_shapes=[pltpu.VMEM((tm, 1), f32),          # running max m
                        pltpu.VMEM((tm, 1), f32),          # running denom l
                        pltpu.VMEM((tm, H_pad), f32)],     # running acc = p @ feat
        input_output_aliases={6: 0, 7: 1},                 # h -> h_out, c -> c_out
        compiler_params=pltpu.CompilerParams(
            dimension_semantics=("parallel", "arbitrary"),
            vmem_limit_bytes=32 * 1024 * 1024),            # safe ceiling on v7x (64 MiB phys)
    )(er_p, el_t, adj_p, x_src, w_fc_p, gat_bias, h_p, c_p, w_ih, w_hh, b_cat)

    h_new = h_out[:N, :D]
    c_new = c_out[:N, :D]
    # Module output x == LSTM output (seq len 1) == new hidden state.
    return h_new, h_new, c_new


def reference(x, adj, params, h, c):
    """Pure-JAX f32 reference of the original module math (sanity check)."""
    feat = x @ params["w_fc"]
    el = jnp.sum(feat * params["attn_l"], axis=-1, keepdims=True)
    er = jnp.sum(feat * params["attn_r"], axis=-1, keepdims=True)
    e = er + el.T
    e = jnp.where(e > 0, e, 0.2 * e)
    e = jnp.where(adj > 0, e, -1e30)
    m = jnp.max(e, axis=-1, keepdims=True)
    p = jnp.exp(e - m) * adj
    attn = p / jnp.maximum(jnp.sum(p, axis=-1, keepdims=True), 1e-30)
    xb = jnp.tanh(attn @ feat + params["gat_bias"])
    gates = xb @ params["w_ih"] + params["b_ih"] + h @ params["w_hh"] + params["b_hh"]
    D = h.shape[-1]
    i_g = jax.nn.sigmoid(gates[:, 0:D])
    f_g = jax.nn.sigmoid(gates[:, D:2 * D])
    g_g = jnp.tanh(gates[:, 2 * D:3 * D])
    o_g = jax.nn.sigmoid(gates[:, 3 * D:4 * D])
    c_new = f_g * c + i_g * g_g
    h_new = o_g * jnp.tanh(c_new)
    return h_new, h_new, c_new


if __name__ == "__main__":
    N, in_dim, hid_dim, out_dim = 300, 8, 32, 16

    key = jax.random.PRNGKey(0)
    ks = jax.random.split(key, 12)

    # deterministic synthetic graph: random edges + self loops, adj[dst, src]
    adj = (jax.random.uniform(ks[0], (N, N)) < 0.1).astype(jnp.float32)
    adj = jnp.maximum(adj, jnp.eye(N, dtype=jnp.float32))

    x = jax.random.normal(ks[1], (N, in_dim), dtype=jnp.float32)
    h0 = jax.random.normal(ks[2], (N, out_dim), dtype=jnp.float32) * 0.1
    c0 = jax.random.normal(ks[3], (N, out_dim), dtype=jnp.float32) * 0.1

    s = 0.2
    params = {
        # GATConv: fc weight (in_dim, hid_dim), attention vectors (1, hid_dim), bias (1, hid_dim)
        "w_fc":     jax.random.normal(ks[4], (in_dim, hid_dim), dtype=jnp.float32) * s,
        "attn_l":   jax.random.normal(ks[5], (1, hid_dim), dtype=jnp.float32) * s,
        "attn_r":   jax.random.normal(ks[6], (1, hid_dim), dtype=jnp.float32) * s,
        "gat_bias": jax.random.normal(ks[7], (1, hid_dim), dtype=jnp.float32) * s,
        # LSTM(hid_dim, out_dim): gates ordered [i, f, g, o]
        "w_ih":     jax.random.normal(ks[8], (hid_dim, 4 * out_dim), dtype=jnp.float32) * s,
        "b_ih":     jax.random.normal(ks[9], (1, 4 * out_dim), dtype=jnp.float32) * s,
        "w_hh":     jax.random.normal(ks[10], (out_dim, 4 * out_dim), dtype=jnp.float32) * s,
        "b_hh":     jax.random.normal(ks[11], (1, 4 * out_dim), dtype=jnp.float32) * s,
    }

    # small tiles for the demo so the (dst, src) grid has multiple tiles on both axes
    x_out, h_out, c_out = geniepath_conv(x, adj, params, h0, c0, tm=128, ts=128)
    jax.block_until_ready((x_out, h_out, c_out))

    x_exp, h_exp, c_exp = reference(x, adj, params, h0, c0)
    # bf16 MXU operands -> compare against f32 reference with loose tolerance
    np.testing.assert_allclose(np.asarray(x_out), np.asarray(x_exp), rtol=2e-2, atol=2e-2)
    np.testing.assert_allclose(np.asarray(h_out), np.asarray(h_exp), rtol=2e-2, atol=2e-2)
    np.testing.assert_allclose(np.asarray(c_out), np.asarray(c_exp), rtol=2e-2, atol=2e-2)

    print("KERNEL_OK")
</pallas_src>

<mosaic_0001>
module attributes {stable_mosaic.version = 11 : i64} {
  func.func @_geniepath_kernel(%arg0: i32, %arg1: i32, %arg2: memref<128x1xf32, #tpu.memory_space<vmem>>, %arg3: memref<1x128xf32, #tpu.memory_space<vmem>>, %arg4: memref<128x128xi8, #tpu.memory_space<vmem>>, %arg5: memref<128x8xbf16, #tpu.memory_space<vmem>>, %arg6: memref<8x128xbf16, #tpu.memory_space<vmem>>, %arg7: memref<1x128xf32, #tpu.memory_space<vmem>>, %arg8: memref<128x128xf32, #tpu.memory_space<vmem>>, %arg9: memref<128x128xf32, #tpu.memory_space<vmem>>, %arg10: memref<128x512xbf16, #tpu.memory_space<vmem>>, %arg11: memref<128x512xbf16, #tpu.memory_space<vmem>>, %arg12: memref<1x512xf32, #tpu.memory_space<vmem>>, %arg13: memref<128x128xf32, #tpu.memory_space<vmem>>, %arg14: memref<128x128xf32, #tpu.memory_space<vmem>>, %arg15: memref<128x1xf32, #tpu.memory_space<vmem>>, %arg16: memref<128x1xf32, #tpu.memory_space<vmem>>, %arg17: memref<128x128xf32, #tpu.memory_space<vmem>>) attributes {dimension_semantics = [#tpu.dimension_semantics<parallel>, #tpu.dimension_semantics<arbitrary>], iteration_bounds = array<i64: 3, 3>, scalar_prefetch = 0 : i64, scratch_operands = 3 : i64, tpu.core_type = #tpu.core_type<tc>, window_params = [{transform_indices = @transform_0, window_bounds = array<i64: 128, 1>}, {transform_indices = @transform_1, window_bounds = array<i64: 1, 128>}, {transform_indices = @transform_2, window_bounds = array<i64: 128, 128>}, {transform_indices = @transform_3, window_bounds = array<i64: 128, 8>}, {pipeline_mode = #tpu.pipeline_mode<synchronous>, transform_indices = @transform_4, window_bounds = array<i64: 8, 128>}, {pipeline_mode = #tpu.pipeline_mode<synchronous>, transform_indices = @transform_5, window_bounds = array<i64: 1, 128>}, {transform_indices = @transform_6, window_bounds = array<i64: 128, 128>}, {transform_indices = @transform_7, window_bounds = array<i64: 128, 128>}, {pipeline_mode = #tpu.pipeline_mode<synchronous>, transform_indices = @transform_8, window_bounds = array<i64: 128, 512>}, {pipeline_mode = #tpu.pipeline_mode<synchronous>, transform_indices = @transform_9, window_bounds = array<i64: 128, 512>}, {pipeline_mode = #tpu.pipeline_mode<synchronous>, transform_indices = @transform_10, window_bounds = array<i64: 1, 512>}, {transform_indices = @transform_11, window_bounds = array<i64: 128, 128>}, {transform_indices = @transform_12, window_bounds = array<i64: 128, 128>}]} {
    %c0_i32 = arith.constant 0 : i32
    %0 = arith.cmpi eq, %arg1, %c0_i32 : i32
    %1 = arith.extui %0 : i1 to i32
    %c0_i32_0 = arith.constant 0 : i32
    %2 = arith.cmpi ne, %1, %c0_i32_0 : i32
    scf.if %2 {
      %cst_29 = arith.constant -1.000000e+30 : f32
      %47 = vector.broadcast %cst_29 : f32 to vector<128x1xf32>
      %c0_30 = arith.constant 0 : index
      %c0_31 = arith.constant 0 : index
      %48 = vector.load %arg15[%c0_30, %c0_31] : memref<128x1xf32, #tpu.memory_space<vmem>>, vector<128x1xf32>
      tpu.vector_store %arg15[%c0_30, %c0_31], %47 {strides = array<i32>} : memref<128x1xf32, #tpu.memory_space<vmem>>, vector<128x1xf32>,
      %cst_32 = arith.constant 0.000000e+00 : f32
      %49 = vector.broadcast %cst_32 : f32 to vector<128x1xf32>
      %c0_33 = arith.constant 0 : index
      %c0_34 = arith.constant 0 : index
      %50 = vector.load %arg16[%c0_33, %c0_34] : memref<128x1xf32, #tpu.memory_space<vmem>>, vector<128x1xf32>
      tpu.vector_store %arg16[%c0_33, %c0_34], %49 {strides = array<i32>} : memref<128x1xf32, #tpu.memory_space<vmem>>, vector<128x1xf32>,
      %cst_35 = arith.constant 0.000000e+00 : f32
      %51 = vector.broadcast %cst_35 : f32 to vector<128x128xf32>
      %c0_36 = arith.constant 0 : index
      %c0_37 = arith.constant 0 : index
      %52 = vector.load %arg17[%c0_36, %c0_37] : memref<128x128xf32, #tpu.memory_space<vmem>>, vector<128x128xf32>
      tpu.vector_store %arg17[%c0_36, %c0_37], %51 {strides = array<i32>} : memref<128x128xf32, #tpu.memory_space<vmem>>, vector<128x128xf32>,
    } else {
    }
    %c0 = arith.constant 0 : index
    %c0_1 = arith.constant 0 : index
    %3 = vector.load %arg5[%c0, %c0_1] : memref<128x8xbf16, #tpu.memory_space<vmem>>, vector<128x8xbf16>
    %c0_2 = arith.constant 0 : index
    %c0_3 = arith.constant 0 : index
    %4 = vector.load %arg6[%c0_2, %c0_3] : memref<8x128xbf16, #tpu.memory_space<vmem>>, vector<8x128xbf16>
    %cst = arith.constant dense<0.000000e+00> : vector<128x128xf32>
    %5 = tpu.matmul %3, %4, %cst {dimension_numbers = #tpu.dot_dimension_numbers<[1], [0], [0], [1], [0, 0, 1, 1], [], []>} : vector<128x8xbf16>, vector<8x128xbf16>, vector<128x128xf32> -> vector<128x128xf32>
    %6 = arith.truncf %5 : vector<128x128xf32> to vector<128x128xbf16>
    %c0_4 = arith.constant 0 : index
    %c0_5 = arith.constant 0 : index
    %7 = vector.load %arg2[%c0_4, %c0_5] : memref<128x1xf32, #tpu.memory_space<vmem>>, vector<128x1xf32>
    %c0_6 = arith.constant 0 : index
    %c0_7 = arith.constant 0 : index
    %8 = vector.load %arg3[%c0_6, %c0_7] : memref<1x128xf32, #tpu.memory_space<vmem>>, vector<1x128xf32>
    %9 = vector.broadcast %7 : vector<128x1xf32> to vector<128x128xf32>
    %10 = vector.broadcast %8 : vector<1x128xf32> to vector<128x128xf32>
    %11 = arith.addf %9, %10 : vector<128x128xf32>
    %cst_8 = arith.constant 2.000000e-01 : f32
    %12 = vector.broadcast %cst_8 : f32 to vector<128x128xf32>
    %13 = arith.mulf %12, %11 : vector<128x128xf32>
    %14 = arith.maximumf %11, %13 : vector<128x128xf32>
    %c0_9 = arith.constant 0 : index
    %c0_10 = arith.constant 0 : index
    %15 = vector.load %arg4[%c0_9, %c0_10] : memref<128x128xi8, #tpu.memory_space<vmem>>, vector<128x128xi8>
    %16 = arith.sitofp %15 : vector<128x128xi8> to vector<128x128xf32>
    %cst_11 = arith.constant 0.000000e+00 : f32
    %17 = vector.broadcast %cst_11 : f32 to vector<128x128xf32>
    %18 = arith.cmpf ogt, %16, %17 : vector<128x128xf32>
    %cst_12 = arith.constant -1.000000e+30 : f32
    %19 = vector.broadcast %cst_12 : f32 to vector<128x128xf32>
    %20 = arith.select %18, %14, %19 : vector<128x128xi1>, vector<128x128xf32>
    %c0_13 = arith.constant 0 : index
    %c0_14 = arith.constant 0 : index
    %21 = vector.load %arg15[%c0_13, %c0_14] : memref<128x1xf32, #tpu.memory_space<vmem>>, vector<128x1xf32>
    %cst_15 = arith.constant dense<0xFF800000> : vector<128xf32>
    %22 = vector.multi_reduction <maximumf>, %20, %cst_15 [1] : vector<128x128xf32> to vector<128xf32>
    %23 = vector.shape_cast %22 : vector<128xf32> to vector<128x1xf32>
    %24 = arith.maximumf %21, %23 : vector<128x1xf32>
    %25 = arith.subf %21, %24 : vector<128x1xf32>
    %26 = math.exp %25 : vector<128x1xf32>
    %27 = vector.broadcast %24 : vector<128x1xf32> to vector<128x128xf32>
    %28 = arith.subf %20, %27 : vector<128x128xf32>
    %29 = math.exp %28 : vector<128x128xf32>
    %c0_16 = arith.constant 0 : index
    %c0_17 = arith.constant 0 : index
    %30 = vector.load %arg16[%c0_16, %c0_17] : memref<128x1xf32, #tpu.memory_space<vmem>>, vector<128x1xf32>
    %31 = arith.mulf %26, %30 : vector<128x1xf32>
    %cst_18 = arith.constant dense<0.000000e+00> : vector<128xf32>
    %32 = vector.multi_reduction <add>, %29, %cst_18 [1] : vector<128x128xf32> to vector<128xf32>
    %33 = vector.shape_cast %32 : vector<128xf32> to vector<128x1xf32>
    %34 = arith.addf %31, %33 : vector<128x1xf32>
    %c0_19 = arith.constant 0 : index
    %c0_20 = arith.constant 0 : index
    %35 = vector.load %arg16[%c0_19, %c0_20] : memref<128x1xf32, #tpu.memory_space<vmem>>, vector<128x1xf32>
    tpu.vector_store %arg16[%c0_19, %c0_20], %34 {strides = array<i32>} : memref<128x1xf32, #tpu.memory_space<vmem>>, vector<128x1xf32>,
    %c0_21 = arith.constant 0 : index
    %c0_22 = arith.constant 0 : index
    %36 = vector.load %arg17[%c0_21, %c0_22] : memref<128x128xf32, #tpu.memory_space<vmem>>, vector<128x128xf32>
    %37 = vector.broadcast %26 : vector<128x1xf32> to vector<128x128xf32>
    %38 = arith.mulf %37, %36 : vector<128x128xf32>
    %39 = arith.truncf %29 : vector<128x128xf32> to vector<128x128xbf16>
    %cst_23 = arith.constant dense<0.000000e+00> : vector<128x128xf32>
    %40 = tpu.matmul %39, %6, %cst_23 {dimension_numbers = #tpu.dot_dimension_numbers<[1], [0], [0], [1], [0, 0, 1, 1], [], []>} : vector<128x128xbf16>, vector<128x128xbf16>, vector<128x128xf32> -> vector<128x128xf32>
    %41 = arith.addf %38, %40 : vector<128x128xf32>
    %c0_24 = arith.constant 0 : index
    %c0_25 = arith.constant 0 : index
    %42 = vector.load %arg17[%c0_24, %c0_25] : memref<128x128xf32, #tpu.memory_space<vmem>>, vector<128x128xf32>
    tpu.vector_store %arg17[%c0_24, %c0_25], %41 {strides = array<i32>} : memref<128x128xf32, #tpu.memory_space<vmem>>, vector<128x128xf32>,
    %c0_26 = arith.constant 0 : index
    %c0_27 = arith.constant 0 : index
    %43 = vector.load %arg15[%c0_26, %c0_27] : memref<128x1xf32, #tpu.memory_space<vmem>>, vector<128x1xf32>
    tpu.vector_store %arg15[%c0_26, %c0_27], %24 {strides = array<i32>} : memref<128x1xf32, #tpu.memory_space<vmem>>, vector<128x1xf32>,
    %c2_i32 = arith.constant 2 : i32
    %44 = arith.cmpi eq, %arg1, %c2_i32 : i32
    %45 = arith.extui %44 : i1 to i32
    %c0_i32_28 = arith.constant 0 : i32
    %46 = arith.cmpi ne, %45, %c0_i32_28 : i32
    scf.if %46 {
      %c0_29 = arith.constant 0 : index
      %c0_30 = arith.constant 0 : index
      %47 = vector.load %arg16[%c0_29, %c0_30] : memref<128x1xf32, #tpu.memory_space<vmem>>, vector<128x1xf32>
      %cst_31 = arith.constant 9.99999971E-10 : f32
      %48 = vector.broadcast %cst_31 : f32 to vector<128x1xf32>
      %49 = arith.maximumf %47, %48 : vector<128x1xf32>
      %50 = tpu.reciprocal %49 {approx = true} : vector<128x1xf32> -> vector<128x1xf32>
      %c0_32 = arith.constant 0 : index
      %c0_33 = arith.constant 0 : index
      %51 = vector.load %arg17[%c0_32, %c0_33] : memref<128x128xf32, #tpu.memory_space<vmem>>, vector<128x128xf32>
      %52 = vector.broadcast %50 : vector<128x1xf32> to vector<128x128xf32>
      %53 = arith.mulf %51, %52 : vector<128x128xf32>
      %c0_34 = arith.constant 0 : index
      %c0_35 = arith.constant 0 : index
      %54 = vector.load %arg7[%c0_34, %c0_35] : memref<1x128xf32, #tpu.memory_space<vmem>>, vector<1x128xf32>
      %55 = vector.broadcast %54 : vector<1x128xf32> to vector<128x128xf32>
      %56 = arith.addf %53, %55 : vector<128x128xf32>
      %57 = math.tanh %56 : vector<128x128xf32>
      %58 = arith.truncf %57 : vector<128x128xf32> to vector<128x128xbf16>
      %c0_36 = arith.constant 0 : index
      %c0_37 = arith.constant 0 : index
      %59 = vector.load %arg10[%c0_36, %c0_37] : memref<128x512xbf16, #tpu.memory_space<vmem>>, vector<128x512xbf16>
      %cst_38 = arith.constant dense<0.000000e+00> : vector<128x512xf32>
      %60 = tpu.matmul %58, %59, %cst_38 {dimension_numbers = #tpu.dot_dimension_numbers<[1], [0], [0], [1], [0, 0, 1, 1], [], []>} : vector<128x128xbf16>, vector<128x512xbf16>, vector<128x512xf32> -> vector<128x512xf32>
      %c0_39 = arith.constant 0 : index
      %c0_40 = arith.constant 0 : index
      %61 = vector.load %arg8[%c0_39, %c0_40] : memref<128x128xf32, #tpu.memory_space<vmem>>, vector<128x128xf32>
      %62 = arith.truncf %61 : vector<128x128xf32> to vector<128x128xbf16>
      %c0_41 = arith.constant 0 : index
      %c0_42 = arith.constant 0 : index
      %63 = vector.load %arg11[%c0_41, %c0_42] : memref<128x512xbf16, #tpu.memory_space<vmem>>, vector<128x512xbf16>
      %cst_43 = arith.constant dense<0.000000e+00> : vector<128x512xf32>
      %64 = tpu.matmul %62, %63, %cst_43 {dimension_numbers = #tpu.dot_dimension_numbers<[1], [0], [0], [1], [0, 0, 1, 1], [], []>} : vector<128x128xbf16>, vector<128x512xbf16>, vector<128x512xf32> -> vector<128x512xf32>
      %65 = arith.addf %60, %64 : vector<128x512xf32>
      %c0_44 = arith.constant 0 : index
      %c0_45 = arith.constant 0 : index
      %66 = vector.load %arg12[%c0_44, %c0_45] : memref<1x512xf32, #tpu.memory_space<vmem>>, vector<1x512xf32>
      %67 = vector.broadcast %66 : vector<1x512xf32> to vector<128x512xf32>
      %68 = arith.addf %65, %67 : vector<128x512xf32>
      %69 = vector.extract_strided_slice %68 {offsets = [0, 0], sizes = [128, 128], strides = [1, 1]} : vector<128x512xf32> to vector<128x128xf32>
      %70 = arith.negf %69 : vector<128x128xf32>
      %71 = math.exp %70 : vector<128x128xf32>
      %cst_46 = arith.constant 1.000000e+00 : f32
      %72 = vector.broadcast %cst_46 : f32 to vector<128x128xf32>
      %73 = arith.addf %72, %71 : vector<128x128xf32>
      %74 = arith.divf %72, %73 : vector<128x128xf32>
      %75 = vector.extract_strided_slice %68 {offsets = [0, 128], sizes = [128, 128], strides = [1, 1]} : vector<128x512xf32> to vector<128x128xf32>
      %76 = arith.negf %75 : vector<128x128xf32>
      %77 = math.exp %76 : vector<128x128xf32>
      %cst_47 = arith.constant 1.000000e+00 : f32
      %78 = vector.broadcast %cst_47 : f32 to vector<128x128xf32>
      %79 = arith.addf %78, %77 : vector<128x128xf32>
      %80 = arith.divf %78, %79 : vector<128x128xf32>
      %81 = vector.extract_strided_slice %68 {offsets = [0, 256], sizes = [128, 128], strides = [1, 1]} : vector<128x512xf32> to vector<128x128xf32>
      %82 = math.tanh %81 : vector<128x128xf32>
      %83 = vector.extract_strided_slice %68 {offsets = [0, 384], sizes = [128, 128], strides = [1, 1]} : vector<128x512xf32> to vector<128x128xf32>
      %84 = arith.negf %83 : vector<128x128xf32>
      %85 = math.exp %84 : vector<128x128xf32>
      %cst_48 = arith.constant 1.000000e+00 : f32
      %86 = vector.broadcast %cst_48 : f32 to vector<128x128xf32>
      %87 = arith.addf %86, %85 : vector<128x128xf32>
      %88 = arith.divf %86, %87 : vector<128x128xf32>
      %c0_49 = arith.constant 0 : index
      %c0_50 = arith.constant 0 : index
      %89 = vector.load %arg9[%c0_49, %c0_50] : memref<128x128xf32, #tpu.memory_space<vmem>>, vector<128x128xf32>
      %90 = arith.mulf %80, %89 : vector<128x128xf32>
      %91 = arith.mulf %74, %82 : vector<128x128xf32>
      %92 = arith.addf %90, %91 : vector<128x128xf32>
      %93 = math.tanh %92 : vector<128x128xf32>
      %94 = arith.mulf %88, %93 : vector<128x128xf32>
      %c0_51 = arith.constant 0 : index
      %c0_52 = arith.constant 0 : index
      %95 = vector.load %arg13[%c0_51, %c0_52] : memref<128x128xf32, #tpu.memory_space<vmem>>, vector<128x128xf32>
      tpu.vector_store %arg13[%c0_51, %c0_52], %94 {strides = array<i32>} : memref<128x128xf32, #tpu.memory_space<vmem>>, vector<128x128xf32>,
      %c0_53 = arith.constant 0 : index
      %c0_54 = arith.constant 0 : index
      %96 = vector.load %arg14[%c0_53, %c0_54] : memref<128x128xf32, #tpu.memory_space<vmem>>, vector<128x128xf32>
      tpu.vector_store %arg14[%c0_53, %c0_54], %92 {strides = array<i32>} : memref<128x128xf32, #tpu.memory_space<vmem>>, vector<128x128xf32>,
    } else {
    }
    return
  }
  func.func @transform_0(%arg0: i32, %arg1: i32) -> (i32, i32) {
    %c0_i32 = arith.constant 0 : i32
    %c0_i32_0 = arith.constant 0 : i32
    return %arg0, %c0_i32 : i32, i32
  }
  func.func @transform_1(%arg0: i32, %arg1: i32) -> (i32, i32) {
    %c0_i32 = arith.constant 0 : i32
    %c0_i32_0 = arith.constant 0 : i32
    return %c0_i32, %arg1 : i32, i32
  }
  func.func @transform_2(%arg0: i32, %arg1: i32) -> (i32, i32) {
    %c0_i32 = arith.constant 0 : i32
    return %arg0, %arg1 : i32, i32
  }
  func.func @transform_3(%arg0: i32, %arg1: i32) -> (i32, i32) {
    %c0_i32 = arith.constant 0 : i32
    %c0_i32_0 = arith.constant 0 : i32
    return %arg1, %c0_i32 : i32, i32
  }
  func.func @transform_4(%arg0: i32, %arg1: i32) -> (i32, i32) {
    %c0_i32 = arith.constant 0 : i32
    %c0_i32_0 = arith.constant 0 : i32
    %c0_i32_1 = arith.constant 0 : i32
    return %c0_i32, %c0_i32_0 : i32, i32
  }
  func.func @transform_5(%arg0: i32, %arg1: i32) -> (i32, i32) {
    %c0_i32 = arith.constant 0 : i32
    %c0_i32_0 = arith.constant 0 : i32
    %c0_i32_1 = arith.constant 0 : i32
    return %c0_i32, %c0_i32_0 : i32, i32
  }
  func.func @transform_6(%arg0: i32, %arg1: i32) -> (i32, i32) {
    %c0_i32 = arith.constant 0 : i32
    %c0_i32_0 = arith.constant 0 : i32
    return %arg0, %c0_i32 : i32, i32
  }
  func.func @transform_7(%arg0: i32, %arg1: i32) -> (i32, i32) {
    %c0_i32 = arith.constant 0 : i32
    %c0_i32_0 = arith.constant 0 : i32
    return %arg0, %c0_i32 : i32, i32
  }
  func.func @transform_8(%arg0: i32, %arg1: i32) -> (i32, i32) {
    %c0_i32 = arith.constant 0 : i32
    %c0_i32_0 = arith.constant 0 : i32
    %c0_i32_1 = arith.constant 0 : i32
    return %c0_i32, %c0_i32_0 : i32, i32
  }
  func.func @transform_9(%arg0: i32, %arg1: i32) -> (i32, i32) {
    %c0_i32 = arith.constant 0 : i32
    %c0_i32_0 = arith.constant 0 : i32
    %c0_i32_1 = arith.constant 0 : i32
    return %c0_i32, %c0_i32_0 : i32, i32
  }
  func.func @transform_10(%arg0: i32, %arg1: i32) -> (i32, i32) {
    %c0_i32 = arith.constant 0 : i32
    %c0_i32_0 = arith.constant 0 : i32
    %c0_i32_1 = arith.constant 0 : i32
    return %c0_i32, %c0_i32_0 : i32, i32
  }
  func.func @transform_11(%arg0: i32, %arg1: i32) -> (i32, i32) {
    %c0_i32 = arith.constant 0 : i32
    %c0_i32_0 = arith.constant 0 : i32
    return %arg0, %c0_i32 : i32, i32
  }
  func.func @transform_12(%arg0: i32, %arg1: i32) -> (i32, i32) {
    %c0_i32 = arith.constant 0 : i32
    %c0_i32_0 = arith.constant 0 : i32
    return %arg0, %c0_i32 : i32, i32
  }
}

</mosaic_0001>

<llo_original>
// kernel: geniepath_conv.1
$region0: #{geniepath_conv.1}
  #allocation0 [shape = 'u32[]', space=smem, size = 0x4, offset = 0x4, fixed_abs, tag = 'smem constant byte address 0x4 - core index']
  #allocation1 [shape = 'u32[144,128]{1,0:T(1,128)}', space=vmem, size = 0x12000, scoped, tag = 'internal scratch']
  #allocation2 [shape = 'f32[128,1]{1,0:T(8,128)}', space=vmem, size = 0x10000, scoped, tag = 'scratch operand']
  #allocation3 [shape = 'f32[128,1]{1,0:T(8,128)}', space=vmem, size = 0x10000, scoped, tag = 'scratch operand']
  #allocation4 [shape = 'f32[128,128]{1,0:T(8,128)}', space=vmem, size = 0x10000, scoped, tag = 'scratch operand']
  %s0 = inlined_call_operand.vmem [shape: f32[384,1], index: 0, kind: input, shape index: {}]
  %s1 = inlined_call_operand.vmem [shape: f32[1,384], index: 1, kind: input, shape index: {}]
  %s2 = inlined_call_operand.vmem [shape: s8[384,384], index: 2, kind: input, shape index: {}]
  %s3 = inlined_call_operand.vmem [shape: bf16[384,8], index: 3, kind: input, shape index: {}]
  %s4 = inlined_call_operand.vmem [shape: bf16[8,128], index: 4, kind: input, shape index: {}]
  %s5 = inlined_call_operand.vmem [shape: f32[1,128], index: 5, kind: input, shape index: {}]
  %s6 = inlined_call_operand.vmem [shape: f32[384,128], index: 6, kind: input, shape index: {}, may-alias: {6,11}]
  %s7 = inlined_call_operand.vmem [shape: f32[384,128], index: 7, kind: input, shape index: {}, may-alias: {7,12}]
  %s8 = inlined_call_operand.vmem [shape: bf16[128,512], index: 8, kind: input, shape index: {}]
  %s9 = inlined_call_operand.vmem [shape: bf16[128,512], index: 9, kind: input, shape index: {}]
  %s10 = inlined_call_operand.vmem [shape: f32[1,512], index: 10, kind: input, shape index: {}]
  %s11 = inlined_call_operand.vmem [shape: f32[384,128], index: 11, kind: output, shape index: {0}, may-alias: {6,11}]
  %s12 = inlined_call_operand.vmem [shape: f32[384,128], index: 12, kind: output, shape index: {1}, may-alias: {7,12}]
  %13 = xla_tuple %s11, %s12
  %s14 = sld [smem:[#allocation0]]
  $region131: #{geniepath_conv.1} parent=0
    _
  %s16 = ssub.s32 1, %s14
  %s17 = scalar_select 0, %s16, %s14
  $region1: #{geniepath_conv.1} parent=0
    #allocation5 [shape = 'u8[32768]{0}', space=vmem, size = 0x8000, scoped, tag = 'input window, operand 2']
    loop: start=0, step=1, limit=11
    $region2: #{geniepath_conv.1} parent=1 // loop_pre_header
      _
    $region3: #{geniepath_conv.1} parent=1 // loop_header
      %s19 = sphi 0, %s23
      %p20 = scmp.ge.s32.totalorder %s19, 11
      %s26 = sphi 0, %s38
      %s27 = sphi 0, %s34
      %s28 = sphi 0, %s26
      %s29 = sphi 0, %s27
      %s30 = sphi 0, %s28
      %s31 = sphi 0, %s29
      %s41 = sphi 0, %s43
      %s44 = sphi 0, %s41
      %s45 = sphi 0, %s44
      %s61 = sphi 0, %s45
      %s67 = sphi 0, %s69
      %s70 = sphi 0, %s67
      %s71 = sphi 0, %s70
      %s87 = sphi 0, %s71
      %s95 = sphi 0, %s97
      %s98 = sphi 0, %s95
      %s99 = sphi 0, %s98
      %s115 = sphi 0, %s99
      %s121 = sphi 0, %s123
      %s124 = sphi 0, %s121
      %s125 = sphi 0, %s124
      %s141 = sphi 0, %s125
      %s145 = sphi 0, %s145
      %s147 = sphi 0, %s145
      %s148 = sphi 0, %s147
      %s162 = sphi 0, %s148
      %s166 = sphi 0, %s166
      %s168 = sphi 0, %s166
      %s169 = sphi 0, %s168
      %s183 = sphi 0, %s169
      %s189 = sphi 0, %s191
      %s192 = sphi 0, %s189
      %s193 = sphi 0, %s192
      %s209 = sphi 0, %s193
      %s215 = sphi 0, %s217
      %s218 = sphi 0, %s215
      %s219 = sphi 0, %s218
      %s235 = sphi 0, %s219
      %s239 = sphi 0, %s239
      %s241 = sphi 0, %s239
      %s242 = sphi 0, %s241
      %s256 = sphi 0, %s242
      %s260 = sphi 0, %s260
      %s262 = sphi 0, %s260
      %s263 = sphi 0, %s262
      %s277 = sphi 0, %s263
      %s281 = sphi 0, %s281
      %s283 = sphi 0, %s281
      %s284 = sphi 0, %s283
      %s298 = sphi 0, %s284
      %s304 = sphi 0, %s306
      %s307 = sphi 0, %s304
      %s308 = sphi 0, %s307
      %s324 = sphi 0, %s308
      %s330 = sphi 0, %s332
      %s333 = sphi 0, %s330
      %s334 = sphi 0, %s333
      %s350 = sphi 0, %s334
    $region4: #{geniepath_conv.1} parent=1 // loop_header_branch
      %22 = sbr.rel (%p20) target = $region8
    $region5: #{geniepath_conv.1} parent=1 // loop_body
      %s24 = ssub.s32 %s19, 1
      %s25 = ssub.s32 %s19, 2
      %s32 = sadd.s32 1, %s27
      %p33 = scmp.ge.s32.totalorder %s32, 3
      %s34 = scalar_select %p33, 0, %s32
      %s35 = sadd.s32 1, %s26
      %s36 = scalar_select %p33, %s35, %s26
      %p37 = scmp.ge.s32.totalorder %s36, 3
      %s38 = scalar_select %p37, 0, %s36
      %s39 = ssub.s32 %s26, %s38
      %p40 = scmp.eq.s32.totalorder %s39, 0
      %s42 = sadd.s32 %s41, 1
      %s43 = scalar_select %p40, %s41, %s42
      %p46 = pneg %p40
      %p47 = scmp.eq.s32.totalorder %s19, 8
      %p48 = por %p46, %p47
      %p49 = scmp.ne.s32.totalorder %s41, %s44
      %p50 = scmp.eq.s32.totalorder %s19, 0
      %p51 = por %p49, %p50
      %p52 = scmp.ne.s32.totalorder %s41, %s44
      %p53 = scmp.eq.s32.totalorder %s24, 8
      %p54 = por %p52, %p53
      %p55 = scmp.ne.s32.totalorder %s44, %s45
      %p56 = scmp.eq.s32.totalorder %s24, 0
      %p57 = por %p55, %p56
      %p58 = scmp.ne.s32.totalorder %s44, %s45
      %p59 = scmp.eq.s32.totalorder %s25, 8
      %p60 = por %p58, %p59
      %p62 = scmp.ne.s32.totalorder %s45, %s61
      %p63 = scmp.eq.s32.totalorder %s25, 0
      %p64 = por %p62, %p63
      %s65 = ssub.s32 %s27, %s34
      %p66 = scmp.eq.s32.totalorder %s65, 0
      %s68 = sadd.s32 %s67, 1
      %s69 = scalar_select %p66, %s67, %s68
      %p72 = pneg %p66
      %p73 = scmp.eq.s32.totalorder %s19, 8
      %p74 = por %p72, %p73
      %p75 = scmp.ne.s32.totalorder %s67, %s70
      %p76 = scmp.eq.s32.totalorder %s19, 0
      %p77 = por %p75, %p76
      %p78 = scmp.ne.s32.totalorder %s67, %s70
      %p79 = scmp.eq.s32.totalorder %s24, 8
      %p80 = por %p78, %p79
      %p81 = scmp.ne.s32.totalorder %s70, %s71
      %p82 = scmp.eq.s32.totalorder %s24, 0
      %p83 = por %p81, %p82
      %p84 = scmp.ne.s32.totalorder %s70, %s71
      %p85 = scmp.eq.s32.totalorder %s25, 8
      %p86 = por %p84, %p85
      %p88 = scmp.ne.s32.totalorder %s71, %s87
      %p89 = scmp.eq.s32.totalorder %s25, 0
      %p90 = por %p88, %p89
      %s91 = ssub.s32 %s26, %s38
      %s92 = ssub.s32 %s27, %s34
      %s93 = sor.u32 %s91, %s92
      %p94 = scmp.eq.s32.totalorder %s93, 0
      %s96 = sadd.s32 %s95, 1
      %s97 = scalar_select %p94, %s95, %s96
      %p100 = pneg %p94
      %p101 = scmp.eq.s32.totalorder %s19, 8
      %p102 = por %p100, %p101
      %p103 = scmp.ne.s32.totalorder %s95, %s98
      %p104 = scmp.eq.s32.totalorder %s19, 0
      %p105 = por %p103, %p104
      %p106 = scmp.ne.s32.totalorder %s95, %s98
      %p107 = scmp.eq.s32.totalorder %s24, 8
      %p108 = por %p106, %p107
      %p109 = scmp.ne.s32.totalorder %s98, %s99
      %p110 = scmp.eq.s32.totalorder %s24, 0
      %p111 = por %p109, %p110
      %p112 = scmp.ne.s32.totalorder %s98, %s99
      %p113 = scmp.eq.s32.totalorder %s25, 8
      %p114 = por %p112, %p113
      %p116 = scmp.ne.s32.totalorder %s99, %s115
      %p117 = scmp.eq.s32.totalorder %s25, 0
      %p118 = por %p116, %p117
      %s119 = ssub.s32 %s27, %s34
      %p120 = scmp.eq.s32.totalorder %s119, 0
      %s122 = sadd.s32 %s121, 1
      %s123 = scalar_select %p120, %s121, %s122
      %p126 = pneg %p120
      %p127 = scmp.eq.s32.totalorder %s19, 8
      %p128 = por %p126, %p127
      %p129 = scmp.ne.s32.totalorder %s121, %s124
      %p130 = scmp.eq.s32.totalorder %s19, 0
      %p131 = por %p129, %p130
      %p132 = scmp.ne.s32.totalorder %s121, %s124
      %p133 = scmp.eq.s32.totalorder %s24, 8
      %p134 = por %p132, %p133
      %p135 = scmp.ne.s32.totalorder %s124, %s125
      %p136 = scmp.eq.s32.totalorder %s24, 0
      %p137 = por %p135, %p136
      %p138 = scmp.ne.s32.totalorder %s124, %s125
      %p139 = scmp.eq.s32.totalorder %s25, 8
      %p140 = por %p138, %p139
      %p142 = scmp.ne.s32.totalorder %s125, %s141
      %p143 = scmp.eq.s32.totalorder %s25, 0
      %p144 = por %p142, %p143
      %s146 = sadd.s32 %s145, 1
      %p149 = scmp.eq.s32.totalorder %s19, 8
      %p150 = scmp.ne.s32.totalorder %s145, %s147
      %p151 = scmp.eq.s32.totalorder %s19, 0
      %p152 = por %p150, %p151
      %p153 = scmp.ne.s32.totalorder %s145, %s147
      %p154 = scmp.eq.s32.totalorder %s24, 8
      %p155 = por %p153, %p154
      %p156 = scmp.ne.s32.totalorder %s147, %s148
      %p157 = scmp.eq.s32.totalorder %s24, 0
      %p158 = por %p156, %p157
      %p159 = scmp.ne.s32.totalorder %s147, %s148
      %p160 = scmp.eq.s32.totalorder %s25, 8
      %p161 = por %p159, %p160
      %p163 = scmp.ne.s32.totalorder %s148, %s162
      %p164 = scmp.eq.s32.totalorder %s25, 0
      %p165 = por %p163, %p164
      %s167 = sadd.s32 %s166, 1
      %p170 = scmp.eq.s32.totalorder %s19, 8
      %p171 = scmp.ne.s32.totalorder %s166, %s168
      %p172 = scmp.eq.s32.totalorder %s19, 0
      %p173 = por %p171, %p172
      %p174 = scmp.ne.s32.totalorder %s166, %s168
      %p175 = scmp.eq.s32.totalorder %s24, 8
      %p176 = por %p174, %p175
      %p177 = scmp.ne.s32.totalorder %s168, %s169
      %p178 = scmp.eq.s32.totalorder %s24, 0
      %p179 = por %p177, %p178
      %p180 = scmp.ne.s32.totalorder %s168, %s169
      %p181 = scmp.eq.s32.totalorder %s25, 8
      %p182 = por %p180, %p181
      %p184 = scmp.ne.s32.totalorder %s169, %s183
      %p185 = scmp.eq.s32.totalorder %s25, 0
      %p186 = por %p184, %p185
      %s187 = ssub.s32 %s26, %s38
      %p188 = scmp.eq.s32.totalorder %s187, 0
      %s190 = sadd.s32 %s189, 1
      %s191 = scalar_select %p188, %s189, %s190
      %p194 = pneg %p188
      %p195 = scmp.eq.s32.totalorder %s19, 8
      %p196 = por %p194, %p195
      %p197 = scmp.ne.s32.totalorder %s189, %s192
      %p198 = scmp.eq.s32.totalorder %s19, 0
      %p199 = por %p197, %p198
      %p200 = scmp.ne.s32.totalorder %s189, %s192
      %p201 = scmp.eq.s32.totalorder %s24, 8
      %p202 = por %p200, %p201
      %p203 = scmp.ne.s32.totalorder %s192, %s193
      %p204 = scmp.eq.s32.totalorder %s24, 0
      %p205 = por %p203, %p204
      %p206 = scmp.ne.s32.totalorder %s192, %s193
      %p207 = scmp.eq.s32.totalorder %s25, 8
      %p208 = por %p206, %p207
      %p210 = scmp.ne.s32.totalorder %s193, %s209
      %p211 = scmp.eq.s32.totalorder %s25, 0
      %p212 = por %p210, %p211
      %s213 = ssub.s32 %s26, %s38
      %p214 = scmp.eq.s32.totalorder %s213, 0
      %s216 = sadd.s32 %s215, 1
      %s217 = scalar_select %p214, %s215, %s216
      %p220 = pneg %p214
      %p221 = scmp.eq.s32.totalorder %s19, 8
      %p222 = por %p220, %p221
      %p223 = scmp.ne.s32.totalorder %s215, %s218
      %p224 = scmp.eq.s32.totalorder %s19, 0
      %p225 = por %p223, %p224
      %p226 = scmp.ne.s32.totalorder %s215, %s218
      %p227 = scmp.eq.s32.totalorder %s24, 8
      %p228 = por %p226, %p227
      %p229 = scmp.ne.s32.totalorder %s218, %s219
      %p230 = scmp.eq.s32.totalorder %s24, 0
      %p231 = por %p229, %p230
      %p232 = scmp.ne.s32.totalorder %s218, %s219
      %p233 = scmp.eq.s32.totalorder %s25, 8
      %p234 = por %p232, %p233
      %p236 = scmp.ne.s32.totalorder %s219, %s235
      %p237 = scmp.eq.s32.totalorder %s25, 0
      %p238 = por %p236, %p237
      %s240 = sadd.s32 %s239, 1
      %p243 = scmp.eq.s32.totalorder %s19, 8
      %p244 = scmp.ne.s32.totalorder %s239, %s241
      %p245 = scmp.eq.s32.totalorder %s19, 0
      %p246 = por %p244, %p245
      %p247 = scmp.ne.s32.totalorder %s239, %s241
      %p248 = scmp.eq.s32.totalorder %s24, 8
      %p249 = por %p247, %p248
      %p250 = scmp.ne.s32.totalorder %s241, %s242
      %p251 = scmp.eq.s32.totalorder %s24, 0
      %p252 = por %p250, %p251
      %p253 = scmp.ne.s32.totalorder %s241, %s242
      %p254 = scmp.eq.s32.totalorder %s25, 8
      %p255 = por %p253, %p254
      %p257 = scmp.ne.s32.totalorder %s242, %s256
      %p258 = scmp.eq.s32.totalorder %s25, 0
      %p259 = por %p257, %p258
      %s261 = sadd.s32 %s260, 1
      %p264 = scmp.eq.s32.totalorder %s19, 8
      %p265 = scmp.ne.s32.totalorder %s260, %s262
      %p266 = scmp.eq.s32.totalorder %s19, 0
      %p267 = por %p265, %p266
      %p268 = scmp.ne.s32.totalorder %s260, %s262
      %p269 = scmp.eq.s32.totalorder %s24, 8
      %p270 = por %p268, %p269
      %p271 = scmp.ne.s32.totalorder %s262, %s263
      %p272 = scmp.eq.s32.totalorder %s24, 0
      %p273 = por %p271, %p272
      %p274 = scmp.ne.s32.totalorder %s262, %s263
      %p275 = scmp.eq.s32.totalorder %s25, 8
      %p276 = por %p274, %p275
      %p278 = scmp.ne.s32.totalorder %s263, %s277
      %p279 = scmp.eq.s32.totalorder %s25, 0
      %p280 = por %p278, %p279
      %s282 = sadd.s32 %s281, 1
      %p285 = scmp.eq.s32.totalorder %s19, 8
      %p286 = scmp.ne.s32.totalorder %s281, %s283
      %p287 = scmp.eq.s32.totalorder %s19, 0
      %p288 = por %p286, %p287
      %p289 = scmp.ne.s32.totalorder %s281, %s283
      %p290 = scmp.eq.s32.totalorder %s24, 8
      %p291 = por %p289, %p290
      %p292 = scmp.ne.s32.totalorder %s283, %s284
      %p293 = scmp.eq.s32.totalorder %s24, 0
      %p294 = por %p292, %p293
      %p295 = scmp.ne.s32.totalorder %s283, %s284
      %p296 = scmp.eq.s32.totalorder %s25, 8
      %p297 = por %p295, %p296
      %p299 = scmp.ne.s32.totalorder %s284, %s298
      %p300 = scmp.eq.s32.totalorder %s25, 0
      %p301 = por %p299, %p300
      %s302 = ssub.s32 %s26, %s38
      %p303 = scmp.eq.s32.totalorder %s302, 0
      %s305 = sadd.s32 %s304, 1
      %s306 = scalar_select %p303, %s304, %s305
      %p309 = pneg %p303
      %p310 = scmp.eq.s32.totalorder %s19, 8
      %p311 = por %p309, %p310
      %p312 = scmp.ne.s32.totalorder %s304, %s307
      %p313 = scmp.eq.s32.totalorder %s19, 0
      %p314 = por %p312, %p313
      %p315 = scmp.ne.s32.totalorder %s304, %s307
      %p316 = scmp.eq.s32.totalorder %s24, 8
      %p317 = por %p315, %p316
      %p318 = scmp.ne.s32.totalorder %s307, %s308
      %p319 = scmp.eq.s32.totalorder %s24, 0
      %p320 = por %p318, %p319
      %p321 = scmp.ne.s32.totalorder %s307, %s308
      %p322 = scmp.eq.s32.totalorder %s25, 8
      %p323 = por %p321, %p322
      %p325 = scmp.ne.s32.totalorder %s308, %s324
      %p326 = scmp.eq.s32.totalorder %s25, 0
      %p327 = por %p325, %p326
      %s328 = ssub.s32 %s26, %s38
      %p329 = scmp.eq.s32.totalorder %s328, 0
      %s331 = sadd.s32 %s330, 1
      %s332 = scalar_select %p329, %s330, %s331
      %p335 = pneg %p329
      %p336 = scmp.eq.s32.totalorder %s19, 8
      %p337 = por %p335, %p336
      %p338 = scmp.ne.s32.totalorder %s330, %s333
      %p339 = scmp.eq.s32.totalorder %s19, 0
      %p340 = por %p338, %p339
      %p341 = scmp.ne.s32.totalorder %s330, %s333
      %p342 = scmp.eq.s32.totalorder %s24, 8
      %p343 = por %p341, %p342
      %p344 = scmp.ne.s32.totalorder %s333, %s334
      %p345 = scmp.eq.s32.totalorder %s24, 0
      %p346 = por %p344, %p345
      %p347 = scmp.ne.s32.totalorder %s333, %s334
      %p348 = scmp.eq.s32.totalorder %s25, 8
      %p349 = por %p347, %p348
      %p351 = scmp.ne.s32.totalorder %s334, %s350
      %p352 = scmp.eq.s32.totalorder %s25, 0
      %p353 = por %p351, %p352
      %p354 = scmp.le.s32.totalorder 1, %s19
      %p355 = scmp.lt.s32.totalorder %s19, 10
      %p356 = pnand %p354, %p355
      %p357 = pneg %p356
      // Predicated region
      $region9: #{geniepath_conv.1} parent=5 // pred_check
        _
      $region10: #{geniepath_conv.1} parent=5 // pred_check_branch
        %359 = sbr.rel (%p356) target = $region12
      $region11: #{geniepath_conv.1} parent=5 // pred_region
        %s360 = ssub.s32 %s19, 1
        // Predicated region
        $region13: #{geniepath_conv.1} parent=11 // pred_check
          %p361 = pneg %p158
        $region14: #{geniepath_conv.1} parent=11 // pred_check_branch
          %363 = sbr.rel (%p361) target = $region16
        $region15: #{geniepath_conv.1} parent=11 // pred_region
          _
        $region16: #{geniepath_conv.1} parent=11 // pred_fallthru
          _
        // Predicated region
        $region17: #{geniepath_conv.1} parent=11 // pred_check
          %p364 = pneg %p179
        $region18: #{geniepath_conv.1} parent=11 // pred_check_branch
          %366 = sbr.rel (%p364) target = $region20
        $region19: #{geniepath_conv.1} parent=11 // pred_region
          _
        $region20: #{geniepath_conv.1} parent=11 // pred_fallthru
          _
        // Predicated region
        $region21: #{geniepath_conv.1} parent=11 // pred_check
          %p367 = pneg %p252
        $region22: #{geniepath_conv.1} parent=11 // pred_check_branch
          %369 = sbr.rel (%p367) target = $region24
        $region23: #{geniepath_conv.1} parent=11 // pred_region
          _
        $region24: #{geniepath_conv.1} parent=11 // pred_fallthru
          _
        // Predicated region
        $region25: #{geniepath_conv.1} parent=11 // pred_check
          %p370 = pneg %p273
        $region26: #{geniepath_conv.1} parent=11 // pred_check_branch
          %372 = sbr.rel (%p370) target = $region28
        $region27: #{geniepath_conv.1} parent=11 // pred_region
          _
        $region28: #{geniepath_conv.1} parent=11 // pred_fallthru
          _
        // Predicated region
        $region29: #{geniepath_conv.1} parent=11 // pred_check
          %p373 = pneg %p294
        $region30: #{geniepath_conv.1} parent=11 // pred_check_branch
          %375 = sbr.rel (%p373) target = $region32
        $region31: #{geniepath_conv.1} parent=11 // pred_region
          _
        $region32: #{geniepath_conv.1} parent=11 // pred_fallthru
          _
      $region12: #{geniepath_conv.1} parent=5 // pred_fallthru
        _
      %p376 = scmp.lt.s32.totalorder %s19, 9
      // Predicated region
      $region33: #{geniepath_conv.1} parent=5 // pred_check
        %p377 = pneg %p376
      $region34: #{geniepath_conv.1} parent=5 // pred_check_branch
        %379 = sbr.rel (%p377) target = $region36
      $region35: #{geniepath_conv.1} parent=5 // pred_region
        // Predicated region
        $region37: #{geniepath_conv.1} parent=35 // pred_check
          %p380 = pneg %p51
        $region38: #{geniepath_conv.1} parent=35 // pred_check_branch
          %382 = sbr.rel (%p380) target = $region40
        $region39: #{geniepath_conv.1} parent=35 // pred_region
          %s383 = smul.u32 16, %s26
          %p384 = scmp.lt.s32.totalorder %s383, 47
          %s385 = scalar_select %p384, %s383, 47
          %s386 = smul.addr %s385, 8
          %s387 = scalar_lea.vmem %s0, %s386
          %s388 = smul.u32 16, %s26
        $region40: #{geniepath_conv.1} parent=35 // pred_fallthru
          _
        // Predicated region
        $region41: #{geniepath_conv.1} parent=35 // pred_check
          %p389 = pneg %p77
        $region42: #{geniepath_conv.1} parent=35 // pred_check_branch
          %391 = sbr.rel (%p389) target = $region44
        $region43: #{geniepath_conv.1} parent=35 // pred_region
          %p392 = scmp.lt.s32.totalorder %s27, 2
          %s393 = scalar_select %p392, %s27, 2
          %s394 = scalar_lea.vmem %s1, %s393
        $region44: #{geniepath_conv.1} parent=35 // pred_fallthru
          _
        // Predicated region
        $region45: #{geniepath_conv.1} parent=35 // pred_check
          %p395 = pneg %p105
        $region46: #{geniepath_conv.1} parent=35 // pred_check_branch
          %397 = sbr.rel (%p395) target = $region48
        $region47: #{geniepath_conv.1} parent=35 // pred_region
          %s398 = sand.u32 %s95, 1
          %s399 = sand.u32 %s95, 1
          %s400 = smul.addr %s399, 32
          %s401 = scalar_lea.vmem [#allocation5], %s400
          %s402 = smul.u32 4, %s26
          %s403 = smul.addr %s402, 3
          %s404 = sadd.s32 %s27, %s403
          %s405 = smul.addr %s404, 8
          %s406 = scalar_lea.vmem %s2, %s405
          // Predicated region
          $region49: #{geniepath_conv.1} parent=47 // pred_check
            _
          $region50: #{geniepath_conv.1} parent=47 // pred_check_branch
            %408 = sbr.rel (0) target = $region52
          $region51: #{geniepath_conv.1} parent=47 // pred_region
            // Predicated region
            $region53: #{geniepath_conv.1} parent=51 // pred_check
              _
            $region54: #{geniepath_conv.1} parent=51 // pred_check_branch
              %410 = sbr.rel (0) target = $region56
            $region55: #{geniepath_conv.1} parent=51 // pred_region
              // Predicated region
              $region68: #{geniepath_conv.1} parent=55 // pred_check
                _
              $region69: #{geniepath_conv.1} parent=55 // pred_check_branch
                %431 = sbr.rel (0) target = $region71
              $region70: #{geniepath_conv.1} parent=55 // pred_region
                loop: start=0, step=1, limit=1
                $region72: #{geniepath_conv.1} parent=70 // loop_pre_header
                  _
                $region73: #{geniepath_conv.1} parent=70 // loop_header
                  %s433 = sphi 0, %s437
                  %p434 = scmp.ge.s32.totalorder %s433, 1
                  %s438 = sphi %s406, %s406
                  %s439 = sphi %s401, %s401
                $region74: #{geniepath_conv.1} parent=70 // loop_header_branch
                  %436 = sbr.rel (%p434) target = $region78
                $region75: #{geniepath_conv.1} parent=70 // loop_body
                  %v440 = vld [vmem:[%s438] sm:$0xff]
                  %441 = vst [vmem:[%s439] sm:$0xff] %v440
                  %v442 = vld [vmem:[%s438 + $0x18] sm:$0xff]
                  %443 = vst [vmem:[%s439 + $0x8] sm:$0xff] %v442
                  %v444 = vld [vmem:[%s438 + $0x30] sm:$0xff]
                  %445 = vst [vmem:[%s439 + $0x10] sm:$0xff] %v444
                  %v446 = vld [vmem:[%s438 + $0x48] sm:$0xff]
                  %447 = vst [vmem:[%s439 + $0x18] sm:$0xff] %v446
                $region76: #{geniepath_conv.1} parent=70 // loop_footer
                  %s437 = sadd.s32 1, %s433
                $region77: #{geniepath_conv.1} parent=70 // loop_footer_branch
                  %432 = sbr.rel target = $region73
                $region78: #{geniepath_conv.1} parent=70 // loop_exit
                  _
              $region71: #{geniepath_conv.1} parent=55 // pred_fallthru
                _
              // Predicated region
              $region79: #{geniepath_conv.1} parent=55 // pred_check
                _
              $region80: #{geniepath_conv.1} parent=55 // pred_check_branch
                %449 = sbr.rel target = $region82
              $region81: #{geniepath_conv.1} parent=55 // pred_region
                _
              $region82: #{geniepath_conv.1} parent=55 // pred_fallthru
                _
            $region56: #{geniepath_conv.1} parent=51 // pred_fallthru
              _
            // Predicated region
            $region57: #{geniepath_conv.1} parent=51 // pred_check
              _
            $region58: #{geniepath_conv.1} parent=51 // pred_check_branch
              %412 = sbr.rel target = $region60
            $region59: #{geniepath_conv.1} parent=51 // pred_region
              loop: start=0, step=1, limit=1
              $region61: #{geniepath_conv.1} parent=59 // loop_pre_header
                _
              $region62: #{geniepath_conv.1} parent=59 // loop_header
                %s415 = sphi 0, %s419
                %p416 = scmp.ge.s32.totalorder %s415, 1
                %s420 = sphi %s406, %s406
                %s421 = sphi %s401, %s401
              $region63: #{geniepath_conv.1} parent=59 // loop_header_branch
                %418 = sbr.rel (%p416) target = $region67
              $region64: #{geniepath_conv.1} parent=59 // loop_body
                %v422 = vld [vmem:[%s420] sm:$0xff]
                %423 = vst [vmem:[%s421] sm:$0xff] %v422
                %v424 = vld [vmem:[%s420 + $0x18] sm:$0xff]
                %425 = vst [vmem:[%s421 + $0x8] sm:$0xff] %v424
                %v426 = vld [vmem:[%s420 + $0x30] sm:$0xff]
                %427 = vst [vmem:[%s421 + $0x10] sm:$0xff] %v426
                %v428 = vld [vmem:[%s420 + $0x48] sm:$0xff]
                %429 = vst [vmem:[%s421 + $0x18] sm:$0xff] %v428
              $region65: #{geniepath_conv.1} parent=59 // loop_footer
                %s419 = sadd.s32 1, %s415
              $region66: #{geniepath_conv.1} parent=59 // loop_footer_branch
                %414 = sbr.rel target = $region62
              $region67: #{geniepath_conv.1} parent=59 // loop_exit
                _
            $region60: #{geniepath_conv.1} parent=51 // pred_fallthru
              _
          $region52: #{geniepath_conv.1} parent=47 // pred_fallthru
            _
          %450 = vnop
        $region48: #{geniepath_conv.1} parent=35 // pred_fallthru
          _
        // Predicated region
        $region83: #{geniepath_conv.1} parent=35 // pred_check
          %p451 = pneg %p131
        $region84: #{geniepath_conv.1} parent=35 // pred_check_branch
          %453 = sbr.rel (%p451) target = $region86
        $region85: #{geniepath_conv.1} parent=35 // pred_region
          %s454 = smul.u32 16, %s27
          %p455 = scmp.lt.s32.totalorder %s454, 47
          %s456 = scalar_select %p455, %s454, 47
          %s457 = smul.addr %s456, 4
          %s458 = scalar_lea.vmem %s3, %s457
          %s459 = smul.u32 16, %s27
        $region86: #{geniepath_conv.1} parent=35 // pred_fallthru
          _
        // Predicated region
        $region87: #{geniepath_conv.1} parent=35 // pred_check
          %p460 = pneg %p199
        $region88: #{geniepath_conv.1} parent=35 // pred_check_branch
          %462 = sbr.rel (%p460) target = $region90
        $region89: #{geniepath_conv.1} parent=35 // pred_region
          %s463 = smul.u32 16, %s26
          %p464 = scmp.lt.s32.totalorder %s463, 47
          %s465 = scalar_select %p464, %s463, 47
          %s466 = smul.addr %s465, 8
          %s467 = scalar_lea.vmem %s6, %s466
          %s468 = smul.u32 16, %s26
        $region90: #{geniepath_conv.1} parent=35 // pred_fallthru
          _
        // Predicated region
        $region91: #{geniepath_conv.1} parent=35 // pred_check
          %p469 = pneg %p225
        $region92: #{geniepath_conv.1} parent=35 // pred_check_branch
          %471 = sbr.rel (%p469) target = $region94
        $region93: #{geniepath_conv.1} parent=35 // pred_region
          %s472 = smul.u32 16, %s26
          %p473 = scmp.lt.s32.totalorder %s472, 47
          %s474 = scalar_select %p473, %s472, 47
          %s475 = smul.addr %s474, 8
          %s476 = scalar_lea.vmem %s7, %s475
          %s477 = smul.u32 16, %s26
        $region94: #{geniepath_conv.1} parent=35 // pred_fallthru
          _
      $region36: #{geniepath_conv.1} parent=5 // pred_fallthru
        _
      %p478 = scmp.le.s32.totalorder 1, %s19
      %p479 = scmp.lt.s32.totalorder %s19, 10
      %p480 = pnand %p478, %p479
      %p481 = pneg %p480
      // Predicated region
      $region95: #{geniepath_conv.1} parent=5 // pred_check
        _
      $region96: #{geniepath_conv.1} parent=5 // pred_check_branch
        %483 = sbr.rel (%p480) target = $region98
      $region97: #{geniepath_conv.1} parent=5 // pred_region
        %s484 = ssub.s32 %s19, 1
        %s485 = sand.u32 %s98, 1
        %s486 = sand.u32 %s98, 1
        %s487 = smul.addr %s486, 32
        %s488 = scalar_lea.vmem [#allocation5], %s487
        // Predicated region
        $region99: #{geniepath_conv.1} parent=97 // pred_check
          %p489 = pneg %p111
        $region100: #{geniepath_conv.1} parent=97 // pred_check_branch
          %491 = sbr.rel (%p489) target = $region102
        $region101: #{geniepath_conv.1} parent=97 // pred_region
          _
        $region102: #{geniepath_conv.1} parent=97 // pred_fallthru
          _
        %s492 = smul.u32 16, %s28
        %p493 = scmp.lt.s32.totalorder %s492, 47
        %s494 = scalar_select %p493, %s492, 47
        %s495 = smul.addr %s494, 8
        %s496 = scalar_lea.vmem %s0, %s495
        %p497 = pneg %p57
        %p498 = pneg %p54
        %p499 = scmp.lt.s32.totalorder %s29, 2
        %s500 = scalar_select %p499, %s29, 2
        %s501 = scalar_lea.vmem %s1, %s500
        %p502 = pneg %p83
        %p503 = pneg %p80
        %s504 = sand.u32 %s98, 1
        %s505 = sand.u32 %s98, 1
        %s506 = smul.addr %s505, 32
        %s507 = scalar_lea.vmem [#allocation5], %s506
        %p508 = pneg %p111
        %p509 = pneg %p108
        %s510 = smul.u32 16, %s29
        %p511 = scmp.lt.s32.totalorder %s510, 47
        %s512 = scalar_select %p511, %s510, 47
        %s513 = smul.addr %s512, 4
        %s514 = scalar_lea.vmem %s3, %s513
        %p515 = pneg %p137
        %p516 = pneg %p134
        %p517 = pneg %p158
        %p518 = pneg %p155
        %p519 = pneg %p179
        %p520 = pneg %p176
        %s521 = smul.u32 16, %s28
        %p522 = scmp.lt.s32.totalorder %s521, 47
        %s523 = scalar_select %p522, %s521, 47
        %s524 = smul.addr %s523, 8
        %s525 = scalar_lea.vmem %s6, %s524
        %p526 = pneg %p205
        %p527 = pneg %p202
        %s528 = smul.u32 16, %s28
        %p529 = scmp.lt.s32.totalorder %s528, 47
        %s530 = scalar_select %p529, %s528, 47
        %s531 = smul.addr %s530, 8
        %s532 = scalar_lea.vmem %s7, %s531
        %p533 = pneg %p231
        %p534 = pneg %p228
        %p535 = pneg %p252
        %p536 = pneg %p249
        %p537 = pneg %p273
        %p538 = pneg %p270
        %p539 = pneg %p294
        %p540 = pneg %p291
        %p541 = pneg %p320
        %p542 = pneg %p317
        %s543 = smul.u32 16, %s28
        %p544 = scmp.lt.s32.totalorder %s543, 47
        %s545 = scalar_select %p544, %s543, 47
        %s546 = smul.addr %s545, 8
        %s547 = scalar_lea.vmem %s11, %s546
        %p548 = pneg %p346
        %p549 = pneg %p343
        %s550 = smul.u32 16, %s28
        %p551 = scmp.lt.s32.totalorder %s550, 47
        %s552 = scalar_select %p551, %s550, 47
        %s553 = smul.addr %s552, 8
        %s554 = scalar_lea.vmem %s12, %s553
        %s555 = smul.u32 16, %s28
        %p556 = scmp.lt.s32.totalorder %s555, 47
        %s557 = scalar_select %p556, %s555, 47
        %s558 = smul.addr %s557, 8
        %s559 = scalar_lea.vmem %s0, %s558
        %s560 = smul.u32 16, %s28
        %p561 = scmp.lt.s32.totalorder %s29, 2
        %s562 = scalar_select %p561, %s29, 2
        %s563 = scalar_lea.vmem %s1, %s562
        %s564 = smul.u32 4, %s28
        %s565 = smul.u32 16, %s29
        %p566 = scmp.lt.s32.totalorder %s565, 47
        %s567 = scalar_select %p566, %s565, 47
        %s568 = smul.addr %s567, 4
        %s569 = scalar_lea.vmem %s3, %s568
        %s570 = smul.u32 16, %s29
        %s571 = smul.u32 16, %s28
        %p572 = scmp.lt.s32.totalorder %s571, 47
        %s573 = scalar_select %p572, %s571, 47
        %s574 = smul.addr %s573, 8
        %s575 = scalar_lea.vmem %s6, %s574
        %s576 = smul.u32 16, %s28
        %s577 = smul.u32 16, %s28
        %p578 = scmp.lt.s32.totalorder %s577, 47
        %s579 = scalar_select %p578, %s577, 47
        %s580 = smul.addr %s579, 8
        %s581 = scalar_lea.vmem %s7, %s580
        %s582 = smul.u32 16, %s28
        %s583 = smul.u32 16, %s28
        %p584 = scmp.lt.s32.totalorder %s583, 47
        %s585 = scalar_select %p584, %s583, 47
        %s586 = smul.addr %s585, 8
        %s587 = scalar_lea.vmem %s11, %s586
        %s588 = smul.u32 16, %s28
        %s589 = smul.u32 16, %s28
        %p590 = scmp.lt.s32.totalorder %s589, 47
        %s591 = scalar_select %p590, %s589, 47
        %s592 = smul.addr %s591, 8
        %s593 = scalar_lea.vmem %s12, %s592
        %s594 = smul.u32 16, %s28
        %p596 = scmp.eq.s32.totalorder %s29, 0
        // Predicated region
        $region103: #{geniepath_conv.1} parent=97 // pred_check
          %p597 = pneg %p596
        $region104: #{geniepath_conv.1} parent=97 // pred_check_branch
          %599 = sbr.rel (%p597) target = $region106
        $region105: #{geniepath_conv.1} parent=97 // pred_region
          %vm600 = vcmask 7168
          %601 = vst.msk [vmem:[#allocation2] sm:$0xff] %vm600, -1e+30
          %602 = vst.msk [vmem:[#allocation2 + $0x8] sm:$0xff] %vm600, -1e+30
          %603 = vst.msk [vmem:[#allocation2 + $0x10] sm:$0xff] %vm600, -1e+30
          %604 = vst.msk [vmem:[#allocation2 + $0x18] sm:$0xff] %vm600, -1e+30
          %605 = vst.msk [vmem:[#allocation2 + $0x20] sm:$0xff] %vm600, -1e+30
          %606 = vst.msk [vmem:[#allocation2 + $0x28] sm:$0xff] %vm600, -1e+30
          %607 = vst.msk [vmem:[#allocation2 + $0x30] sm:$0xff] %vm600, -1e+30
          %608 = vst.msk [vmem:[#allocation2 + $0x38] sm:$0xff] %vm600, -1e+30
          %609 = vst.msk [vmem:[#allocation2 + $0x40] sm:$0xff] %vm600, -1e+30
          %610 = vst.msk [vmem:[#allocation2 + $0x48] sm:$0xff] %vm600, -1e+30
          %611 = vst.msk [vmem:[#allocation2 + $0x50] sm:$0xff] %vm600, -1e+30
          %612 = vst.msk [vmem:[#allocation2 + $0x58] sm:$0xff] %vm600, -1e+30
          %613 = vst.msk [vmem:[#allocation2 + $0x60] sm:$0xff] %vm600, -1e+30
          %614 = vst.msk [vmem:[#allocation2 + $0x68] sm:$0xff] %vm600, -1e+30
          %615 = vst.msk [vmem:[#allocation2 + $0x70] sm:$0xff] %vm600, -1e+30
          %616 = vst.msk [vmem:[#allocation2 + $0x78] sm:$0xff] %vm600, -1e+30
          %617 = vst.msk [vmem:[#allocation3] sm:$0xff] %vm600, 0.0
          %618 = vst.msk [vmem:[#allocation3 + $0x8] sm:$0xff] %vm600, 0.0
          %619 = vst.msk [vmem:[#allocation3 + $0x10] sm:$0xff] %vm600, 0.0
          %620 = vst.msk [vmem:[#allocation3 + $0x18] sm:$0xff] %vm600, 0.0
          %621 = vst.msk [vmem:[#allocation3 + $0x20] sm:$0xff] %vm600, 0.0
          %622 = vst.msk [vmem:[#allocation3 + $0x28] sm:$0xff] %vm600, 0.0
          %623 = vst.msk [vmem:[#allocation3 + $0x30] sm:$0xff] %vm600, 0.0
          %624 = vst.msk [vmem:[#allocation3 + $0x38] sm:$0xff] %vm600, 0.0
          %625 = vst.msk [vmem:[#allocation3 + $0x40] sm:$0xff] %vm600, 0.0
          %626 = vst.msk [vmem:[#allocation3 + $0x48] sm:$0xff] %vm600, 0.0
          %627 = vst.msk [vmem:[#allocation3 + $0x50] sm:$0xff] %vm600, 0.0
          %628 = vst.msk [vmem:[#allocation3 + $0x58] sm:$0xff] %vm600, 0.0
          %629 = vst.msk [vmem:[#allocation3 + $0x60] sm:$0xff] %vm600, 0.0
          %630 = vst.msk [vmem:[#allocation3 + $0x68] sm:$0xff] %vm600, 0.0
          %631 = vst.msk [vmem:[#allocation3 + $0x70] sm:$0xff] %vm600, 0.0
          %632 = vst.msk [vmem:[#allocation3 + $0x78] sm:$0xff] %vm600, 0.0
          %633 = vst [vmem:[#allocation4] sm:$0xff] 0.0
          %634 = vst [vmem:[#allocation4 + $0x8] sm:$0xff] 0.0
          %635 = vst [vmem:[#allocation4 + $0x10] sm:$0xff] 0.0
          %636 = vst [vmem:[#allocation4 + $0x18] sm:$0xff] 0.0
          %637 = vst [vmem:[#allocation4 + $0x20] sm:$0xff] 0.0
          %638 = vst [vmem:[#allocation4 + $0x28] sm:$0xff] 0.0
          %639 = vst [vmem:[#allocation4 + $0x30] sm:$0xff] 0.0
          %640 = vst [vmem:[#allocation4 + $0x38] sm:$0xff] 0.0
          %641 = vst [vmem:[#allocation4 + $0x40] sm:$0xff] 0.0
          %642 = vst [vmem:[#allocation4 + $0x48] sm:$0xff] 0.0
          %643 = vst [vmem:[#allocation4 + $0x50] sm:$0xff] 0.0
          %644 = vst [vmem:[#allocation4 + $0x58] sm:$0xff] 0.0
          %645 = vst [vmem:[#allocation4 + $0x60] sm:$0xff] 0.0
          %646 = vst [vmem:[#allocation4 + $0x68] sm:$0xff] 0.0
          %647 = vst [vmem:[#allocation4 + $0x70] sm:$0xff] 0.0
          %648 = vst [vmem:[#allocation4 + $0x78] sm:$0xff] 0.0
        $region106: #{geniepath_conv.1} parent=97 // pred_fallthru
          _
        %v649 = vld [vmem:[%s569] sm:$0xf]
        %v650 = vld [vmem:[%s569 + $0x4] sm:$0xf]
        %v651 = vld [vmem:[%s569 + $0x8] sm:$0xf]
        %v652 = vld [vmem:[%s569 + $0xc] sm:$0xf]
        %v653 = vld [vmem:[%s569 + $0x10] sm:$0xf]
        %v654 = vld [vmem:[%s569 + $0x14] sm:$0xf]
        %v655 = vld [vmem:[%s569 + $0x18] sm:$0xf]
        %v656 = vld [vmem:[%s569 + $0x1c] sm:$0xf]
        %v657 = vld [vmem:[%s569 + $0x20] sm:$0xf]
        %v658 = vld [vmem:[%s569 + $0x24] sm:$0xf]
        %v659 = vld [vmem:[%s569 + $0x28] sm:$0xf]
        %v660 = vld [vmem:[%s569 + $0x2c] sm:$0xf]
        %v661 = vld [vmem:[%s569 + $0x30] sm:$0xf]
        %v662 = vld [vmem:[%s569 + $0x34] sm:$0xf]
        %v663 = vld [vmem:[%s569 + $0x38] sm:$0xf]
        %v664 = vld [vmem:[%s569 + $0x3c] sm:$0xf]
        %v665 = vld [vmem:[%s4] sm:$0xf]
        %v682 = vunpack.c.l.b16 %v649
        %v683 = vunpack.c.l.b16 %v650
        %v684 = vunpack.c.l.b16 %v651
        %v685 = vunpack.c.l.b16 %v652
        %v686 = vunpack.c.l.b16 %v653
        %v687 = vunpack.c.l.b16 %v654
        %v688 = vunpack.c.l.b16 %v655
        %v689 = vunpack.c.l.b16 %v656
        %v690 = vunpack.c.l.b16 %v657
        %v691 = vunpack.c.l.b16 %v658
        %v692 = vunpack.c.l.b16 %v659
        %v693 = vunpack.c.l.b16 %v660
        %v694 = vunpack.c.l.b16 %v661
        %v695 = vunpack.c.l.b16 %v662
        %v696 = vunpack.c.l.b16 %v663
        %v697 = vunpack.c.l.b16 %v664
        %v698 = vpack.c.b16 %v683, %v682
        %v699 = vpack.c.b16 %v685, %v684
        %v700 = vpack.c.b16 %v687, %v686
        %v701 = vpack.c.b16 %v689, %v688
        %v702 = vpack.c.b16 %v691, %v690
        %v703 = vpack.c.b16 %v693, %v692
        %v704 = vpack.c.b16 %v695, %v694
        %v705 = vpack.c.b16 %v697, %v696
        %vm706 = vcmask 64512
        %v708 = vsel %vm706, %v698, 0
        %v711 = vsel %vm706, %v699, 0
        %v714 = vsel %vm706, %v700, 0
        %v717 = vsel %vm706, %v701, 0
        %v720 = vsel %vm706, %v702, 0
        %v723 = vsel %vm706, %v703, 0
        %v726 = vsel %vm706, %v704, 0
        %v729 = vsel %vm706, %v705, 0
        %vm731 = vcmask 1043456
        %v733 = vsel %vm731, %v665, 0
        %735 = vmatprep.subr.bf16.mxu0 0
        %736 = vmatpush1.bf16.msra.mxu0 %v733
        %737 = vmatprep.subr.bf16.mxu0 0
        %738 = vmatpush1.bf16.msra.mxu0 0
        %739 = vmatprep.subr.bf16.mxu0 0
        %740 = vmatpush1.bf16.msra.mxu0 0
        %741 = vmatprep.subr.bf16.mxu0 0
        %742 = vmatpush1.bf16.msra.mxu0 0
        %743 = vmatprep.subr.bf16.mxu0 0
        %744 = vmatpush1.bf16.msra.mxu0 0
        %745 = vmatprep.subr.bf16.mxu0 0
        %746 = vmatpush1.bf16.msra.mxu0 0
        %747 = vmatprep.subr.bf16.mxu0 0
        %748 = vmatpush1.bf16.msra.mxu0 0
        %749 = vmatprep.subr.bf16.mxu0 0
        %750 = vmatpush1.bf16.msra.mxu0 0
        %751 = vmatprep.subr.bf16.mxu0 0
        %752 = vmatpush1.bf16.msra.mxu0 0
        %753 = vmatprep.subr.bf16.mxu0 0
        %754 = vmatpush1.bf16.msra.mxu0 0
        %755 = vmatprep.subr.bf16.mxu0 0
        %756 = vmatpush1.bf16.msra.mxu0 0
        %757 = vmatprep.subr.bf16.mxu0 0
        %758 = vmatpush1.bf16.msra.mxu0 0
        %759 = vmatprep.subr.bf16.mxu0 0
        %760 = vmatpush1.bf16.msra.mxu0 0
        %761 = vmatprep.subr.bf16.mxu0 0
        %762 = vmatpush1.bf16.msra.mxu0 0
        %763 = vmatprep.subr.bf16.mxu0 0
        %764 = vmatpush1.bf16.msra.mxu0 0
        %765 = vmatprep.subr.bf16.mxu0 0
        %766 = vmatpush1.bf16.msra.mxu0 0
        %767 = vmatprep.mubr.bf16.mxu0 0
        %768 = vmatmul.mubr.bf16.gmra.mrb[0].mxu0 %v708
        %v769 = vpop.f32.mrb[0].mxu0
        %v770 = vadd.f32 0.0, %v769
        %v771 = vpop.f32.mrb[0].mxu0
        %v772 = vpop.f32.mrb[0].mxu0
        %v773 = vadd.f32 0.0, %v772
        %v774 = vpop.f32.mrb[0].mxu0
        %775 = vmatprep.mubr.bf16.mxu0 0
        %776 = vmatmul.mubr.bf16.gmra.mrb[0].mxu0 %v711
        %v777 = vpop.f32.mrb[0].mxu0
        %v778 = vadd.f32 0.0, %v777
        %v779 = vpop.f32.mrb[0].mxu0
        %v780 = vpop.f32.mrb[0].mxu0
        %v781 = vadd.f32 0.0, %v780
        %v782 = vpop.f32.mrb[0].mxu0
        %783 = vmatprep.mubr.bf16.mxu0 0
        %784 = vmatmul.mubr.bf16.gmra.mrb[0].mxu0 %v714
        %v785 = vpop.f32.mrb[0].mxu0
        %v786 = vadd.f32 0.0, %v785
        %v787 = vpop.f32.mrb[0].mxu0
        %v788 = vpop.f32.mrb[0].mxu0
        %v789 = vadd.f32 0.0, %v788
        %v790 = vpop.f32.mrb[0].mxu0
        %791 = vmatprep.mubr.bf16.mxu0 0
        %792 = vmatmul.mubr.bf16.gmra.mrb[0].mxu0 %v717
        %v793 = vpop.f32.mrb[0].mxu0
        %v794 = vadd.f32 0.0, %v793
        %v795 = vpop.f32.mrb[0].mxu0
        %v796 = vpop.f32.mrb[0].mxu0
        %v797 = vadd.f32 0.0, %v796
        %v798 = vpop.f32.mrb[0].mxu0
        %799 = vmatprep.mubr.bf16.mxu0 0
        %800 = vmatmul.mubr.bf16.gmra.mrb[0].mxu0 %v720
        %v801 = vpop.f32.mrb[0].mxu0
        %v802 = vadd.f32 0.0, %v801
        %v803 = vpop.f32.mrb[0].mxu0
        %v804 = vpop.f32.mrb[0].mxu0
        %v805 = vadd.f32 0.0, %v804
        %v806 = vpop.f32.mrb[0].mxu0
        %807 = vmatprep.mubr.bf16.mxu0 0
        %808 = vmatmul.mubr.bf16.gmra.mrb[0].mxu0 %v723
        %v809 = vpop.f32.mrb[0].mxu0
        %v810 = vadd.f32 0.0, %v809
        %v811 = vpop.f32.mrb[0].mxu0
        %v812 = vpop.f32.mrb[0].mxu0
        %v813 = vadd.f32 0.0, %v812
        %v814 = vpop.f32.mrb[0].mxu0
        %815 = vmatprep.mubr.bf16.mxu0 0
        %816 = vmatmul.mubr.bf16.gmra.mrb[0].mxu0 %v726
        %v817 = vpop.f32.mrb[0].mxu0
        %v818 = vadd.f32 0.0, %v817
        %v819 = vpop.f32.mrb[0].mxu0
        %v820 = vpop.f32.mrb[0].mxu0
        %v821 = vadd.f32 0.0, %v820
        %v822 = vpop.f32.mrb[0].mxu0
        %823 = vmatprep.mubr.bf16.mxu0 0
        %824 = vmatmul.mubr.bf16.gmra.mrb[0].mxu0 %v729
        %v825 = vpop.f32.mrb[0].mxu0
        %v826 = vadd.f32 0.0, %v825
        %v827 = vpop.f32.mrb[0].mxu0
        %v828 = vpop.f32.mrb[0].mxu0
        %v829 = vadd.f32 0.0, %v828
        %v830 = vpop.f32.mrb[0].mxu0
        %831 = vdwg.mxu0
        %v832 = vpack.c.bf16 %v773, %v770
        %v833 = vpack.c.bf16 %v781, %v778
        %v834 = vpack.c.bf16 %v789, %v786
        %v835 = vpack.c.bf16 %v797, %v794
        %v836 = vpack.c.bf16 %v805, %v802
        %v837 = vpack.c.bf16 %v813, %v810
        %v838 = vpack.c.bf16 %v821, %v818
        %v839 = vpack.c.bf16 %v829, %v826
        %v840 = vld [vmem:[%s559] sm:$0xff]
        %v841 = vld [vmem:[%s559 + $0x8] sm:$0xff]
        %v842 = vld [vmem:[%s559 + $0x10] sm:$0xff]
        %v843 = vld [vmem:[%s559 + $0x18] sm:$0xff]
        %v844 = vld [vmem:[%s559 + $0x20] sm:$0xff]
        %v845 = vld [vmem:[%s559 + $0x28] sm:$0xff]
        %v846 = vld [vmem:[%s559 + $0x30] sm:$0xff]
        %v847 = vld [vmem:[%s559 + $0x38] sm:$0xff]
        %v848 = vld [vmem:[%s559 + $0x40] sm:$0xff]
        %v849 = vld [vmem:[%s559 + $0x48] sm:$0xff]
        %v850 = vld [vmem:[%s559 + $0x50] sm:$0xff]
        %v851 = vld [vmem:[%s559 + $0x58] sm:$0xff]
        %v852 = vld [vmem:[%s559 + $0x60] sm:$0xff]
        %v853 = vld [vmem:[%s559 + $0x68] sm:$0xff]
        %v854 = vld [vmem:[%s559 + $0x70] sm:$0xff]
        %v855 = vld [vmem:[%s559 + $0x78] sm:$0xff]
        %v856 = vld [vmem:[%s563] sm:$0x1]
        %858 = vset.pattern.permute.xlu0 0
        %859 = vperm.xlu0 %858, %v840
        %v860 = vpop.permute.xlu0 %859
        %863 = vset.pattern.permute.xlu0 0
        %864 = vperm.xlu0 %863, %v841
        %v865 = vpop.permute.xlu0 %864
        %868 = vset.pattern.permute.xlu0 0
        %869 = vperm.xlu0 %868, %v842
        %v870 = vpop.permute.xlu0 %869
        %873 = vset.pattern.permute.xlu0 0
        %874 = vperm.xlu0 %873, %v843
        %v875 = vpop.permute.xlu0 %874
        %878 = vset.pattern.permute.xlu0 0
        %879 = vperm.xlu0 %878, %v844
        %v880 = vpop.permute.xlu0 %879
        %883 = vset.pattern.permute.xlu0 0
        %884 = vperm.xlu0 %883, %v845
        %v885 = vpop.permute.xlu0 %884
        %888 = vset.pattern.permute.xlu0 0
        %889 = vperm.xlu0 %888, %v846
        %v890 = vpop.permute.xlu0 %889
        %893 = vset.pattern.permute.xlu0 0
        %894 = vperm.xlu0 %893, %v847
        %v895 = vpop.permute.xlu0 %894
        %898 = vset.pattern.permute.xlu0 0
        %899 = vperm.xlu0 %898, %v848
        %v900 = vpop.permute.xlu0 %899
        %903 = vset.pattern.permute.xlu0 0
        %904 = vperm.xlu0 %903, %v849
        %v905 = vpop.permute.xlu0 %904
        %908 = vset.pattern.permute.xlu0 0
        %909 = vperm.xlu0 %908, %v850
        %v910 = vpop.permute.xlu0 %909
        %913 = vset.pattern.permute.xlu0 0
        %914 = vperm.xlu0 %913, %v851
        %v915 = vpop.permute.xlu0 %914
        %918 = vset.pattern.permute.xlu0 0
        %919 = vperm.xlu0 %918, %v852
        %v920 = vpop.permute.xlu0 %919
        %923 = vset.pattern.permute.xlu0 0
        %924 = vperm.xlu0 %923, %v853
        %v925 = vpop.permute.xlu0 %924
        %928 = vset.pattern.permute.xlu0 0
        %929 = vperm.xlu0 %928, %v854
        %v930 = vpop.permute.xlu0 %929
        %933 = vset.pattern.permute.xlu0 0
        %934 = vperm.xlu0 %933, %v855
        %v935 = vpop.permute.xlu0 %934
        %v938 = vlaneseq
        %v939 = vshrl.u32 %v938, 7
        %v940 = vsub.s32 0, %v939
        %v941 = vrot.slane %v856, %v940
        %v943 = vadd.f32 %v860, %v941
        %v944 = vadd.f32 %v865, %v941
        %v945 = vadd.f32 %v870, %v941
        %v946 = vadd.f32 %v875, %v941
        %v947 = vadd.f32 %v880, %v941
        %v948 = vadd.f32 %v885, %v941
        %v949 = vadd.f32 %v890, %v941
        %v950 = vadd.f32 %v895, %v941
        %v951 = vadd.f32 %v900, %v941
        %v952 = vadd.f32 %v905, %v941
        %v953 = vadd.f32 %v910, %v941
        %v954 = vadd.f32 %v915, %v941
        %v955 = vadd.f32 %v920, %v941
        %v956 = vadd.f32 %v925, %v941
        %v957 = vadd.f32 %v930, %v941
        %v958 = vadd.f32 %v935, %v941
        %v959 = vmul.f32 %v943, 0.2
        %v960 = vmul.f32 %v944, 0.2
        %v961 = vmul.f32 %v945, 0.2
        %v962 = vmul.f32 %v946, 0.2
        %v963 = vmul.f32 %v947, 0.2
        %v964 = vmul.f32 %v948, 0.2
        %v965 = vmul.f32 %v949, 0.2
        %v966 = vmul.f32 %v950, 0.2
        %v967 = vmul.f32 %v951, 0.2
        %v968 = vmul.f32 %v952, 0.2
        %v969 = vmul.f32 %v953, 0.2
        %v970 = vmul.f32 %v954, 0.2
        %v971 = vmul.f32 %v955, 0.2
        %v972 = vmul.f32 %v956, 0.2
        %v973 = vmul.f32 %v957, 0.2
        %v974 = vmul.f32 %v958, 0.2
        %v975 = vmax.f32 %v943, %v959
        %v976 = vmax.f32 %v944, %v960
        %v977 = vmax.f32 %v945, %v961
        %v978 = vmax.f32 %v946, %v962
        %v979 = vmax.f32 %v947, %v963
        %v980 = vmax.f32 %v948, %v964
        %v981 = vmax.f32 %v949, %v965
        %v982 = vmax.f32 %v950, %v966
        %v983 = vmax.f32 %v951, %v967
        %v984 = vmax.f32 %v952, %v968
        %v985 = vmax.f32 %v953, %v969
        %v986 = vmax.f32 %v954, %v970
        %v987 = vmax.f32 %v955, %v971
        %v988 = vmax.f32 %v956, %v972
        %v989 = vmax.f32 %v957, %v973
        %v990 = vmax.f32 %v958, %v974
        %v991 = vld [vmem:[%s488] sm:$0xff]
        %v992 = vld [vmem:[%s488 + $0x8] sm:$0xff]
        %v993 = vld [vmem:[%s488 + $0x10] sm:$0xff]
        %v994 = vld [vmem:[%s488 + $0x18] sm:$0xff]
        %v995 = vunpack.c.0.s8 %v991
        %v996 = vunpack.c.1.s8 %v991
        %v997 = vunpack.c.2.s8 %v991
        %v998 = vunpack.c.3.s8 %v991
        %v999 = vunpack.c.0.s8 %v992
        %v1000 = vunpack.c.1.s8 %v992
        %v1001 = vunpack.c.2.s8 %v992
        %v1002 = vunpack.c.3.s8 %v992
        %v1003 = vunpack.c.0.s8 %v993
        %v1004 = vunpack.c.1.s8 %v993
        %v1005 = vunpack.c.2.s8 %v993
        %v1006 = vunpack.c.3.s8 %v993
        %v1007 = vunpack.c.0.s8 %v994
        %v1008 = vunpack.c.1.s8 %v994
        %v1009 = vunpack.c.2.s8 %v994
        %v1010 = vunpack.c.3.s8 %v994
        %v1011 = vcvt.s32.f32 %v995
        %v1012 = vcvt.s32.f32 %v996
        %v1013 = vcvt.s32.f32 %v997
        %v1014 = vcvt.s32.f32 %v998
        %v1015 = vcvt.s32.f32 %v999
        %v1016 = vcvt.s32.f32 %v1000
        %v1017 = vcvt.s32.f32 %v1001
        %v1018 = vcvt.s32.f32 %v1002
        %v1019 = vcvt.s32.f32 %v1003
        %v1020 = vcvt.s32.f32 %v1004
        %v1021 = vcvt.s32.f32 %v1005
        %v1022 = vcvt.s32.f32 %v1006
        %v1023 = vcvt.s32.f32 %v1007
        %v1024 = vcvt.s32.f32 %v1008
        %v1025 = vcvt.s32.f32 %v1009
        %v1026 = vcvt.s32.f32 %v1010
        %vm1027 = vcmp.gt.f32.partialorder %v1011, 0.0
        %vm1028 = vcmp.gt.f32.partialorder %v1012, 0.0
        %vm1029 = vcmp.gt.f32.partialorder %v1013, 0.0
        %vm1030 = vcmp.gt.f32.partialorder %v1014, 0.0
        %vm1031 = vcmp.gt.f32.partialorder %v1015, 0.0
        %vm1032 = vcmp.gt.f32.partialorder %v1016, 0.0
        %vm1033 = vcmp.gt.f32.partialorder %v1017, 0.0
        %vm1034 = vcmp.gt.f32.partialorder %v1018, 0.0
        %vm1035 = vcmp.gt.f32.partialorder %v1019, 0.0
        %vm1036 = vcmp.gt.f32.partialorder %v1020, 0.0
        %vm1037 = vcmp.gt.f32.partialorder %v1021, 0.0
        %vm1038 = vcmp.gt.f32.partialorder %v1022, 0.0
        %vm1039 = vcmp.gt.f32.partialorder %v1023, 0.0
        %vm1040 = vcmp.gt.f32.partialorder %v1024, 0.0
        %vm1041 = vcmp.gt.f32.partialorder %v1025, 0.0
        %vm1042 = vcmp.gt.f32.partialorder %v1026, 0.0
        %v1043 = vsel %vm1027, %v975, -1e+30
        %v1044 = vsel %vm1028, %v976, -1e+30
        %v1045 = vsel %vm1029, %v977, -1e+30
        %v1046 = vsel %vm1030, %v978, -1e+30
        %v1047 = vsel %vm1031, %v979, -1e+30
        %v1048 = vsel %vm1032, %v980, -1e+30
        %v1049 = vsel %vm1033, %v981, -1e+30
        %v1050 = vsel %vm1034, %v982, -1e+30
        %v1051 = vsel %vm1035, %v983, -1e+30
        %v1052 = vsel %vm1036, %v984, -1e+30
        %v1053 = vsel %vm1037, %v985, -1e+30
        %v1054 = vsel %vm1038, %v986, -1e+30
        %v1055 = vsel %vm1039, %v987, -1e+30
        %v1056 = vsel %vm1040, %v988, -1e+30
        %v1057 = vsel %vm1041, %v989, -1e+30
        %v1058 = vsel %vm1042, %v990, -1e+30
        %v1059 = vld [vmem:[#allocation2] sm:$0xff]
        %v1060 = vld [vmem:[#allocation2 + $0x8] sm:$0xff]
        %v1061 = vld [vmem:[#allocation2 + $0x10] sm:$0xff]
        %v1062 = vld [vmem:[#allocation2 + $0x18] sm:$0xff]
        %v1063 = vld [vmem:[#allocation2 + $0x20] sm:$0xff]
        %v1064 = vld [vmem:[#allocation2 + $0x28] sm:$0xff]
        %v1065 = vld [vmem:[#allocation2 + $0x30] sm:$0xff]
        %v1066 = vld [vmem:[#allocation2 + $0x38] sm:$0xff]
        %v1067 = vld [vmem:[#allocation2 + $0x40] sm:$0xff]
        %v1068 = vld [vmem:[#allocation2 + $0x48] sm:$0xff]
        %v1069 = vld [vmem:[#allocation2 + $0x50] sm:$0xff]
        %v1070 = vld [vmem:[#allocation2 + $0x58] sm:$0xff]
        %v1071 = vld [vmem:[#allocation2 + $0x60] sm:$0xff]
        %v1072 = vld [vmem:[#allocation2 + $0x68] sm:$0xff]
        %v1073 = vld [vmem:[#allocation2 + $0x70] sm:$0xff]
        %v1074 = vld [vmem:[#allocation2 + $0x78] sm:$0xff]
        %1075 = vmax.xlane.f32.xlu0 %v1043
        %v1076 = vpop.xlane.xlu0 %1075
        %1077 = vmax.xlane.f32.xlu0 %v1044
        %v1078 = vpop.xlane.xlu0 %1077
        %1079 = vmax.xlane.f32.xlu0 %v1045
        %v1080 = vpop.xlane.xlu0 %1079
        %1081 = vmax.xlane.f32.xlu0 %v1046
        %v1082 = vpop.xlane.xlu0 %1081
        %1083 = vmax.xlane.f32.xlu0 %v1047
        %v1084 = vpop.xlane.xlu0 %1083
        %1085 = vmax.xlane.f32.xlu0 %v1048
        %v1086 = vpop.xlane.xlu0 %1085
        %1087 = vmax.xlane.f32.xlu0 %v1049
        %v1088 = vpop.xlane.xlu0 %1087
        %1089 = vmax.xlane.f32.xlu0 %v1050
        %v1090 = vpop.xlane.xlu0 %1089
        %1091 = vmax.xlane.f32.xlu0 %v1051
        %v1092 = vpop.xlane.xlu0 %1091
        %1093 = vmax.xlane.f32.xlu0 %v1052
        %v1094 = vpop.xlane.xlu0 %1093
        %1095 = vmax.xlane.f32.xlu0 %v1053
        %v1096 = vpop.xlane.xlu0 %1095
        %1097 = vmax.xlane.f32.xlu0 %v1054
        %v1098 = vpop.xlane.xlu0 %1097
        %1099 = vmax.xlane.f32.xlu0 %v1055
        %v1100 = vpop.xlane.xlu0 %1099
        %1101 = vmax.xlane.f32.xlu0 %v1056
        %v1102 = vpop.xlane.xlu0 %1101
        %1103 = vmax.xlane.f32.xlu0 %v1057
        %v1104 = vpop.xlane.xlu0 %1103
        %1105 = vmax.xlane.f32.xlu0 %v1058
        %v1106 = vpop.xlane.xlu0 %1105
        %v1107 = vmax.f32 %v1059, %v1076
        %v1108 = vmax.f32 %v1060, %v1078
        %v1109 = vmax.f32 %v1061, %v1080
        %v1110 = vmax.f32 %v1062, %v1082
        %v1111 = vmax.f32 %v1063, %v1084
        %v1112 = vmax.f32 %v1064, %v1086
        %v1113 = vmax.f32 %v1065, %v1088
        %v1114 = vmax.f32 %v1066, %v1090
        %v1115 = vmax.f32 %v1067, %v1092
        %v1116 = vmax.f32 %v1068, %v1094
        %v1117 = vmax.f32 %v1069, %v1096
        %v1118 = vmax.f32 %v1070, %v1098
        %v1119 = vmax.f32 %v1071, %v1100
        %v1120 = vmax.f32 %v1072, %v1102
        %v1121 = vmax.f32 %v1073, %v1104
        %v1122 = vmax.f32 %v1074, %v1106
        %v1123 = vsub.f32 %v1059, %v1107
        %v1124 = vsub.f32 %v1060, %v1108
        %v1125 = vsub.f32 %v1061, %v1109
        %v1126 = vsub.f32 %v1062, %v1110
        %v1127 = vsub.f32 %v1063, %v1111
        %v1128 = vsub.f32 %v1064, %v1112
        %v1129 = vsub.f32 %v1065, %v1113
        %v1130 = vsub.f32 %v1066, %v1114
        %v1131 = vsub.f32 %v1067, %v1115
        %v1132 = vsub.f32 %v1068, %v1116
        %v1133 = vsub.f32 %v1069, %v1117
        %v1134 = vsub.f32 %v1070, %v1118
        %v1135 = vsub.f32 %v1071, %v1119
        %v1136 = vsub.f32 %v1072, %v1120
        %v1137 = vsub.f32 %v1073, %v1121
        %v1138 = vsub.f32 %v1074, %v1122
        %v1139 = vmul.f32 %v1123, 1.442695
        %v1140 = vpow.pop %v1139
        %v1141 = vmul.f32 %v1124, 1.442695
        %v1142 = vpow.pop %v1141
        %v1143 = vmul.f32 %v1125, 1.442695
        %v1144 = vpow.pop %v1143
        %v1145 = vmul.f32 %v1126, 1.442695
        %v1146 = vpow.pop %v1145
        %v1147 = vmul.f32 %v1127, 1.442695
        %v1148 = vpow.pop %v1147
        %v1149 = vmul.f32 %v1128, 1.442695
        %v1150 = vpow.pop %v1149
        %v1151 = vmul.f32 %v1129, 1.442695
        %v1152 = vpow.pop %v1151
        %v1153 = vmul.f32 %v1130, 1.442695
        %v1154 = vpow.pop %v1153
        %v1155 = vmul.f32 %v1131, 1.442695
        %v1156 = vpow.pop %v1155
        %v1157 = vmul.f32 %v1132, 1.442695
        %v1158 = vpow.pop %v1157
        %v1159 = vmul.f32 %v1133, 1.442695
        %v1160 = vpow.pop %v1159
        %v1161 = vmul.f32 %v1134, 1.442695
        %v1162 = vpow.pop %v1161
        %v1163 = vmul.f32 %v1135, 1.442695
        %v1164 = vpow.pop %v1163
        %v1165 = vmul.f32 %v1136, 1.442695
        %v1166 = vpow.pop %v1165
        %v1167 = vmul.f32 %v1137, 1.442695
        %v1168 = vpow.pop %v1167
        %v1169 = vmul.f32 %v1138, 1.442695
        %v1170 = vpow.pop %v1169
        %1172 = vset.pattern.permute.xlu0 0
        %1173 = vperm.xlu0 %1172, %v1107
        %v1174 = vpop.permute.xlu0 %1173
        %1177 = vset.pattern.permute.xlu0 0
        %1178 = vperm.xlu0 %1177, %v1108
        %v1179 = vpop.permute.xlu0 %1178
        %1182 = vset.pattern.permute.xlu0 0
        %1183 = vperm.xlu0 %1182, %v1109
        %v1184 = vpop.permute.xlu0 %1183
        %1187 = vset.pattern.permute.xlu0 0
        %1188 = vperm.xlu0 %1187, %v1110
        %v1189 = vpop.permute.xlu0 %1188
        %1192 = vset.pattern.permute.xlu0 0
        %1193 = vperm.xlu0 %1192, %v1111
        %v1194 = vpop.permute.xlu0 %1193
        %1197 = vset.pattern.permute.xlu0 0
        %1198 = vperm.xlu0 %1197, %v1112
        %v1199 = vpop.permute.xlu0 %1198
        %1202 = vset.pattern.permute.xlu0 0
        %1203 = vperm.xlu0 %1202, %v1113
        %v1204 = vpop.permute.xlu0 %1203
        %1207 = vset.pattern.permute.xlu0 0
        %1208 = vperm.xlu0 %1207, %v1114
        %v1209 = vpop.permute.xlu0 %1208
        %1212 = vset.pattern.permute.xlu0 0
        %1213 = vperm.xlu0 %1212, %v1115
        %v1214 = vpop.permute.xlu0 %1213
        %1217 = vset.pattern.permute.xlu0 0
        %1218 = vperm.xlu0 %1217, %v1116
        %v1219 = vpop.permute.xlu0 %1218
        %1222 = vset.pattern.permute.xlu0 0
        %1223 = vperm.xlu0 %1222, %v1117
        %v1224 = vpop.permute.xlu0 %1223
        %1227 = vset.pattern.permute.xlu0 0
        %1228 = vperm.xlu0 %1227, %v1118
        %v1229 = vpop.permute.xlu0 %1228
        %1232 = vset.pattern.permute.xlu0 0
        %1233 = vperm.xlu0 %1232, %v1119
        %v1234 = vpop.permute.xlu0 %1233
        %1237 = vset.pattern.permute.xlu0 0
        %1238 = vperm.xlu0 %1237, %v1120
        %v1239 = vpop.permute.xlu0 %1238
        %1242 = vset.pattern.permute.xlu0 0
        %1243 = vperm.xlu0 %1242, %v1121
        %v1244 = vpop.permute.xlu0 %1243
        %1247 = vset.pattern.permute.xlu0 0
        %1248 = vperm.xlu0 %1247, %v1122
        %v1249 = vpop.permute.xlu0 %1248
        %v1251 = vsub.f32 %v1043, %v1174
        %v1252 = vsub.f32 %v1044, %v1179
        %v1253 = vsub.f32 %v1045, %v1184
        %v1254 = vsub.f32 %v1046, %v1189
        %v1255 = vsub.f32 %v1047, %v1194
        %v1256 = vsub.f32 %v1048, %v1199
        %v1257 = vsub.f32 %v1049, %v1204
        %v1258 = vsub.f32 %v1050, %v1209
        %v1259 = vsub.f32 %v1051, %v1214
        %v1260 = vsub.f32 %v1052, %v1219
        %v1261 = vsub.f32 %v1053, %v1224
        %v1262 = vsub.f32 %v1054, %v1229
        %v1263 = vsub.f32 %v1055, %v1234
        %v1264 = vsub.f32 %v1056, %v1239
        %v1265 = vsub.f32 %v1057, %v1244
        %v1266 = vsub.f32 %v1058, %v1249
        %v1267 = vmul.f32 %v1251, 1.442695
        %v1268 = vpow.pop %v1267
        %v1269 = vmul.f32 %v1252, 1.442695
        %v1270 = vpow.pop %v1269
        %v1271 = vmul.f32 %v1253, 1.442695
        %v1272 = vpow.pop %v1271
        %v1273 = vmul.f32 %v1254, 1.442695
        %v1274 = vpow.pop %v1273
        %v1275 = vmul.f32 %v1255, 1.442695
        %v1276 = vpow.pop %v1275
        %v1277 = vmul.f32 %v1256, 1.442695
        %v1278 = vpow.pop %v1277
        %v1279 = vmul.f32 %v1257, 1.442695
        %v1280 = vpow.pop %v1279
        %v1281 = vmul.f32 %v1258, 1.442695
        %v1282 = vpow.pop %v1281
        %v1283 = vmul.f32 %v1259, 1.442695
        %v1284 = vpow.pop %v1283
        %v1285 = vmul.f32 %v1260, 1.442695
        %v1286 = vpow.pop %v1285
        %v1287 = vmul.f32 %v1261, 1.442695
        %v1288 = vpow.pop %v1287
        %v1289 = vmul.f32 %v1262, 1.442695
        %v1290 = vpow.pop %v1289
        %v1291 = vmul.f32 %v1263, 1.442695
        %v1292 = vpow.pop %v1291
        %v1293 = vmul.f32 %v1264, 1.442695
        %v1294 = vpow.pop %v1293
        %v1295 = vmul.f32 %v1265, 1.442695
        %v1296 = vpow.pop %v1295
        %v1297 = vmul.f32 %v1266, 1.442695
        %v1298 = vpow.pop %v1297
        %v1299 = vld [vmem:[#allocation3] sm:$0xff]
        %v1300 = vld [vmem:[#allocation3 + $0x8] sm:$0xff]
        %v1301 = vld [vmem:[#allocation3 + $0x10] sm:$0xff]
        %v1302 = vld [vmem:[#allocation3 + $0x18] sm:$0xff]
        %v1303 = vld [vmem:[#allocation3 + $0x20] sm:$0xff]
        %v1304 = vld [vmem:[#allocation3 + $0x28] sm:$0xff]
        %v1305 = vld [vmem:[#allocation3 + $0x30] sm:$0xff]
        %v1306 = vld [vmem:[#allocation3 + $0x38] sm:$0xff]
        %v1307 = vld [vmem:[#allocation3 + $0x40] sm:$0xff]
        %v1308 = vld [vmem:[#allocation3 + $0x48] sm:$0xff]
        %v1309 = vld [vmem:[#allocation3 + $0x50] sm:$0xff]
        %v1310 = vld [vmem:[#allocation3 + $0x58] sm:$0xff]
        %v1311 = vld [vmem:[#allocation3 + $0x60] sm:$0xff]
        %v1312 = vld [vmem:[#allocation3 + $0x68] sm:$0xff]
        %v1313 = vld [vmem:[#allocation3 + $0x70] sm:$0xff]
        %v1314 = vld [vmem:[#allocation3 + $0x78] sm:$0xff]
        %v1315 = vmul.f32 %v1140, %v1299
        %v1316 = vmul.f32 %v1142, %v1300
        %v1317 = vmul.f32 %v1144, %v1301
        %v1318 = vmul.f32 %v1146, %v1302
        %v1319 = vmul.f32 %v1148, %v1303
        %v1320 = vmul.f32 %v1150, %v1304
        %v1321 = vmul.f32 %v1152, %v1305
        %v1322 = vmul.f32 %v1154, %v1306
        %v1323 = vmul.f32 %v1156, %v1307
        %v1324 = vmul.f32 %v1158, %v1308
        %v1325 = vmul.f32 %v1160, %v1309
        %v1326 = vmul.f32 %v1162, %v1310
        %v1327 = vmul.f32 %v1164, %v1311
        %v1328 = vmul.f32 %v1166, %v1312
        %v1329 = vmul.f32 %v1168, %v1313
        %v1330 = vmul.f32 %v1170, %v1314
        %1331 = vadd.xlane.f32.xlu0 %v1268
        %v1332 = vpop.xlane.xlu0 %1331
        %1333 = vadd.xlane.f32.xlu0 %v1270
        %v1334 = vpop.xlane.xlu0 %1333
        %1335 = vadd.xlane.f32.xlu0 %v1272
        %v1336 = vpop.xlane.xlu0 %1335
        %1337 = vadd.xlane.f32.xlu0 %v1274
        %v1338 = vpop.xlane.xlu0 %1337
        %1339 = vadd.xlane.f32.xlu0 %v1276
        %v1340 = vpop.xlane.xlu0 %1339
        %1341 = vadd.xlane.f32.xlu0 %v1278
        %v1342 = vpop.xlane.xlu0 %1341
        %1343 = vadd.xlane.f32.xlu0 %v1280
        %v1344 = vpop.xlane.xlu0 %1343
        %1345 = vadd.xlane.f32.xlu0 %v1282
        %v1346 = vpop.xlane.xlu0 %1345
        %1347 = vadd.xlane.f32.xlu0 %v1284
        %v1348 = vpop.xlane.xlu0 %1347
        %1349 = vadd.xlane.f32.xlu0 %v1286
        %v1350 = vpop.xlane.xlu0 %1349
        %1351 = vadd.xlane.f32.xlu0 %v1288
        %v1352 = vpop.xlane.xlu0 %1351
        %1353 = vadd.xlane.f32.xlu0 %v1290
        %v1354 = vpop.xlane.xlu0 %1353
        %1355 = vadd.xlane.f32.xlu0 %v1292
        %v1356 = vpop.xlane.xlu0 %1355
        %1357 = vadd.xlane.f32.xlu0 %v1294
        %v1358 = vpop.xlane.xlu0 %1357
        %1359 = vadd.xlane.f32.xlu0 %v1296
        %v1360 = vpop.xlane.xlu0 %1359
        %1361 = vadd.xlane.f32.xlu0 %v1298
        %v1362 = vpop.xlane.xlu0 %1361
        %v1363 = vadd.f32 %v1315, %v1332
        %v1364 = vadd.f32 %v1316, %v1334
        %v1365 = vadd.f32 %v1317, %v1336
        %v1366 = vadd.f32 %v1318, %v1338
        %v1367 = vadd.f32 %v1319, %v1340
        %v1368 = vadd.f32 %v1320, %v1342
        %v1369 = vadd.f32 %v1321, %v1344
        %v1370 = vadd.f32 %v1322, %v1346
        %v1371 = vadd.f32 %v1323, %v1348
        %v1372 = vadd.f32 %v1324, %v1350
        %v1373 = vadd.f32 %v1325, %v1352
        %v1374 = vadd.f32 %v1326, %v1354
        %v1375 = vadd.f32 %v1327, %v1356
        %v1376 = vadd.f32 %v1328, %v1358
        %v1377 = vadd.f32 %v1329, %v1360
        %v1378 = vadd.f32 %v1330, %v1362
        %vm1379 = vcmask 7168
        %1380 = vst.msk [vmem:[#allocation3] sm:$0xff] %vm1379, %v1363
        %1381 = vst.msk [vmem:[#allocation3 + $0x8] sm:$0xff] %vm1379, %v1364
        %1382 = vst.msk [vmem:[#allocation3 + $0x10] sm:$0xff] %vm1379, %v1365
        %1383 = vst.msk [vmem:[#allocation3 + $0x18] sm:$0xff] %vm1379, %v1366
        %1384 = vst.msk [vmem:[#allocation3 + $0x20] sm:$0xff] %vm1379, %v1367
        %1385 = vst.msk [vmem:[#allocation3 + $0x28] sm:$0xff] %vm1379, %v1368
        %1386 = vst.msk [vmem:[#allocation3 + $0x30] sm:$0xff] %vm1379, %v1369
        %1387 = vst.msk [vmem:[#allocation3 + $0x38] sm:$0xff] %vm1379, %v1370
        %1388 = vst.msk [vmem:[#allocation3 + $0x40] sm:$0xff] %vm1379, %v1371
        %1389 = vst.msk [vmem:[#allocation3 + $0x48] sm:$0xff] %vm1379, %v1372
        %1390 = vst.msk [vmem:[#allocation3 + $0x50] sm:$0xff] %vm1379, %v1373
        %1391 = vst.msk [vmem:[#allocation3 + $0x58] sm:$0xff] %vm1379, %v1374
        %1392 = vst.msk [vmem:[#allocation3 + $0x60] sm:$0xff] %vm1379, %v1375
        %1393 = vst.msk [vmem:[#allocation3 + $0x68] sm:$0xff] %vm1379, %v1376
        %1394 = vst.msk [vmem:[#allocation3 + $0x70] sm:$0xff] %vm1379, %v1377
        %1395 = vst.msk [vmem:[#allocation3 + $0x78] sm:$0xff] %vm1379, %v1378
        %v1396 = vld [vmem:[#allocation4] sm:$0xff]
        %v1397 = vld [vmem:[#allocation4 + $0x8] sm:$0xff]
        %v1398 = vld [vmem:[#allocation4 + $0x10] sm:$0xff]
        %v1399 = vld [vmem:[#allocation4 + $0x18] sm:$0xff]
        %v1400 = vld [vmem:[#allocation4 + $0x20] sm:$0xff]
        %v1401 = vld [vmem:[#allocation4 + $0x28] sm:$0xff]
        %v1402 = vld [vmem:[#allocation4 + $0x30] sm:$0xff]
        %v1403 = vld [vmem:[#allocation4 + $0x38] sm:$0xff]
        %v1404 = vld [vmem:[#allocation4 + $0x40] sm:$0xff]
        %v1405 = vld [vmem:[#allocation4 + $0x48] sm:$0xff]
        %v1406 = vld [vmem:[#allocation4 + $0x50] sm:$0xff]
        %v1407 = vld [vmem:[#allocation4 + $0x58] sm:$0xff]
        %v1408 = vld [vmem:[#allocation4 + $0x60] sm:$0xff]
        %v1409 = vld [vmem:[#allocation4 + $0x68] sm:$0xff]
        %v1410 = vld [vmem:[#allocation4 + $0x70] sm:$0xff]
        %v1411 = vld [vmem:[#allocation4 + $0x78] sm:$0xff]
        %1413 = vset.pattern.permute.xlu0 0
        %1414 = vperm.xlu0 %1413, %v1140
        %v1415 = vpop.permute.xlu0 %1414
        %1418 = vset.pattern.permute.xlu0 0
        %1419 = vperm.xlu0 %1418, %v1142
        %v1420 = vpop.permute.xlu0 %1419
        %1423 = vset.pattern.permute.xlu0 0
        %1424 = vperm.xlu0 %1423, %v1144
        %v1425 = vpop.permute.xlu0 %1424
        %1428 = vset.pattern.permute.xlu0 0
        %1429 = vperm.xlu0 %1428, %v1146
        %v1430 = vpop.permute.xlu0 %1429
        %1433 = vset.pattern.permute.xlu0 0
        %1434 = vperm.xlu0 %1433, %v1148
        %v1435 = vpop.permute.xlu0 %1434
        %1438 = vset.pattern.permute.xlu0 0
        %1439 = vperm.xlu0 %1438, %v1150
        %v1440 = vpop.permute.xlu0 %1439
        %1443 = vset.pattern.permute.xlu0 0
        %1444 = vperm.xlu0 %1443, %v1152
        %v1445 = vpop.permute.xlu0 %1444
        %1448 = vset.pattern.permute.xlu0 0
        %1449 = vperm.xlu0 %1448, %v1154
        %v1450 = vpop.permute.xlu0 %1449
        %1453 = vset.pattern.permute.xlu0 0
        %1454 = vperm.xlu0 %1453, %v1156
        %v1455 = vpop.permute.xlu0 %1454
        %1458 = vset.pattern.permute.xlu0 0
        %1459 = vperm.xlu0 %1458, %v1158
        %v1460 = vpop.permute.xlu0 %1459
        %1463 = vset.pattern.permute.xlu0 0
        %1464 = vperm.xlu0 %1463, %v1160
        %v1465 = vpop.permute.xlu0 %1464
        %1468 = vset.pattern.permute.xlu0 0
        %1469 = vperm.xlu0 %1468, %v1162
        %v1470 = vpop.permute.xlu0 %1469
        %1473 = vset.pattern.permute.xlu0 0
        %1474 = vperm.xlu0 %1473, %v1164
        %v1475 = vpop.permute.xlu0 %1474
        %1478 = vset.pattern.permute.xlu0 0
        %1479 = vperm.xlu0 %1478, %v1166
        %v1480 = vpop.permute.xlu0 %1479
        %1483 = vset.pattern.permute.xlu0 0
        %1484 = vperm.xlu0 %1483, %v1168
        %v1485 = vpop.permute.xlu0 %1484
        %1488 = vset.pattern.permute.xlu0 0
        %1489 = vperm.xlu0 %1488, %v1170
        %v1490 = vpop.permute.xlu0 %1489
        %v1492 = vmul.f32 %v1415, %v1396
        %v1493 = vmul.f32 %v1420, %v1397
        %v1494 = vmul.f32 %v1425, %v1398
        %v1495 = vmul.f32 %v1430, %v1399
        %v1496 = vmul.f32 %v1435, %v1400
        %v1497 = vmul.f32 %v1440, %v1401
        %v1498 = vmul.f32 %v1445, %v1402
        %v1499 = vmul.f32 %v1450, %v1403
        %v1500 = vmul.f32 %v1455, %v1404
        %v1501 = vmul.f32 %v1460, %v1405
        %v1502 = vmul.f32 %v1465, %v1406
        %v1503 = vmul.f32 %v1470, %v1407
        %v1504 = vmul.f32 %v1475, %v1408
        %v1505 = vmul.f32 %v1480, %v1409
        %v1506 = vmul.f32 %v1485, %v1410
        %v1507 = vmul.f32 %v1490, %v1411
        %v1508 = vpack.c.bf16 %v1270, %v1268
        %v1509 = vpack.c.bf16 %v1274, %v1272
        %v1510 = vpack.c.bf16 %v1278, %v1276
        %v1511 = vpack.c.bf16 %v1282, %v1280
        %v1512 = vpack.c.bf16 %v1286, %v1284
        %v1513 = vpack.c.bf16 %v1290, %v1288
        %v1514 = vpack.c.bf16 %v1294, %v1292
        %v1515 = vpack.c.bf16 %v1298, %v1296
        %1516 = vmatprep.subr.bf16.mxu0 0
        %1517 = vmatpush1.bf16.msra.mxu0 %v832
        %1518 = vmatprep.subr.bf16.mxu0 0
        %1519 = vmatpush1.bf16.msra.mxu0 %v833
        %1520 = vmatprep.subr.bf16.mxu0 0
        %1521 = vmatpush1.bf16.msra.mxu0 %v834
        %1522 = vmatprep.subr.bf16.mxu0 0
        %1523 = vmatpush1.bf16.msra.mxu0 %v835
        %1524 = vmatprep.subr.bf16.mxu0 0
        %1525 = vmatpush1.bf16.msra.mxu0 %v836
        %1526 = vmatprep.subr.bf16.mxu0 0
        %1527 = vmatpush1.bf16.msra.mxu0 %v837
        %1528 = vmatprep.subr.bf16.mxu0 0
        %1529 = vmatpush1.bf16.msra.mxu0 %v838
        %1530 = vmatprep.subr.bf16.mxu0 0
        %1531 = vmatpush1.bf16.msra.mxu0 %v839
        %1532 = vmatprep.subr.bf16.mxu0 0
        %1533 = vmatpush1.bf16.msra.mxu0 0
        %1534 = vmatprep.subr.bf16.mxu0 0
        %1535 = vmatpush1.bf16.msra.mxu0 0
        %1536 = vmatprep.subr.bf16.mxu0 0
        %1537 = vmatpush1.bf16.msra.mxu0 0
        %1538 = vmatprep.subr.bf16.mxu0 0
        %1539 = vmatpush1.bf16.msra.mxu0 0
        %1540 = vmatprep.subr.bf16.mxu0 0
        %1541 = vmatpush1.bf16.msra.mxu0 0
        %1542 = vmatprep.subr.bf16.mxu0 0
        %1543 = vmatpush1.bf16.msra.mxu0 0
        %1544 = vmatprep.subr.bf16.mxu0 0
        %1545 = vmatpush1.bf16.msra.mxu0 0
        %1546 = vmatprep.subr.bf16.mxu0 0
        %1547 = vmatpush1.bf16.msra.mxu0 0
        %1548 = vmatprep.mubr.bf16.mxu0 0
        %1549 = vmatmul.mubr.bf16.gmra.mrb[0].mxu0 %v1508
        %v1550 = vpop.f32.mrb[0].mxu0
        %v1551 = vadd.f32 0.0, %v1550
        %v1552 = vpop.f32.mrb[0].mxu0
        %v1553 = vpop.f32.mrb[0].mxu0
        %v1554 = vadd.f32 0.0, %v1553
        %v1555 = vpop.f32.mrb[0].mxu0
        %1556 = vmatprep.mubr.bf16.mxu0 0
        %1557 = vmatmul.mubr.bf16.gmra.mrb[0].mxu0 %v1509
        %v1558 = vpop.f32.mrb[0].mxu0
        %v1559 = vadd.f32 0.0, %v1558
        %v1560 = vpop.f32.mrb[0].mxu0
        %v1561 = vpop.f32.mrb[0].mxu0
        %v1562 = vadd.f32 0.0, %v1561
        %v1563 = vpop.f32.mrb[0].mxu0
        %1564 = vmatprep.mubr.bf16.mxu0 0
        %1565 = vmatmul.mubr.bf16.gmra.mrb[0].mxu0 %v1510
        %v1566 = vpop.f32.mrb[0].mxu0
        %v1567 = vadd.f32 0.0, %v1566
        %v1568 = vpop.f32.mrb[0].mxu0
        %v1569 = vpop.f32.mrb[0].mxu0
        %v1570 = vadd.f32 0.0, %v1569
        %v1571 = vpop.f32.mrb[0].mxu0
        %1572 = vmatprep.mubr.bf16.mxu0 0
        %1573 = vmatmul.mubr.bf16.gmra.mrb[0].mxu0 %v1511
        %v1574 = vpop.f32.mrb[0].mxu0
        %v1575 = vadd.f32 0.0, %v1574
        %v1576 = vpop.f32.mrb[0].mxu0
        %v1577 = vpop.f32.mrb[0].mxu0
        %v1578 = vadd.f32 0.0, %v1577
        %v1579 = vpop.f32.mrb[0].mxu0
        %1580 = vmatprep.mubr.bf16.mxu0 0
        %1581 = vmatmul.mubr.bf16.gmra.mrb[0].mxu0 %v1512
        %v1582 = vpop.f32.mrb[0].mxu0
        %v1583 = vadd.f32 0.0, %v1582
        %v1584 = vpop.f32.mrb[0].mxu0
        %v1585 = vpop.f32.mrb[0].mxu0
        %v1586 = vadd.f32 0.0, %v1585
        %v1587 = vpop.f32.mrb[0].mxu0
        %1588 = vmatprep.mubr.bf16.mxu0 0
        %1589 = vmatmul.mubr.bf16.gmra.mrb[0].mxu0 %v1513
        %v1590 = vpop.f32.mrb[0].mxu0
        %v1591 = vadd.f32 0.0, %v1590
        %v1592 = vpop.f32.mrb[0].mxu0
        %v1593 = vpop.f32.mrb[0].mxu0
        %v1594 = vadd.f32 0.0, %v1593
        %v1595 = vpop.f32.mrb[0].mxu0
        %1596 = vmatprep.mubr.bf16.mxu0 0
        %1597 = vmatmul.mubr.bf16.gmra.mrb[0].mxu0 %v1514
        %v1598 = vpop.f32.mrb[0].mxu0
        %v1599 = vadd.f32 0.0, %v1598
        %v1600 = vpop.f32.mrb[0].mxu0
        %v1601 = vpop.f32.mrb[0].mxu0
        %v1602 = vadd.f32 0.0, %v1601
        %v1603 = vpop.f32.mrb[0].mxu0
        %1604 = vmatprep.mubr.bf16.mxu0 0
        %1605 = vmatmul.mubr.bf16.gmra.mrb[0].mxu0 %v1515
        %v1606 = vpop.f32.mrb[0].mxu0
        %v1607 = vadd.f32 0.0, %v1606
        %v1608 = vpop.f32.mrb[0].mxu0
        %v1609 = vpop.f32.mrb[0].mxu0
        %v1610 = vadd.f32 0.0, %v1609
        %v1611 = vpop.f32.mrb[0].mxu0
        %1612 = vdwg.mxu0
        %v1613 = vadd.f32 %v1492, %v1551
        %v1614 = vadd.f32 %v1493, %v1554
        %v1615 = vadd.f32 %v1494, %v1559
        %v1616 = vadd.f32 %v1495, %v1562
        %v1617 = vadd.f32 %v1496, %v1567
        %v1618 = vadd.f32 %v1497, %v1570
        %v1619 = vadd.f32 %v1498, %v1575
        %v1620 = vadd.f32 %v1499, %v1578
        %v1621 = vadd.f32 %v1500, %v1583
        %v1622 = vadd.f32 %v1501, %v1586
        %v1623 = vadd.f32 %v1502, %v1591
        %v1624 = vadd.f32 %v1503, %v1594
        %v1625 = vadd.f32 %v1504, %v1599
        %v1626 = vadd.f32 %v1505, %v1602
        %v1627 = vadd.f32 %v1506, %v1607
        %v1628 = vadd.f32 %v1507, %v1610
        %1629 = vst [vmem:[#allocation4] sm:$0xff] %v1613
        %1630 = vst [vmem:[#allocation4 + $0x8] sm:$0xff] %v1614
        %1631 = vst [vmem:[#allocation4 + $0x10] sm:$0xff] %v1615
        %1632 = vst [vmem:[#allocation4 + $0x18] sm:$0xff] %v1616
        %1633 = vst [vmem:[#allocation4 + $0x20] sm:$0xff] %v1617
        %1634 = vst [vmem:[#allocation4 + $0x28] sm:$0xff] %v1618
        %1635 = vst [vmem:[#allocation4 + $0x30] sm:$0xff] %v1619
        %1636 = vst [vmem:[#allocation4 + $0x38] sm:$0xff] %v1620
        %1637 = vst [vmem:[#allocation4 + $0x40] sm:$0xff] %v1621
        %1638 = vst [vmem:[#allocation4 + $0x48] sm:$0xff] %v1622
        %1639 = vst [vmem:[#allocation4 + $0x50] sm:$0xff] %v1623
        %1640 = vst [vmem:[#allocation4 + $0x58] sm:$0xff] %v1624
        %1641 = vst [vmem:[#allocation4 + $0x60] sm:$0xff] %v1625
        %1642 = vst [vmem:[#allocation4 + $0x68] sm:$0xff] %v1626
        %1643 = vst [vmem:[#allocation4 + $0x70] sm:$0xff] %v1627
        %1644 = vst [vmem:[#allocation4 + $0x78] sm:$0xff] %v1628
        %1645 = vst.msk [vmem:[#allocation2] sm:$0xff] %vm1379, %v1107
        %1646 = vst.msk [vmem:[#allocation2 + $0x8] sm:$0xff] %vm1379, %v1108
        %1647 = vst.msk [vmem:[#allocation2 + $0x10] sm:$0xff] %vm1379, %v1109
        %1648 = vst.msk [vmem:[#allocation2 + $0x18] sm:$0xff] %vm1379, %v1110
        %1649 = vst.msk [vmem:[#allocation2 + $0x20] sm:$0xff] %vm1379, %v1111
        %1650 = vst.msk [vmem:[#allocation2 + $0x28] sm:$0xff] %vm1379, %v1112
        %1651 = vst.msk [vmem:[#allocation2 + $0x30] sm:$0xff] %vm1379, %v1113
        %1652 = vst.msk [vmem:[#allocation2 + $0x38] sm:$0xff] %vm1379, %v1114
        %1653 = vst.msk [vmem:[#allocation2 + $0x40] sm:$0xff] %vm1379, %v1115
        %1654 = vst.msk [vmem:[#allocation2 + $0x48] sm:$0xff] %vm1379, %v1116
        %1655 = vst.msk [vmem:[#allocation2 + $0x50] sm:$0xff] %vm1379, %v1117
        %1656 = vst.msk [vmem:[#allocation2 + $0x58] sm:$0xff] %vm1379, %v1118
        %1657 = vst.msk [vmem:[#allocation2 + $0x60] sm:$0xff] %vm1379, %v1119
        %1658 = vst.msk [vmem:[#allocation2 + $0x68] sm:$0xff] %vm1379, %v1120
        %1659 = vst.msk [vmem:[#allocation2 + $0x70] sm:$0xff] %vm1379, %v1121
        %1660 = vst.msk [vmem:[#allocation2 + $0x78] sm:$0xff] %vm1379, %v1122
        %p1661 = scmp.eq.s32.totalorder %s29, 2
        // Predicated region
        $region107: #{geniepath_conv.1} parent=97 // pred_check
          %p1662 = pneg %p1661
        $region108: #{geniepath_conv.1} parent=97 // pred_check_branch
          %1664 = sbr.rel (%p1662) target = $region110
        $region109: #{geniepath_conv.1} parent=97 // pred_region
          %v1665 = vld [vmem:[#allocation3] sm:$0xff]
          %v1666 = vld [vmem:[#allocation3 + $0x8] sm:$0xff]
          %v1667 = vld [vmem:[#allocation3 + $0x10] sm:$0xff]
          %v1668 = vld [vmem:[#allocation3 + $0x18] sm:$0xff]
          %v1669 = vld [vmem:[#allocation3 + $0x20] sm:$0xff]
          %v1670 = vld [vmem:[#allocation3 + $0x28] sm:$0xff]
          %v1671 = vld [vmem:[#allocation3 + $0x30] sm:$0xff]
          %v1672 = vld [vmem:[#allocation3 + $0x38] sm:$0xff]
          %v1673 = vld [vmem:[#allocation3 + $0x40] sm:$0xff]
          %v1674 = vld [vmem:[#allocation3 + $0x48] sm:$0xff]
          %v1675 = vld [vmem:[#allocation3 + $0x50] sm:$0xff]
          %v1676 = vld [vmem:[#allocation3 + $0x58] sm:$0xff]
          %v1677 = vld [vmem:[#allocation3 + $0x60] sm:$0xff]
          %v1678 = vld [vmem:[#allocation3 + $0x68] sm:$0xff]
          %v1679 = vld [vmem:[#allocation3 + $0x70] sm:$0xff]
          %v1680 = vld [vmem:[#allocation3 + $0x78] sm:$0xff]
          %v1681 = vmax.f32 %v1665, 1e-09
          %v1682 = vmax.f32 %v1666, 1e-09
          %v1683 = vmax.f32 %v1667, 1e-09
          %v1684 = vmax.f32 %v1668, 1e-09
          %v1685 = vmax.f32 %v1669, 1e-09
          %v1686 = vmax.f32 %v1670, 1e-09
          %v1687 = vmax.f32 %v1671, 1e-09
          %v1688 = vmax.f32 %v1672, 1e-09
          %v1689 = vmax.f32 %v1673, 1e-09
          %v1690 = vmax.f32 %v1674, 1e-09
          %v1691 = vmax.f32 %v1675, 1e-09
          %v1692 = vmax.f32 %v1676, 1e-09
          %v1693 = vmax.f32 %v1677, 1e-09
          %v1694 = vmax.f32 %v1678, 1e-09
          %v1695 = vmax.f32 %v1679, 1e-09
          %v1696 = vmax.f32 %v1680, 1e-09
          %v1697 = vrcp.pop %v1681
          %v1698 = vrcp.pop %v1682
          %v1699 = vrcp.pop %v1683
          %v1700 = vrcp.pop %v1684
          %v1701 = vrcp.pop %v1685
          %v1702 = vrcp.pop %v1686
          %v1703 = vrcp.pop %v1687
          %v1704 = vrcp.pop %v1688
          %v1705 = vrcp.pop %v1689
          %v1706 = vrcp.pop %v1690
          %v1707 = vrcp.pop %v1691
          %v1708 = vrcp.pop %v1692
          %v1709 = vrcp.pop %v1693
          %v1710 = vrcp.pop %v1694
          %v1711 = vrcp.pop %v1695
          %v1712 = vrcp.pop %v1696
          %v1713 = vld [vmem:[#allocation4] sm:$0xff]
          %v1714 = vld [vmem:[#allocation4 + $0x8] sm:$0xff]
          %v1715 = vld [vmem:[#allocation4 + $0x10] sm:$0xff]
          %v1716 = vld [vmem:[#allocation4 + $0x18] sm:$0xff]
          %v1717 = vld [vmem:[#allocation4 + $0x20] sm:$0xff]
          %v1718 = vld [vmem:[#allocation4 + $0x28] sm:$0xff]
          %v1719 = vld [vmem:[#allocation4 + $0x30] sm:$0xff]
          %v1720 = vld [vmem:[#allocation4 + $0x38] sm:$0xff]
          %v1721 = vld [vmem:[#allocation4 + $0x40] sm:$0xff]
          %v1722 = vld [vmem:[#allocation4 + $0x48] sm:$0xff]
          %v1723 = vld [vmem:[#allocation4 + $0x50] sm:$0xff]
          %v1724 = vld [vmem:[#allocation4 + $0x58] sm:$0xff]
          %v1725 = vld [vmem:[#allocation4 + $0x60] sm:$0xff]
          %v1726 = vld [vmem:[#allocation4 + $0x68] sm:$0xff]
          %v1727 = vld [vmem:[#allocation4 + $0x70] sm:$0xff]
          %v1728 = vld [vmem:[#allocation4 + $0x78] sm:$0xff]
          %1730 = vset.pattern.permute.xlu0 0
          %1731 = vperm.xlu0 %1730, %v1697
          %v1732 = vpop.permute.xlu0 %1731
          %1735 = vset.pattern.permute.xlu0 0
          %1736 = vperm.xlu0 %1735, %v1698
          %v1737 = vpop.permute.xlu0 %1736
          %1740 = vset.pattern.permute.xlu0 0
          %1741 = vperm.xlu0 %1740, %v1699
          %v1742 = vpop.permute.xlu0 %1741
          %1745 = vset.pattern.permute.xlu0 0
          %1746 = vperm.xlu0 %1745, %v1700
          %v1747 = vpop.permute.xlu0 %1746
          %1750 = vset.pattern.permute.xlu0 0
          %1751 = vperm.xlu0 %1750, %v1701
          %v1752 = vpop.permute.xlu0 %1751
          %1755 = vset.pattern.permute.xlu0 0
          %1756 = vperm.xlu0 %1755, %v1702
          %v1757 = vpop.permute.xlu0 %1756
          %1760 = vset.pattern.permute.xlu0 0
          %1761 = vperm.xlu0 %1760, %v1703
          %v1762 = vpop.permute.xlu0 %1761
          %1765 = vset.pattern.permute.xlu0 0
          %1766 = vperm.xlu0 %1765, %v1704
          %v1767 = vpop.permute.xlu0 %1766
          %1770 = vset.pattern.permute.xlu0 0
          %1771 = vperm.xlu0 %1770, %v1705
          %v1772 = vpop.permute.xlu0 %1771
          %1775 = vset.pattern.permute.xlu0 0
          %1776 = vperm.xlu0 %1775, %v1706
          %v1777 = vpop.permute.xlu0 %1776
          %1780 = vset.pattern.permute.xlu0 0
          %1781 = vperm.xlu0 %1780, %v1707
          %v1782 = vpop.permute.xlu0 %1781
          %1785 = vset.pattern.permute.xlu0 0
          %1786 = vperm.xlu0 %1785, %v1708
          %v1787 = vpop.permute.xlu0 %1786
          %1790 = vset.pattern.permute.xlu0 0
          %1791 = vperm.xlu0 %1790, %v1709
          %v1792 = vpop.permute.xlu0 %1791
          %1795 = vset.pattern.permute.xlu0 0
          %1796 = vperm.xlu0 %1795, %v1710
          %v1797 = vpop.permute.xlu0 %1796
          %1800 = vset.pattern.permute.xlu0 0
          %1801 = vperm.xlu0 %1800, %v1711
          %v1802 = vpop.permute.xlu0 %1801
          %1805 = vset.pattern.permute.xlu0 0
          %1806 = vperm.xlu0 %1805, %v1712
          %v1807 = vpop.permute.xlu0 %1806
          %v1809 = vmul.f32 %v1713, %v1732
          %v1810 = vmul.f32 %v1714, %v1737
          %v1811 = vmul.f32 %v1715, %v1742
          %v1812 = vmul.f32 %v1716, %v1747
          %v1813 = vmul.f32 %v1717, %v1752
          %v1814 = vmul.f32 %v1718, %v1757
          %v1815 = vmul.f32 %v1719, %v1762
          %v1816 = vmul.f32 %v1720, %v1767
          %v1817 = vmul.f32 %v1721, %v1772
          %v1818 = vmul.f32 %v1722, %v1777
          %v1819 = vmul.f32 %v1723, %v1782
          %v1820 = vmul.f32 %v1724, %v1787
          %v1821 = vmul.f32 %v1725, %v1792
          %v1822 = vmul.f32 %v1726, %v1797
          %v1823 = vmul.f32 %v1727, %v1802
          %v1824 = vmul.f32 %v1728, %v1807
          %v1825 = vld [vmem:[%s5] sm:$0x1]
          %v1827 = vlaneseq
          %v1828 = vshrl.u32 %v1827, 7
          %v1829 = vsub.s32 0, %v1828
          %v1830 = vrot.slane %v1825, %v1829
          %v1832 = vadd.f32 %v1809, %v1830
          %v1833 = vadd.f32 %v1810, %v1830
          %v1834 = vadd.f32 %v1811, %v1830
          %v1835 = vadd.f32 %v1812, %v1830
          %v1836 = vadd.f32 %v1813, %v1830
          %v1837 = vadd.f32 %v1814, %v1830
          %v1838 = vadd.f32 %v1815, %v1830
          %v1839 = vadd.f32 %v1816, %v1830
          %v1840 = vadd.f32 %v1817, %v1830
          %v1841 = vadd.f32 %v1818, %v1830
          %v1842 = vadd.f32 %v1819, %v1830
          %v1843 = vadd.f32 %v1820, %v1830
          %v1844 = vadd.f32 %v1821, %v1830
          %v1845 = vadd.f32 %v1822, %v1830
          %v1846 = vadd.f32 %v1823, %v1830
          %v1847 = vadd.f32 %v1824, %v1830
          %v1848 = vtanh.pop %v1832
          %v1849 = vtanh.pop %v1833
          %v1850 = vtanh.pop %v1834
          %v1851 = vtanh.pop %v1835
          %v1852 = vtanh.pop %v1836
          %v1853 = vtanh.pop %v1837
          %v1854 = vtanh.pop %v1838
          %v1855 = vtanh.pop %v1839
          %v1856 = vtanh.pop %v1840
          %v1857 = vtanh.pop %v1841
          %v1858 = vtanh.pop %v1842
          %v1859 = vtanh.pop %v1843
          %v1860 = vtanh.pop %v1844
          %v1861 = vtanh.pop %v1845
          %v1862 = vtanh.pop %v1846
          %v1863 = vtanh.pop %v1847
          %v1864 = vpack.c.bf16 %v1849, %v1848
          %v1865 = vpack.c.bf16 %v1851, %v1850
          %v1866 = vpack.c.bf16 %v1853, %v1852
          %v1867 = vpack.c.bf16 %v1855, %v1854
          %v1868 = vpack.c.bf16 %v1857, %v1856
          %v1869 = vpack.c.bf16 %v1859, %v1858
          %v1870 = vpack.c.bf16 %v1861, %v1860
          %v1871 = vpack.c.bf16 %v1863, %v1862
          %v1872 = vld [vmem:[%s8] sm:$0xff]
          %v1873 = vld [vmem:[%s8 + $0x8] sm:$0xff]
          %v1874 = vld [vmem:[%s8 + $0x10] sm:$0xff]
          %v1875 = vld [vmem:[%s8 + $0x18] sm:$0xff]
          %v1876 = vld [vmem:[%s8 + $0x20] sm:$0xff]
          %v1877 = vld [vmem:[%s8 + $0x28] sm:$0xff]
          %v1878 = vld [vmem:[%s8 + $0x30] sm:$0xff]
          %v1879 = vld [vmem:[%s8 + $0x38] sm:$0xff]
          %v1880 = vld [vmem:[%s8 + $0x40] sm:$0xff]
          %v1881 = vld [vmem:[%s8 + $0x48] sm:$0xff]
          %v1882 = vld [vmem:[%s8 + $0x50] sm:$0xff]
          %v1883 = vld [vmem:[%s8 + $0x58] sm:$0xff]
          %v1884 = vld [vmem:[%s8 + $0x60] sm:$0xff]
          %v1885 = vld [vmem:[%s8 + $0x68] sm:$0xff]
          %v1886 = vld [vmem:[%s8 + $0x70] sm:$0xff]
          %v1887 = vld [vmem:[%s8 + $0x78] sm:$0xff]
          %v1888 = vld [vmem:[%s8 + $0x80] sm:$0xff]
          %v1889 = vld [vmem:[%s8 + $0x88] sm:$0xff]
          %v1890 = vld [vmem:[%s8 + $0x90] sm:$0xff]
          %v1891 = vld [vmem:[%s8 + $0x98] sm:$0xff]
          %v1892 = vld [vmem:[%s8 + $0xa0] sm:$0xff]
          %v1893 = vld [vmem:[%s8 + $0xa8] sm:$0xff]
          %v1894 = vld [vmem:[%s8 + $0xb0] sm:$0xff]
          %v1895 = vld [vmem:[%s8 + $0xb8] sm:$0xff]
          %v1896 = vld [vmem:[%s8 + $0xc0] sm:$0xff]
          %v1897 = vld [vmem:[%s8 + $0xc8] sm:$0xff]
          %v1898 = vld [vmem:[%s8 + $0xd0] sm:$0xff]
          %v1899 = vld [vmem:[%s8 + $0xd8] sm:$0xff]
          %v1900 = vld [vmem:[%s8 + $0xe0] sm:$0xff]
          %v1901 = vld [vmem:[%s8 + $0xe8] sm:$0xff]
          %v1902 = vld [vmem:[%s8 + $0xf0] sm:$0xff]
          %v1903 = vld [vmem:[%s8 + $0xf8] sm:$0xff]
          %v1904 = vld [vmem:[%s575] sm:$0xff]
          %v1905 = vld [vmem:[%s575 + $0x8] sm:$0xff]
          %v1906 = vld [vmem:[%s575 + $0x10] sm:$0xff]
          %v1907 = vld [vmem:[%s575 + $0x18] sm:$0xff]
          %v1908 = vld [vmem:[%s575 + $0x20] sm:$0xff]
          %v1909 = vld [vmem:[%s575 + $0x28] sm:$0xff]
          %v1910 = vld [vmem:[%s575 + $0x30] sm:$0xff]
          %v1911 = vld [vmem:[%s575 + $0x38] sm:$0xff]
          %v1912 = vld [vmem:[%s575 + $0x40] sm:$0xff]
          %v1913 = vld [vmem:[%s575 + $0x48] sm:$0xff]
          %v1914 = vld [vmem:[%s575 + $0x50] sm:$0xff]
          %v1915 = vld [vmem:[%s575 + $0x58] sm:$0xff]
          %v1916 = vld [vmem:[%s575 + $0x60] sm:$0xff]
          %v1917 = vld [vmem:[%s575 + $0x68] sm:$0xff]
          %v1918 = vld [vmem:[%s575 + $0x70] sm:$0xff]
          %v1919 = vld [vmem:[%s575 + $0x78] sm:$0xff]
          %v1920 = vpack.c.bf16 %v1905, %v1904
          %v1921 = vpack.c.bf16 %v1907, %v1906
          %v1922 = vpack.c.bf16 %v1909, %v1908
          %v1923 = vpack.c.bf16 %v1911, %v1910
          %v1924 = vpack.c.bf16 %v1913, %v1912
          %v1925 = vpack.c.bf16 %v1915, %v1914
          %v1926 = vpack.c.bf16 %v1917, %v1916
          %v1927 = vpack.c.bf16 %v1919, %v1918
          %v1928 = vld [vmem:[%s9] sm:$0xff]
          %v1929 = vld [vmem:[%s9 + $0x8] sm:$0xff]
          %v1930 = vld [vmem:[%s9 + $0x10] sm:$0xff]
          %v1931 = vld [vmem:[%s9 + $0x18] sm:$0xff]
          %v1932 = vld [vmem:[%s9 + $0x20] sm:$0xff]
          %v1933 = vld [vmem:[%s9 + $0x28] sm:$0xff]
          %v1934 = vld [vmem:[%s9 + $0x30] sm:$0xff]
          %v1935 = vld [vmem:[%s9 + $0x38] sm:$0xff]
          %v1936 = vld [vmem:[%s9 + $0x40] sm:$0xff]
          %v1937 = vld [vmem:[%s9 + $0x48] sm:$0xff]
          %v1938 = vld [vmem:[%s9 + $0x50] sm:$0xff]
          %v1939 = vld [vmem:[%s9 + $0x58] sm:$0xff]
          %v1940 = vld [vmem:[%s9 + $0x60] sm:$0xff]
          %v1941 = vld [vmem:[%s9 + $0x68] sm:$0xff]
          %v1942 = vld [vmem:[%s9 + $0x70] sm:$0xff]
          %v1943 = vld [vmem:[%s9 + $0x78] sm:$0xff]
          %v1944 = vld [vmem:[%s9 + $0x80] sm:$0xff]
          %v1945 = vld [vmem:[%s9 + $0x88] sm:$0xff]
          %v1946 = vld [vmem:[%s9 + $0x90] sm:$0xff]
          %v1947 = vld [vmem:[%s9 + $0x98] sm:$0xff]
          %v1948 = vld [vmem:[%s9 + $0xa0] sm:$0xff]
          %v1949 = vld [vmem:[%s9 + $0xa8] sm:$0xff]
          %v1950 = vld [vmem:[%s9 + $0xb0] sm:$0xff]
          %v1951 = vld [vmem:[%s9 + $0xb8] sm:$0xff]
          %v1952 = vld [vmem:[%s9 + $0xc0] sm:$0xff]
          %v1953 = vld [vmem:[%s9 + $0xc8] sm:$0xff]
          %v1954 = vld [vmem:[%s9 + $0xd0] sm:$0xff]
          %v1955 = vld [vmem:[%s9 + $0xd8] sm:$0xff]
          %v1956 = vld [vmem:[%s9 + $0xe0] sm:$0xff]
          %v1957 = vld [vmem:[%s9 + $0xe8] sm:$0xff]
          %v1958 = vld [vmem:[%s9 + $0xf0] sm:$0xff]
          %v1959 = vld [vmem:[%s9 + $0xf8] sm:$0xff]
          %v1992 = vunpack.c.l.b16 %v1928
          %v1993 = vunpack.c.h.b16 %v1928
          %v1994 = vunpack.c.l.b16 %v1929
          %v1995 = vunpack.c.h.b16 %v1929
          %v1996 = vunpack.c.l.b16 %v1930
          %v1997 = vunpack.c.h.b16 %v1930
          %v1998 = vunpack.c.l.b16 %v1931
          %v1999 = vunpack.c.h.b16 %v1931
          %v2000 = vunpack.c.l.b16 %v1932
          %v2001 = vunpack.c.h.b16 %v1932
          %v2002 = vunpack.c.l.b16 %v1933
          %v2003 = vunpack.c.h.b16 %v1933
          %v2004 = vunpack.c.l.b16 %v1934
          %v2005 = vunpack.c.h.b16 %v1934
          %v2006 = vunpack.c.l.b16 %v1935
          %v2007 = vunpack.c.h.b16 %v1935
          %v2008 = vunpack.c.l.b16 %v1936
          %v2009 = vunpack.c.h.b16 %v1936
          %v2010 = vunpack.c.l.b16 %v1937
          %v2011 = vunpack.c.h.b16 %v1937
          %v2012 = vunpack.c.l.b16 %v1938
          %v2013 = vunpack.c.h.b16 %v1938
          %v2014 = vunpack.c.l.b16 %v1939
          %v2015 = vunpack.c.h.b16 %v1939
          %v2016 = vunpack.c.l.b16 %v1940
          %v2017 = vunpack.c.h.b16 %v1940
          %v2018 = vunpack.c.l.b16 %v1941
          %v2019 = vunpack.c.h.b16 %v1941
          %v2020 = vunpack.c.l.b16 %v1942
          %v2021 = vunpack.c.h.b16 %v1942
          %v2022 = vunpack.c.l.b16 %v1943
          %v2023 = vunpack.c.h.b16 %v1943
          %v2024 = vunpack.c.l.b16 %v1944
          %v2025 = vunpack.c.h.b16 %v1944
          %v2026 = vunpack.c.l.b16 %v1945
          %v2027 = vunpack.c.h.b16 %v1945
          %v2028 = vunpack.c.l.b16 %v1946
          %v2029 = vunpack.c.h.b16 %v1946
          %v2030 = vunpack.c.l.b16 %v1947
          %v2031 = vunpack.c.h.b16 %v1947
          %v2032 = vunpack.c.l.b16 %v1948
          %v2033 = vunpack.c.h.b16 %v1948
          %v2034 = vunpack.c.l.b16 %v1949
          %v2035 = vunpack.c.h.b16 %v1949
          %v2036 = vunpack.c.l.b16 %v1950
          %v2037 = vunpack.c.h.b16 %v1950
          %v2038 = vunpack.c.l.b16 %v1951
          %v2039 = vunpack.c.h.b16 %v1951
          %v2040 = vunpack.c.l.b16 %v1952
          %v2041 = vunpack.c.h.b16 %v1952
          %v2042 = vunpack.c.l.b16 %v1953
          %v2043 = vunpack.c.h.b16 %v1953
          %v2044 = vunpack.c.l.b16 %v1954
          %v2045 = vunpack.c.h.b16 %v1954
          %v2046 = vunpack.c.l.b16 %v1955
          %v2047 = vunpack.c.h.b16 %v1955
          %v2048 = vunpack.c.l.b16 %v1956
          %v2049 = vunpack.c.h.b16 %v1956
          %v2050 = vunpack.c.l.b16 %v1957
          %v2051 = vunpack.c.h.b16 %v1957
          %v2052 = vunpack.c.l.b16 %v1958
          %v2053 = vunpack.c.h.b16 %v1958
          %v2054 = vunpack.c.l.b16 %v1959
          %v2055 = vunpack.c.h.b16 %v1959
          %v2056 = vpack.c.b16 %v1996, %v1992
          %v2057 = vpack.c.b16 %v1997, %v1993
          %v2058 = vpack.c.b16 %v1998, %v1994
          %v2059 = vpack.c.b16 %v1999, %v1995
          %v2060 = vpack.c.b16 %v2004, %v2000
          %v2061 = vpack.c.b16 %v2005, %v2001
          %v2062 = vpack.c.b16 %v2006, %v2002
          %v2063 = vpack.c.b16 %v2007, %v2003
          %v2064 = vpack.c.b16 %v2012, %v2008
          %v2065 = vpack.c.b16 %v2013, %v2009
          %v2066 = vpack.c.b16 %v2014, %v2010
          %v2067 = vpack.c.b16 %v2015, %v2011
          %v2068 = vpack.c.b16 %v2020, %v2016
          %v2069 = vpack.c.b16 %v2021, %v2017
          %v2070 = vpack.c.b16 %v2022, %v2018
          %v2071 = vpack.c.b16 %v2023, %v2019
          %v2072 = vpack.c.b16 %v2028, %v2024
          %v2073 = vpack.c.b16 %v2029, %v2025
          %v2074 = vpack.c.b16 %v2030, %v2026
          %v2075 = vpack.c.b16 %v2031, %v2027
          %v2076 = vpack.c.b16 %v2036, %v2032
          %v2077 = vpack.c.b16 %v2037, %v2033
          %v2078 = vpack.c.b16 %v2038, %v2034
          %v2079 = vpack.c.b16 %v2039, %v2035
          %v2080 = vpack.c.b16 %v2044, %v2040
          %v2081 = vpack.c.b16 %v2045, %v2041
          %v2082 = vpack.c.b16 %v2046, %v2042
          %v2083 = vpack.c.b16 %v2047, %v2043
          %v2084 = vpack.c.b16 %v2052, %v2048
          %v2085 = vpack.c.b16 %v2053, %v2049
          %v2086 = vpack.c.b16 %v2054, %v2050
          %v2087 = vpack.c.b16 %v2055, %v2051
          %2120 = vmatprep.subr.bf16.mxu0 %v2057
          %2121 = vmatpush1.bf16.msra.mxu0 %v2056
          %2122 = vmatprep.subr.bf16.mxu0 %v2061
          %2123 = vmatpush1.bf16.msra.mxu0 %v2060
          %2124 = vmatprep.subr.bf16.mxu0 %v2065
          %2125 = vmatpush1.bf16.msra.mxu0 %v2064
          %2126 = vmatprep.subr.bf16.mxu0 %v2069
          %2127 = vmatpush1.bf16.msra.mxu0 %v2068
          %2128 = vmatprep.subr.bf16.mxu0 %v2073
          %2129 = vmatpush1.bf16.msra.mxu0 %v2072
          %2130 = vmatprep.subr.bf16.mxu0 %v2077
          %2131 = vmatpush1.bf16.msra.mxu0 %v2076
          %2132 = vmatprep.subr.bf16.mxu0 %v2081
          %2133 = vmatpush1.bf16.msra.mxu0 %v2080
          %2134 = vmatprep.subr.bf16.mxu0 %v2085
          %2135 = vmatpush1.bf16.msra.mxu0 %v2084
          %2136 = vmatprep.subr.bf16.mxu0 0
          %2137 = vmatpush1.bf16.msra.mxu0 0
          %2138 = vmatprep.subr.bf16.mxu0 0
          %2139 = vmatpush1.bf16.msra.mxu0 0
          %2140 = vmatprep.subr.bf16.mxu0 0
          %2141 = vmatpush1.bf16.msra.mxu0 0
          %2142 = vmatprep.subr.bf16.mxu0 0
          %2143 = vmatpush1.bf16.msra.mxu0 0
          %2144 = vmatprep.subr.bf16.mxu0 0
          %2145 = vmatpush1.bf16.msra.mxu0 0
          %2146 = vmatprep.subr.bf16.mxu0 0
          %2147 = vmatpush1.bf16.msra.mxu0 0
          %2148 = vmatprep.subr.bf16.mxu0 0
          %2149 = vmatpush1.bf16.msra.mxu0 0
          %2150 = vmatprep.subr.bf16.mxu0 0
          %2151 = vmatpush1.bf16.msra.mxu0 0
          %2152 = vmatprep.mubr.bf16.mxu0 0
          %2153 = vmatmul.mubr.bf16.gmra.mrb[0].mxu0 %v1920
          %v2154 = vpop.f32.mrb[0].mxu0
          %v2155 = vadd.f32 0.0, %v2154
          %v2156 = vpop.f32.mrb[0].mxu0
          %v2157 = vadd.f32 0.0, %v2156
          %v2158 = vpop.f32.mrb[0].mxu0
          %v2159 = vadd.f32 0.0, %v2158
          %v2160 = vpop.f32.mrb[0].mxu0
          %v2161 = vadd.f32 0.0, %v2160
          %2162 = vmatprep.mubr.bf16.mxu0 0
          %2163 = vmatmul.mubr.bf16.gmra.mrb[0].mxu0 %v1921
          %v2164 = vpop.f32.mrb[0].mxu0
          %v2165 = vadd.f32 0.0, %v2164
          %v2166 = vpop.f32.mrb[0].mxu0
          %v2167 = vadd.f32 0.0, %v2166
          %v2168 = vpop.f32.mrb[0].mxu0
          %v2169 = vadd.f32 0.0, %v2168
          %v2170 = vpop.f32.mrb[0].mxu0
          %v2171 = vadd.f32 0.0, %v2170
          %2172 = vmatprep.mubr.bf16.mxu0 0
          %2173 = vmatmul.mubr.bf16.gmra.mrb[0].mxu0 %v1922
          %v2174 = vpop.f32.mrb[0].mxu0
          %v2175 = vadd.f32 0.0, %v2174
          %v2176 = vpop.f32.mrb[0].mxu0
          %v2177 = vadd.f32 0.0, %v2176
          %v2178 = vpop.f32.mrb[0].mxu0
          %v2179 = vadd.f32 0.0, %v2178
          %v2180 = vpop.f32.mrb[0].mxu0
          %v2181 = vadd.f32 0.0, %v2180
          %2182 = vmatprep.mubr.bf16.mxu0 0
          %2183 = vmatmul.mubr.bf16.gmra.mrb[0].mxu0 %v1923
          %v2184 = vpop.f32.mrb[0].mxu0
          %v2185 = vadd.f32 0.0, %v2184
          %v2186 = vpop.f32.mrb[0].mxu0
          %v2187 = vadd.f32 0.0, %v2186
          %v2188 = vpop.f32.mrb[0].mxu0
          %v2189 = vadd.f32 0.0, %v2188
          %v2190 = vpop.f32.mrb[0].mxu0
          %v2191 = vadd.f32 0.0, %v2190
          %2192 = vmatprep.mubr.bf16.mxu0 0
          %2193 = vmatmul.mubr.bf16.gmra.mrb[0].mxu0 %v1924
          %v2194 = vpop.f32.mrb[0].mxu0
          %v2195 = vadd.f32 0.0, %v2194
          %v2196 = vpop.f32.mrb[0].mxu0
          %v2197 = vadd.f32 0.0, %v2196
          %v2198 = vpop.f32.mrb[0].mxu0
          %v2199 = vadd.f32 0.0, %v2198
          %v2200 = vpop.f32.mrb[0].mxu0
          %v2201 = vadd.f32 0.0, %v2200
          %2202 = vmatprep.mubr.bf16.mxu0 0
          %2203 = vmatmul.mubr.bf16.gmra.mrb[0].mxu0 %v1925
          %v2204 = vpop.f32.mrb[0].mxu0
          %v2205 = vadd.f32 0.0, %v2204
          %v2206 = vpop.f32.mrb[0].mxu0
          %v2207 = vadd.f32 0.0, %v2206
          %v2208 = vpop.f32.mrb[0].mxu0
          %v2209 = vadd.f32 0.0, %v2208
          %v2210 = vpop.f32.mrb[0].mxu0
          %v2211 = vadd.f32 0.0, %v2210
          %2212 = vmatprep.mubr.bf16.mxu0 0
          %2213 = vmatmul.mubr.bf16.gmra.mrb[0].mxu0 %v1926
          %v2214 = vpop.f32.mrb[0].mxu0
          %v2215 = vadd.f32 0.0, %v2214
          %v2216 = vpop.f32.mrb[0].mxu0
          %v2217 = vadd.f32 0.0, %v2216
          %v2218 = vpop.f32.mrb[0].mxu0
          %v2219 = vadd.f32 0.0, %v2218
          %v2220 = vpop.f32.mrb[0].mxu0
          %v2221 = vadd.f32 0.0, %v2220
          %2222 = vmatprep.mubr.bf16.mxu0 0
          %2223 = vmatmul.mubr.bf16.gmra.mrb[0].mxu0 %v1927
          %v2224 = vpop.f32.mrb[0].mxu0
          %v2225 = vadd.f32 0.0, %v2224
          %v2226 = vpop.f32.mrb[0].mxu0
          %v2227 = vadd.f32 0.0, %v2226
          %v2228 = vpop.f32.mrb[0].mxu0
          %v2229 = vadd.f32 0.0, %v2228
          %v2230 = vpop.f32.mrb[0].mxu0
          %v2231 = vadd.f32 0.0, %v2230
          %2232 = vdwg.mxu0
          %2233 = vmatprep.subr.bf16.mxu0 %v2059
          %2234 = vmatpush1.bf16.msra.mxu0 %v2058
          %2235 = vmatprep.subr.bf16.mxu0 %v2063
          %2236 = vmatpush1.bf16.msra.mxu0 %v2062
          %2237 = vmatprep.subr.bf16.mxu0 %v2067
          %2238 = vmatpush1.bf16.msra.mxu0 %v2066
          %2239 = vmatprep.subr.bf16.mxu0 %v2071
          %2240 = vmatpush1.bf16.msra.mxu0 %v2070
          %2241 = vmatprep.subr.bf16.mxu0 %v2075
          %2242 = vmatpush1.bf16.msra.mxu0 %v2074
          %2243 = vmatprep.subr.bf16.mxu0 %v2079
          %2244 = vmatpush1.bf16.msra.mxu0 %v2078
          %2245 = vmatprep.subr.bf16.mxu0 %v2083
          %2246 = vmatpush1.bf16.msra.mxu0 %v2082
          %2247 = vmatprep.subr.bf16.mxu0 %v2087
          %2248 = vmatpush1.bf16.msra.mxu0 %v2086
          %2249 = vmatprep.subr.bf16.mxu0 0
          %2250 = vmatpush1.bf16.msra.mxu0 0
          %2251 = vmatprep.subr.bf16.mxu0 0
          %2252 = vmatpush1.bf16.msra.mxu0 0
          %2253 = vmatprep.subr.bf16.mxu0 0
          %2254 = vmatpush1.bf16.msra.mxu0 0
          %2255 = vmatprep.subr.bf16.mxu0 0
          %2256 = vmatpush1.bf16.msra.mxu0 0
          %2257 = vmatprep.subr.bf16.mxu0 0
          %2258 = vmatpush1.bf16.msra.mxu0 0
          %2259 = vmatprep.subr.bf16.mxu0 0
          %2260 = vmatpush1.bf16.msra.mxu0 0
          %2261 = vmatprep.subr.bf16.mxu0 0
          %2262 = vmatpush1.bf16.msra.mxu0 0
          %2263 = vmatprep.subr.bf16.mxu0 0
          %2264 = vmatpush1.bf16.msra.mxu0 0
          %2265 = vmatprep.mubr.bf16.mxu0 0
          %2266 = vmatmul.mubr.bf16.gmra.mrb[0].mxu0 %v1920
          %v2267 = vpop.f32.mrb[0].mxu0
          %v2268 = vadd.f32 0.0, %v2267
          %v2269 = vpop.f32.mrb[0].mxu0
          %v2270 = vadd.f32 0.0, %v2269
          %v2271 = vpop.f32.mrb[0].mxu0
          %v2272 = vadd.f32 0.0, %v2271
          %v2273 = vpop.f32.mrb[0].mxu0
          %v2274 = vadd.f32 0.0, %v2273
          %2275 = vmatprep.mubr.bf16.mxu0 0
          %2276 = vmatmul.mubr.bf16.gmra.mrb[0].mxu0 %v1921
          %v2277 = vpop.f32.mrb[0].mxu0
          %v2278 = vadd.f32 0.0, %v2277
          %v2279 = vpop.f32.mrb[0].mxu0
          %v2280 = vadd.f32 0.0, %v2279
          %v2281 = vpop.f32.mrb[0].mxu0
          %v2282 = vadd.f32 0.0, %v2281
          %v2283 = vpop.f32.mrb[0].mxu0
          %v2284 = vadd.f32 0.0, %v2283
          %2285 = vmatprep.mubr.bf16.mxu0 0
          %2286 = vmatmul.mubr.bf16.gmra.mrb[0].mxu0 %v1922
          %v2287 = vpop.f32.mrb[0].mxu0
          %v2288 = vadd.f32 0.0, %v2287
          %v2289 = vpop.f32.mrb[0].mxu0
          %v2290 = vadd.f32 0.0, %v2289
          %v2291 = vpop.f32.mrb[0].mxu0
          %v2292 = vadd.f32 0.0, %v2291
          %v2293 = vpop.f32.mrb[0].mxu0
          %v2294 = vadd.f32 0.0, %v2293
          %2295 = vmatprep.mubr.bf16.mxu0 0
          %2296 = vmatmul.mubr.bf16.gmra.mrb[0].mxu0 %v1923
          %v2297 = vpop.f32.mrb[0].mxu0
          %v2298 = vadd.f32 0.0, %v2297
          %v2299 = vpop.f32.mrb[0].mxu0
          %v2300 = vadd.f32 0.0, %v2299
          %v2301 = vpop.f32.mrb[0].mxu0
          %v2302 = vadd.f32 0.0, %v2301
          %v2303 = vpop.f32.mrb[0].mxu0
          %v2304 = vadd.f32 0.0, %v2303
          %2305 = vmatprep.mubr.bf16.mxu0 0
          %2306 = vmatmul.mubr.bf16.gmra.mrb[0].mxu0 %v1924
          %v2307 = vpop.f32.mrb[0].mxu0
          %v2308 = vadd.f32 0.0, %v2307
          %v2309 = vpop.f32.mrb[0].mxu0
          %v2310 = vadd.f32 0.0, %v2309
          %v2311 = vpop.f32.mrb[0].mxu0
          %v2312 = vadd.f32 0.0, %v2311
          %v2313 = vpop.f32.mrb[0].mxu0
          %v2314 = vadd.f32 0.0, %v2313
          %2315 = vmatprep.mubr.bf16.mxu0 0
          %2316 = vmatmul.mubr.bf16.gmra.mrb[0].mxu0 %v1925
          %v2317 = vpop.f32.mrb[0].mxu0
          %v2318 = vadd.f32 0.0, %v2317
          %v2319 = vpop.f32.mrb[0].mxu0
          %v2320 = vadd.f32 0.0, %v2319
          %v2321 = vpop.f32.mrb[0].mxu0
          %v2322 = vadd.f32 0.0, %v2321
          %v2323 = vpop.f32.mrb[0].mxu0
          %v2324 = vadd.f32 0.0, %v2323
          %2325 = vmatprep.mubr.bf16.mxu0 0
          %2326 = vmatmul.mubr.bf16.gmra.mrb[0].mxu0 %v1926
          %v2327 = vpop.f32.mrb[0].mxu0
          %v2328 = vadd.f32 0.0, %v2327
          %v2329 = vpop.f32.mrb[0].mxu0
          %v2330 = vadd.f32 0.0, %v2329
          %v2331 = vpop.f32.mrb[0].mxu0
          %v2332 = vadd.f32 0.0, %v2331
          %v2333 = vpop.f32.mrb[0].mxu0
          %v2334 = vadd.f32 0.0, %v2333
          %2335 = vmatprep.mubr.bf16.mxu0 0
          %2336 = vmatmul.mubr.bf16.gmra.mrb[0].mxu0 %v1927
          %v2337 = vpop.f32.mrb[0].mxu0
          %v2338 = vadd.f32 0.0, %v2337
          %v2339 = vpop.f32.mrb[0].mxu0
          %v2340 = vadd.f32 0.0, %v2339
          %v2341 = vpop.f32.mrb[0].mxu0
          %v2342 = vadd.f32 0.0, %v2341
          %v2343 = vpop.f32.mrb[0].mxu0
          %v2344 = vadd.f32 0.0, %v2343
          %2345 = vdwg.mxu0
          %v2378 = vunpack.c.l.b16 %v1872
          %v2379 = vunpack.c.h.b16 %v1872
          %v2380 = vunpack.c.l.b16 %v1873
          %v2381 = vunpack.c.h.b16 %v1873
          %v2382 = vunpack.c.l.b16 %v1874
          %v2383 = vunpack.c.h.b16 %v1874
          %v2384 = vunpack.c.l.b16 %v1875
          %v2385 = vunpack.c.h.b16 %v1875
          %v2386 = vunpack.c.l.b16 %v1876
          %v2387 = vunpack.c.h.b16 %v1876
          %v2388 = vunpack.c.l.b16 %v1877
          %v2389 = vunpack.c.h.b16 %v1877
          %v2390 = vunpack.c.l.b16 %v1878
          %v2391 = vunpack.c.h.b16 %v1878
          %v2392 = vunpack.c.l.b16 %v1879
          %v2393 = vunpack.c.h.b16 %v1879
          %v2394 = vunpack.c.l.b16 %v1880
          %v2395 = vunpack.c.h.b16 %v1880
          %v2396 = vunpack.c.l.b16 %v1881
          %v2397 = vunpack.c.h.b16 %v1881
          %v2398 = vunpack.c.l.b16 %v1882
          %v2399 = vunpack.c.h.b16 %v1882
          %v2400 = vunpack.c.l.b16 %v1883
          %v2401 = vunpack.c.h.b16 %v1883
          %v2402 = vunpack.c.l.b16 %v1884
          %v2403 = vunpack.c.h.b16 %v1884
          %v2404 = vunpack.c.l.b16 %v1885
          %v2405 = vunpack.c.h.b16 %v1885
          %v2406 = vunpack.c.l.b16 %v1886
          %v2407 = vunpack.c.h.b16 %v1886
          %v2408 = vunpack.c.l.b16 %v1887
          %v2409 = vunpack.c.h.b16 %v1887
          %v2410 = vunpack.c.l.b16 %v1888
          %v2411 = vunpack.c.h.b16 %v1888
          %v2412 = vunpack.c.l.b16 %v1889
          %v2413 = vunpack.c.h.b16 %v1889
          %v2414 = vunpack.c.l.b16 %v1890
          %v2415 = vunpack.c.h.b16 %v1890
          %v2416 = vunpack.c.l.b16 %v1891
          %v2417 = vunpack.c.h.b16 %v1891
          %v2418 = vunpack.c.l.b16 %v1892
          %v2419 = vunpack.c.h.b16 %v1892
          %v2420 = vunpack.c.l.b16 %v1893
          %v2421 = vunpack.c.h.b16 %v1893
          %v2422 = vunpack.c.l.b16 %v1894
          %v2423 = vunpack.c.h.b16 %v1894
          %v2424 = vunpack.c.l.b16 %v1895
          %v2425 = vunpack.c.h.b16 %v1895
          %v2426 = vunpack.c.l.b16 %v1896
          %v2427 = vunpack.c.h.b16 %v1896
          %v2428 = vunpack.c.l.b16 %v1897
          %v2429 = vunpack.c.h.b16 %v1897
          %v2430 = vunpack.c.l.b16 %v1898
          %v2431 = vunpack.c.h.b16 %v1898
          %v2432 = vunpack.c.l.b16 %v1899
          %v2433 = vunpack.c.h.b16 %v1899
          %v2434 = vunpack.c.l.b16 %v1900
          %v2435 = vunpack.c.h.b16 %v1900
          %v2436 = vunpack.c.l.b16 %v1901
          %v2437 = vunpack.c.h.b16 %v1901
          %v2438 = vunpack.c.l.b16 %v1902
          %v2439 = vunpack.c.h.b16 %v1902
          %v2440 = vunpack.c.l.b16 %v1903
          %v2441 = vunpack.c.h.b16 %v1903
          %v2442 = vpack.c.b16 %v2382, %v2378
          %v2443 = vpack.c.b16 %v2383, %v2379
          %v2444 = vpack.c.b16 %v2384, %v2380
          %v2445 = vpack.c.b16 %v2385, %v2381
          %v2446 = vpack.c.b16 %v2390, %v2386
          %v2447 = vpack.c.b16 %v2391, %v2387
          %v2448 = vpack.c.b16 %v2392, %v2388
          %v2449 = vpack.c.b16 %v2393, %v2389
          %v2450 = vpack.c.b16 %v2398, %v2394
          %v2451 = vpack.c.b16 %v2399, %v2395
          %v2452 = vpack.c.b16 %v2400, %v2396
          %v2453 = vpack.c.b16 %v2401, %v2397
          %v2454 = vpack.c.b16 %v2406, %v2402
          %v2455 = vpack.c.b16 %v2407, %v2403
          %v2456 = vpack.c.b16 %v2408, %v2404
          %v2457 = vpack.c.b16 %v2409, %v2405
          %v2458 = vpack.c.b16 %v2414, %v2410
          %v2459 = vpack.c.b16 %v2415, %v2411
          %v2460 = vpack.c.b16 %v2416, %v2412
          %v2461 = vpack.c.b16 %v2417, %v2413
          %v2462 = vpack.c.b16 %v2422, %v2418
          %v2463 = vpack.c.b16 %v2423, %v2419
          %v2464 = vpack.c.b16 %v2424, %v2420
          %v2465 = vpack.c.b16 %v2425, %v2421
          %v2466 = vpack.c.b16 %v2430, %v2426
          %v2467 = vpack.c.b16 %v2431, %v2427
          %v2468 = vpack.c.b16 %v2432, %v2428
          %v2469 = vpack.c.b16 %v2433, %v2429
          %v2470 = vpack.c.b16 %v2438, %v2434
          %v2471 = vpack.c.b16 %v2439, %v2435
          %v2472 = vpack.c.b16 %v2440, %v2436
          %v2473 = vpack.c.b16 %v2441, %v2437
          %2506 = vmatprep.subr.bf16.mxu0 %v2443
          %2507 = vmatpush1.bf16.msra.mxu0 %v2442
          %2508 = vmatprep.subr.bf16.mxu0 %v2447
          %2509 = vmatpush1.bf16.msra.mxu0 %v2446
          %2510 = vmatprep.subr.bf16.mxu0 %v2451
          %2511 = vmatpush1.bf16.msra.mxu0 %v2450
          %2512 = vmatprep.subr.bf16.mxu0 %v2455
          %2513 = vmatpush1.bf16.msra.mxu0 %v2454
          %2514 = vmatprep.subr.bf16.mxu0 %v2459
          %2515 = vmatpush1.bf16.msra.mxu0 %v2458
          %2516 = vmatprep.subr.bf16.mxu0 %v2463
          %2517 = vmatpush1.bf16.msra.mxu0 %v2462
          %2518 = vmatprep.subr.bf16.mxu0 %v2467
          %2519 = vmatpush1.bf16.msra.mxu0 %v2466
          %2520 = vmatprep.subr.bf16.mxu0 %v2471
          %2521 = vmatpush1.bf16.msra.mxu0 %v2470
          %2522 = vmatprep.subr.bf16.mxu0 0
          %2523 = vmatpush1.bf16.msra.mxu0 0
          %2524 = vmatprep.subr.bf16.mxu0 0
          %2525 = vmatpush1.bf16.msra.mxu0 0
          %2526 = vmatprep.subr.bf16.mxu0 0
          %2527 = vmatpush1.bf16.msra.mxu0 0
          %2528 = vmatprep.subr.bf16.mxu0 0
          %2529 = vmatpush1.bf16.msra.mxu0 0
          %2530 = vmatprep.subr.bf16.mxu0 0
          %2531 = vmatpush1.bf16.msra.mxu0 0
          %2532 = vmatprep.subr.bf16.mxu0 0
          %2533 = vmatpush1.bf16.msra.mxu0 0
          %2534 = vmatprep.subr.bf16.mxu0 0
          %2535 = vmatpush1.bf16.msra.mxu0 0
          %2536 = vmatprep.subr.bf16.mxu0 0
          %2537 = vmatpush1.bf16.msra.mxu0 0
          %2538 = vmatprep.mubr.bf16.mxu0 0
          %2539 = vmatmul.mubr.bf16.gmra.mrb[0].mxu0 %v1864
          %v2540 = vpop.f32.mrb[0].mxu0
          %v2541 = vadd.f32 %v2155, %v2540
          %v2542 = vpop.f32.mrb[0].mxu0
          %v2543 = vadd.f32 %v2157, %v2542
          %v2544 = vpop.f32.mrb[0].mxu0
          %v2545 = vadd.f32 %v2159, %v2544
          %v2546 = vpop.f32.mrb[0].mxu0
          %v2547 = vadd.f32 %v2161, %v2546
          %2548 = vmatprep.mubr.bf16.mxu0 0
          %2549 = vmatmul.mubr.bf16.gmra.mrb[0].mxu0 %v1865
          %v2550 = vpop.f32.mrb[0].mxu0
          %v2551 = vadd.f32 %v2165, %v2550
          %v2552 = vpop.f32.mrb[0].mxu0
          %v2553 = vadd.f32 %v2167, %v2552
          %v2554 = vpop.f32.mrb[0].mxu0
          %v2555 = vadd.f32 %v2169, %v2554
          %v2556 = vpop.f32.mrb[0].mxu0
          %v2557 = vadd.f32 %v2171, %v2556
          %2558 = vmatprep.mubr.bf16.mxu0 0
          %2559 = vmatmul.mubr.bf16.gmra.mrb[0].mxu0 %v1866
          %v2560 = vpop.f32.mrb[0].mxu0
          %v2561 = vadd.f32 %v2175, %v2560
          %v2562 = vpop.f32.mrb[0].mxu0
          %v2563 = vadd.f32 %v2177, %v2562
          %v2564 = vpop.f32.mrb[0].mxu0
          %v2565 = vadd.f32 %v2179, %v2564
          %v2566 = vpop.f32.mrb[0].mxu0
          %v2567 = vadd.f32 %v2181, %v2566
          %2568 = vmatprep.mubr.bf16.mxu0 0
          %2569 = vmatmul.mubr.bf16.gmra.mrb[0].mxu0 %v1867
          %v2570 = vpop.f32.mrb[0].mxu0
          %v2571 = vadd.f32 %v2185, %v2570
          %v2572 = vpop.f32.mrb[0].mxu0
          %v2573 = vadd.f32 %v2187, %v2572
          %v2574 = vpop.f32.mrb[0].mxu0
          %v2575 = vadd.f32 %v2189, %v2574
          %v2576 = vpop.f32.mrb[0].mxu0
          %v2577 = vadd.f32 %v2191, %v2576
          %2578 = vmatprep.mubr.bf16.mxu0 0
          %2579 = vmatmul.mubr.bf16.gmra.mrb[0].mxu0 %v1868
          %v2580 = vpop.f32.mrb[0].mxu0
          %v2581 = vadd.f32 %v2195, %v2580
          %v2582 = vpop.f32.mrb[0].mxu0
          %v2583 = vadd.f32 %v2197, %v2582
          %v2584 = vpop.f32.mrb[0].mxu0
          %v2585 = vadd.f32 %v2199, %v2584
          %v2586 = vpop.f32.mrb[0].mxu0
          %v2587 = vadd.f32 %v2201, %v2586
          %2588 = vmatprep.mubr.bf16.mxu0 0
          %2589 = vmatmul.mubr.bf16.gmra.mrb[0].mxu0 %v1869
          %v2590 = vpop.f32.mrb[0].mxu0
          %v2591 = vadd.f32 %v2205, %v2590
          %v2592 = vpop.f32.mrb[0].mxu0
          %v2593 = vadd.f32 %v2207, %v2592
          %v2594 = vpop.f32.mrb[0].mxu0
          %v2595 = vadd.f32 %v2209, %v2594
          %v2596 = vpop.f32.mrb[0].mxu0
          %v2597 = vadd.f32 %v2211, %v2596
          %2598 = vmatprep.mubr.bf16.mxu0 0
          %2599 = vmatmul.mubr.bf16.gmra.mrb[0].mxu0 %v1870
          %v2600 = vpop.f32.mrb[0].mxu0
          %v2601 = vadd.f32 %v2215, %v2600
          %v2602 = vpop.f32.mrb[0].mxu0
          %v2603 = vadd.f32 %v2217, %v2602
          %v2604 = vpop.f32.mrb[0].mxu0
          %v2605 = vadd.f32 %v2219, %v2604
          %v2606 = vpop.f32.mrb[0].mxu0
          %v2607 = vadd.f32 %v2221, %v2606
          %2608 = vmatprep.mubr.bf16.mxu0 0
          %2609 = vmatmul.mubr.bf16.gmra.mrb[0].mxu0 %v1871
          %v2610 = vpop.f32.mrb[0].mxu0
          %v2611 = vadd.f32 %v2225, %v2610
          %v2612 = vpop.f32.mrb[0].mxu0
          %v2613 = vadd.f32 %v2227, %v2612
          %v2614 = vpop.f32.mrb[0].mxu0
          %v2615 = vadd.f32 %v2229, %v2614
          %v2616 = vpop.f32.mrb[0].mxu0
          %v2617 = vadd.f32 %v2231, %v2616
          %2618 = vdwg.mxu0
          %2619 = vmatprep.subr.bf16.mxu0 %v2445
          %2620 = vmatpush1.bf16.msra.mxu0 %v2444
          %2621 = vmatprep.subr.bf16.mxu0 %v2449
          %2622 = vmatpush1.bf16.msra.mxu0 %v2448
          %2623 = vmatprep.subr.bf16.mxu0 %v2453
          %2624 = vmatpush1.bf16.msra.mxu0 %v2452
          %2625 = vmatprep.subr.bf16.mxu0 %v2457
          %2626 = vmatpush1.bf16.msra.mxu0 %v2456
          %2627 = vmatprep.subr.bf16.mxu0 %v2461
          %2628 = vmatpush1.bf16.msra.mxu0 %v2460
          %2629 = vmatprep.subr.bf16.mxu0 %v2465
          %2630 = vmatpush1.bf16.msra.mxu0 %v2464
          %2631 = vmatprep.subr.bf16.mxu0 %v2469
          %2632 = vmatpush1.bf16.msra.mxu0 %v2468
          %2633 = vmatprep.subr.bf16.mxu0 %v2473
          %2634 = vmatpush1.bf16.msra.mxu0 %v2472
          %2635 = vmatprep.subr.bf16.mxu0 0
          %2636 = vmatpush1.bf16.msra.mxu0 0
          %2637 = vmatprep.subr.bf16.mxu0 0
          %2638 = vmatpush1.bf16.msra.mxu0 0
          %2639 = vmatprep.subr.bf16.mxu0 0
          %2640 = vmatpush1.bf16.msra.mxu0 0
          %2641 = vmatprep.subr.bf16.mxu0 0
          %2642 = vmatpush1.bf16.msra.mxu0 0
          %2643 = vmatprep.subr.bf16.mxu0 0
          %2644 = vmatpush1.bf16.msra.mxu0 0
          %2645 = vmatprep.subr.bf16.mxu0 0
          %2646 = vmatpush1.bf16.msra.mxu0 0
          %2647 = vmatprep.subr.bf16.mxu0 0
          %2648 = vmatpush1.bf16.msra.mxu0 0
          %2649 = vmatprep.subr.bf16.mxu0 0
          %2650 = vmatpush1.bf16.msra.mxu0 0
          %2651 = vmatprep.mubr.bf16.mxu0 0
          %2652 = vmatmul.mubr.bf16.gmra.mrb[0].mxu0 %v1864
          %v2653 = vpop.f32.mrb[0].mxu0
          %v2654 = vadd.f32 %v2268, %v2653
          %v2655 = vpop.f32.mrb[0].mxu0
          %v2656 = vadd.f32 %v2270, %v2655
          %v2657 = vpop.f32.mrb[0].mxu0
          %v2658 = vadd.f32 %v2272, %v2657
          %v2659 = vpop.f32.mrb[0].mxu0
          %v2660 = vadd.f32 %v2274, %v2659
          %2661 = vmatprep.mubr.bf16.mxu0 0
          %2662 = vmatmul.mubr.bf16.gmra.mrb[0].mxu0 %v1865
          %v2663 = vpop.f32.mrb[0].mxu0
          %v2664 = vadd.f32 %v2278, %v2663
          %v2665 = vpop.f32.mrb[0].mxu0
          %v2666 = vadd.f32 %v2280, %v2665
          %v2667 = vpop.f32.mrb[0].mxu0
          %v2668 = vadd.f32 %v2282, %v2667
          %v2669 = vpop.f32.mrb[0].mxu0
          %v2670 = vadd.f32 %v2284, %v2669
          %2671 = vmatprep.mubr.bf16.mxu0 0
          %2672 = vmatmul.mubr.bf16.gmra.mrb[0].mxu0 %v1866
          %v2673 = vpop.f32.mrb[0].mxu0
          %v2674 = vadd.f32 %v2288, %v2673
          %v2675 = vpop.f32.mrb[0].mxu0
          %v2676 = vadd.f32 %v2290, %v2675
          %v2677 = vpop.f32.mrb[0].mxu0
          %v2678 = vadd.f32 %v2292, %v2677
          %v2679 = vpop.f32.mrb[0].mxu0
          %v2680 = vadd.f32 %v2294, %v2679
          %2681 = vmatprep.mubr.bf16.mxu0 0
          %2682 = vmatmul.mubr.bf16.gmra.mrb[0].mxu0 %v1867
          %v2683 = vpop.f32.mrb[0].mxu0
          %v2684 = vadd.f32 %v2298, %v2683
          %v2685 = vpop.f32.mrb[0].mxu0
          %v2686 = vadd.f32 %v2300, %v2685
          %v2687 = vpop.f32.mrb[0].mxu0
          %v2688 = vadd.f32 %v2302, %v2687
          %v2689 = vpop.f32.mrb[0].mxu0
          %v2690 = vadd.f32 %v2304, %v2689
          %2691 = vmatprep.mubr.bf16.mxu0 0
          %2692 = vmatmul.mubr.bf16.gmra.mrb[0].mxu0 %v1868
          %v2693 = vpop.f32.mrb[0].mxu0
          %v2694 = vadd.f32 %v2308, %v2693
          %v2695 = vpop.f32.mrb[0].mxu0
          %v2696 = vadd.f32 %v2310, %v2695
          %v2697 = vpop.f32.mrb[0].mxu0
          %v2698 = vadd.f32 %v2312, %v2697
          %v2699 = vpop.f32.mrb[0].mxu0
          %v2700 = vadd.f32 %v2314, %v2699
          %2701 = vmatprep.mubr.bf16.mxu0 0
          %2702 = vmatmul.mubr.bf16.gmra.mrb[0].mxu0 %v1869
          %v2703 = vpop.f32.mrb[0].mxu0
          %v2704 = vadd.f32 %v2318, %v2703
          %v2705 = vpop.f32.mrb[0].mxu0
          %v2706 = vadd.f32 %v2320, %v2705
          %v2707 = vpop.f32.mrb[0].mxu0
          %v2708 = vadd.f32 %v2322, %v2707
          %v2709 = vpop.f32.mrb[0].mxu0
          %v2710 = vadd.f32 %v2324, %v2709
          %2711 = vmatprep.mubr.bf16.mxu0 0
          %2712 = vmatmul.mubr.bf16.gmra.mrb[0].mxu0 %v1870
          %v2713 = vpop.f32.mrb[0].mxu0
          %v2714 = vadd.f32 %v2328, %v2713
          %v2715 = vpop.f32.mrb[0].mxu0
          %v2716 = vadd.f32 %v2330, %v2715
          %v2717 = vpop.f32.mrb[0].mxu0
          %v2718 = vadd.f32 %v2332, %v2717
          %v2719 = vpop.f32.mrb[0].mxu0
          %v2720 = vadd.f32 %v2334, %v2719
          %2721 = vmatprep.mubr.bf16.mxu0 0
          %2722 = vmatmul.mubr.bf16.gmra.mrb[0].mxu0 %v1871
          %v2723 = vpop.f32.mrb[0].mxu0
          %v2724 = vadd.f32 %v2338, %v2723
          %v2725 = vpop.f32.mrb[0].mxu0
          %v2726 = vadd.f32 %v2340, %v2725
          %v2727 = vpop.f32.mrb[0].mxu0
          %v2728 = vadd.f32 %v2342, %v2727
          %v2729 = vpop.f32.mrb[0].mxu0
          %v2730 = vadd.f32 %v2344, %v2729
          %2731 = vdwg.mxu0
          %v2732 = vld [vmem:[%s10] sm:$0xf]
          %v2734 = vlaneseq
          %v2735 = vshrl.u32 %v2734, 7
          %v2736 = vsub.s32 0, %v2735
          %v2737 = vrot.slane %v2732, %v2736
          %v2738 = vlaneseq
          %v2739 = vshrl.u32 %v2738, 7
          %v2740 = vsub.s32 1, %v2739
          %v2741 = vrot.slane %v2732, %v2740
          %v2742 = vlaneseq
          %v2743 = vshrl.u32 %v2742, 7
          %v2744 = vsub.s32 2, %v2743
          %v2745 = vrot.slane %v2732, %v2744
          %v2746 = vlaneseq
          %v2747 = vshrl.u32 %v2746, 7
          %v2748 = vsub.s32 3, %v2747
          %v2749 = vrot.slane %v2732, %v2748
          %v2754 = vadd.f32 %v2541, %v2737
          %v2755 = vadd.f32 %v2543, %v2741
          %v2756 = vadd.f32 %v2654, %v2745
          %v2757 = vadd.f32 %v2656, %v2749
          %v2758 = vadd.f32 %v2545, %v2737
          %v2759 = vadd.f32 %v2547, %v2741
          %v2760 = vadd.f32 %v2658, %v2745
          %v2761 = vadd.f32 %v2660, %v2749
          %v2762 = vadd.f32 %v2551, %v2737
          %v2763 = vadd.f32 %v2553, %v2741
          %v2764 = vadd.f32 %v2664, %v2745
          %v2765 = vadd.f32 %v2666, %v2749
          %v2766 = vadd.f32 %v2555, %v2737
          %v2767 = vadd.f32 %v2557, %v2741
          %v2768 = vadd.f32 %v2668, %v2745
          %v2769 = vadd.f32 %v2670, %v2749
          %v2770 = vadd.f32 %v2561, %v2737
          %v2771 = vadd.f32 %v2563, %v2741
          %v2772 = vadd.f32 %v2674, %v2745
          %v2773 = vadd.f32 %v2676, %v2749
          %v2774 = vadd.f32 %v2565, %v2737
          %v2775 = vadd.f32 %v2567, %v2741
          %v2776 = vadd.f32 %v2678, %v2745
          %v2777 = vadd.f32 %v2680, %v2749
          %v2778 = vadd.f32 %v2571, %v2737
          %v2779 = vadd.f32 %v2573, %v2741
          %v2780 = vadd.f32 %v2684, %v2745
          %v2781 = vadd.f32 %v2686, %v2749
          %v2782 = vadd.f32 %v2575, %v2737
          %v2783 = vadd.f32 %v2577, %v2741
          %v2784 = vadd.f32 %v2688, %v2745
          %v2785 = vadd.f32 %v2690, %v2749
          %v2786 = vadd.f32 %v2581, %v2737
          %v2787 = vadd.f32 %v2583, %v2741
          %v2788 = vadd.f32 %v2694, %v2745
          %v2789 = vadd.f32 %v2696, %v2749
          %v2790 = vadd.f32 %v2585, %v2737
          %v2791 = vadd.f32 %v2587, %v2741
          %v2792 = vadd.f32 %v2698, %v2745
          %v2793 = vadd.f32 %v2700, %v2749
          %v2794 = vadd.f32 %v2591, %v2737
          %v2795 = vadd.f32 %v2593, %v2741
          %v2796 = vadd.f32 %v2704, %v2745
          %v2797 = vadd.f32 %v2706, %v2749
          %v2798 = vadd.f32 %v2595, %v2737
          %v2799 = vadd.f32 %v2597, %v2741
          %v2800 = vadd.f32 %v2708, %v2745
          %v2801 = vadd.f32 %v2710, %v2749
          %v2802 = vadd.f32 %v2601, %v2737
          %v2803 = vadd.f32 %v2603, %v2741
          %v2804 = vadd.f32 %v2714, %v2745
          %v2805 = vadd.f32 %v2716, %v2749
          %v2806 = vadd.f32 %v2605, %v2737
          %v2807 = vadd.f32 %v2607, %v2741
          %v2808 = vadd.f32 %v2718, %v2745
          %v2809 = vadd.f32 %v2720, %v2749
          %v2810 = vadd.f32 %v2611, %v2737
          %v2811 = vadd.f32 %v2613, %v2741
          %v2812 = vadd.f32 %v2724, %v2745
          %v2813 = vadd.f32 %v2726, %v2749
          %v2814 = vadd.f32 %v2615, %v2737
          %v2815 = vadd.f32 %v2617, %v2741
          %v2816 = vadd.f32 %v2728, %v2745
          %v2817 = vadd.f32 %v2730, %v2749
          %v2818 = vxor.u32 %v2754, 2147483648
          %v2819 = vxor.u32 %v2758, 2147483648
          %v2820 = vxor.u32 %v2762, 2147483648
          %v2821 = vxor.u32 %v2766, 2147483648
          %v2822 = vxor.u32 %v2770, 2147483648
          %v2823 = vxor.u32 %v2774, 2147483648
          %v2824 = vxor.u32 %v2778, 2147483648
          %v2825 = vxor.u32 %v2782, 2147483648
          %v2826 = vxor.u32 %v2786, 2147483648
          %v2827 = vxor.u32 %v2790, 2147483648
          %v2828 = vxor.u32 %v2794, 2147483648
          %v2829 = vxor.u32 %v2798, 2147483648
          %v2830 = vxor.u32 %v2802, 2147483648
          %v2831 = vxor.u32 %v2806, 2147483648
          %v2832 = vxor.u32 %v2810, 2147483648
          %v2833 = vxor.u32 %v2814, 2147483648
          %v2834 = vmul.f32 %v2818, 1.442695
          %v2835 = vpow.pop %v2834
          %v2836 = vmul.f32 %v2819, 1.442695
          %v2837 = vpow.pop %v2836
          %v2838 = vmul.f32 %v2820, 1.442695
          %v2839 = vpow.pop %v2838
          %v2840 = vmul.f32 %v2821, 1.442695
          %v2841 = vpow.pop %v2840
          %v2842 = vmul.f32 %v2822, 1.442695
          %v2843 = vpow.pop %v2842
          %v2844 = vmul.f32 %v2823, 1.442695
          %v2845 = vpow.pop %v2844
          %v2846 = vmul.f32 %v2824, 1.442695
          %v2847 = vpow.pop %v2846
          %v2848 = vmul.f32 %v2825, 1.442695
          %v2849 = vpow.pop %v2848
          %v2850 = vmul.f32 %v2826, 1.442695
          %v2851 = vpow.pop %v2850
          %v2852 = vmul.f32 %v2827, 1.442695
          %v2853 = vpow.pop %v2852
          %v2854 = vmul.f32 %v2828, 1.442695
          %v2855 = vpow.pop %v2854
          %v2856 = vmul.f32 %v2829, 1.442695
          %v2857 = vpow.pop %v2856
          %v2858 = vmul.f32 %v2830, 1.442695
          %v2859 = vpow.pop %v2858
          %v2860 = vmul.f32 %v2831, 1.442695
          %v2861 = vpow.pop %v2860
          %v2862 = vmul.f32 %v2832, 1.442695
          %v2863 = vpow.pop %v2862
          %v2864 = vmul.f32 %v2833, 1.442695
          %v2865 = vpow.pop %v2864
          %v2866 = vadd.f32 %v2835, 1.0
          %v2867 = vadd.f32 %v2837, 1.0
          %v2868 = vadd.f32 %v2839, 1.0
          %v2869 = vadd.f32 %v2841, 1.0
          %v2870 = vadd.f32 %v2843, 1.0
          %v2871 = vadd.f32 %v2845, 1.0
          %v2872 = vadd.f32 %v2847, 1.0
          %v2873 = vadd.f32 %v2849, 1.0
          %v2874 = vadd.f32 %v2851, 1.0
          %v2875 = vadd.f32 %v2853, 1.0
          %v2876 = vadd.f32 %v2855, 1.0
          %v2877 = vadd.f32 %v2857, 1.0
          %v2878 = vadd.f32 %v2859, 1.0
          %v2879 = vadd.f32 %v2861, 1.0
          %v2880 = vadd.f32 %v2863, 1.0
          %v2881 = vadd.f32 %v2865, 1.0
          %v2882 = vrcp.pop %v2866
          %v2883 = vmul.f32 1.0, %v2882
          %v2884 = vrcp.pop %v2867
          %v2885 = vmul.f32 1.0, %v2884
          %v2886 = vrcp.pop %v2868
          %v2887 = vmul.f32 1.0, %v2886
          %v2888 = vrcp.pop %v2869
          %v2889 = vmul.f32 1.0, %v2888
          %v2890 = vrcp.pop %v2870
          %v2891 = vmul.f32 1.0, %v2890
          %v2892 = vrcp.pop %v2871
          %v2893 = vmul.f32 1.0, %v2892
          %v2894 = vrcp.pop %v2872
          %v2895 = vmul.f32 1.0, %v2894
          %v2896 = vrcp.pop %v2873
          %v2897 = vmul.f32 1.0, %v2896
          %v2898 = vrcp.pop %v2874
          %v2899 = vmul.f32 1.0, %v2898
          %v2900 = vrcp.pop %v2875
          %v2901 = vmul.f32 1.0, %v2900
          %v2902 = vrcp.pop %v2876
          %v2903 = vmul.f32 1.0, %v2902
          %v2904 = vrcp.pop %v2877
          %v2905 = vmul.f32 1.0, %v2904
          %v2906 = vrcp.pop %v2878
          %v2907 = vmul.f32 1.0, %v2906
          %v2908 = vrcp.pop %v2879
          %v2909 = vmul.f32 1.0, %v2908
          %v2910 = vrcp.pop %v2880
          %v2911 = vmul.f32 1.0, %v2910
          %v2912 = vrcp.pop %v2881
          %v2913 = vmul.f32 1.0, %v2912
          %v2914 = vxor.u32 %v2755, 2147483648
          %v2915 = vxor.u32 %v2759, 2147483648
          %v2916 = vxor.u32 %v2763, 2147483648
          %v2917 = vxor.u32 %v2767, 2147483648
          %v2918 = vxor.u32 %v2771, 2147483648
          %v2919 = vxor.u32 %v2775, 2147483648
          %v2920 = vxor.u32 %v2779, 2147483648
          %v2921 = vxor.u32 %v2783, 2147483648
          %v2922 = vxor.u32 %v2787, 2147483648
          %v2923 = vxor.u32 %v2791, 2147483648
          %v2924 = vxor.u32 %v2795, 2147483648
          %v2925 = vxor.u32 %v2799, 2147483648
          %v2926 = vxor.u32 %v2803, 2147483648
          %v2927 = vxor.u32 %v2807, 2147483648
          %v2928 = vxor.u32 %v2811, 2147483648
          %v2929 = vxor.u32 %v2815, 2147483648
          %v2930 = vmul.f32 %v2914, 1.442695
          %v2931 = vpow.pop %v2930
          %v2932 = vmul.f32 %v2915, 1.442695
          %v2933 = vpow.pop %v2932
          %v2934 = vmul.f32 %v2916, 1.442695
          %v2935 = vpow.pop %v2934
          %v2936 = vmul.f32 %v2917, 1.442695
          %v2937 = vpow.pop %v2936
          %v2938 = vmul.f32 %v2918, 1.442695
          %v2939 = vpow.pop %v2938
          %v2940 = vmul.f32 %v2919, 1.442695
          %v2941 = vpow.pop %v2940
          %v2942 = vmul.f32 %v2920, 1.442695
          %v2943 = vpow.pop %v2942
          %v2944 = vmul.f32 %v2921, 1.442695
          %v2945 = vpow.pop %v2944
          %v2946 = vmul.f32 %v2922, 1.442695
          %v2947 = vpow.pop %v2946
          %v2948 = vmul.f32 %v2923, 1.442695
          %v2949 = vpow.pop %v2948
          %v2950 = vmul.f32 %v2924, 1.442695
          %v2951 = vpow.pop %v2950
          %v2952 = vmul.f32 %v2925, 1.442695
          %v2953 = vpow.pop %v2952
          %v2954 = vmul.f32 %v2926, 1.442695
          %v2955 = vpow.pop %v2954
          %v2956 = vmul.f32 %v2927, 1.442695
          %v2957 = vpow.pop %v2956
          %v2958 = vmul.f32 %v2928, 1.442695
          %v2959 = vpow.pop %v2958
          %v2960 = vmul.f32 %v2929, 1.442695
          %v2961 = vpow.pop %v2960
          %v2962 = vadd.f32 %v2931, 1.0
          %v2963 = vadd.f32 %v2933, 1.0
          %v2964 = vadd.f32 %v2935, 1.0
          %v2965 = vadd.f32 %v2937, 1.0
          %v2966 = vadd.f32 %v2939, 1.0
          %v2967 = vadd.f32 %v2941, 1.0
          %v2968 = vadd.f32 %v2943, 1.0
          %v2969 = vadd.f32 %v2945, 1.0
          %v2970 = vadd.f32 %v2947, 1.0
          %v2971 = vadd.f32 %v2949, 1.0
          %v2972 = vadd.f32 %v2951, 1.0
          %v2973 = vadd.f32 %v2953, 1.0
          %v2974 = vadd.f32 %v2955, 1.0
          %v2975 = vadd.f32 %v2957, 1.0
          %v2976 = vadd.f32 %v2959, 1.0
          %v2977 = vadd.f32 %v2961, 1.0
          %v2978 = vrcp.pop %v2962
          %v2979 = vmul.f32 1.0, %v2978
          %v2980 = vrcp.pop %v2963
          %v2981 = vmul.f32 1.0, %v2980
          %v2982 = vrcp.pop %v2964
          %v2983 = vmul.f32 1.0, %v2982
          %v2984 = vrcp.pop %v2965
          %v2985 = vmul.f32 1.0, %v2984
          %v2986 = vrcp.pop %v2966
          %v2987 = vmul.f32 1.0, %v2986
          %v2988 = vrcp.pop %v2967
          %v2989 = vmul.f32 1.0, %v2988
          %v2990 = vrcp.pop %v2968
          %v2991 = vmul.f32 1.0, %v2990
          %v2992 = vrcp.pop %v2969
          %v2993 = vmul.f32 1.0, %v2992
          %v2994 = vrcp.pop %v2970
          %v2995 = vmul.f32 1.0, %v2994
          %v2996 = vrcp.pop %v2971
          %v2997 = vmul.f32 1.0, %v2996
          %v2998 = vrcp.pop %v2972
          %v2999 = vmul.f32 1.0, %v2998
          %v3000 = vrcp.pop %v2973
          %v3001 = vmul.f32 1.0, %v3000
          %v3002 = vrcp.pop %v2974
          %v3003 = vmul.f32 1.0, %v3002
          %v3004 = vrcp.pop %v2975
          %v3005 = vmul.f32 1.0, %v3004
          %v3006 = vrcp.pop %v2976
          %v3007 = vmul.f32 1.0, %v3006
          %v3008 = vrcp.pop %v2977
          %v3009 = vmul.f32 1.0, %v3008
          %v3010 = vtanh.pop %v2756
          %v3011 = vtanh.pop %v2760
          %v3012 = vtanh.pop %v2764
          %v3013 = vtanh.pop %v2768
          %v3014 = vtanh.pop %v2772
          %v3015 = vtanh.pop %v2776
          %v3016 = vtanh.pop %v2780
          %v3017 = vtanh.pop %v2784
          %v3018 = vtanh.pop %v2788
          %v3019 = vtanh.pop %v2792
          %v3020 = vtanh.pop %v2796
          %v3021 = vtanh.pop %v2800
          %v3022 = vtanh.pop %v2804
          %v3023 = vtanh.pop %v2808
          %v3024 = vtanh.pop %v2812
          %v3025 = vtanh.pop %v2816
          %v3026 = vxor.u32 %v2757, 2147483648
          %v3027 = vxor.u32 %v2761, 2147483648
          %v3028 = vxor.u32 %v2765, 2147483648
          %v3029 = vxor.u32 %v2769, 2147483648
          %v3030 = vxor.u32 %v2773, 2147483648
          %v3031 = vxor.u32 %v2777, 2147483648
          %v3032 = vxor.u32 %v2781, 2147483648
          %v3033 = vxor.u32 %v2785, 2147483648
          %v3034 = vxor.u32 %v2789, 2147483648
          %v3035 = vxor.u32 %v2793, 2147483648
          %v3036 = vxor.u32 %v2797, 2147483648
          %v3037 = vxor.u32 %v2801, 2147483648
          %v3038 = vxor.u32 %v2805, 2147483648
          %v3039 = vxor.u32 %v2809, 2147483648
          %v3040 = vxor.u32 %v2813, 2147483648
          %v3041 = vxor.u32 %v2817, 2147483648
          %v3042 = vmul.f32 %v3026, 1.442695
          %v3043 = vpow.pop %v3042
          %v3044 = vmul.f32 %v3027, 1.442695
          %v3045 = vpow.pop %v3044
          %v3046 = vmul.f32 %v3028, 1.442695
          %v3047 = vpow.pop %v3046
          %v3048 = vmul.f32 %v3029, 1.442695
          %v3049 = vpow.pop %v3048
          %v3050 = vmul.f32 %v3030, 1.442695
          %v3051 = vpow.pop %v3050
          %v3052 = vmul.f32 %v3031, 1.442695
          %v3053 = vpow.pop %v3052
          %v3054 = vmul.f32 %v3032, 1.442695
          %v3055 = vpow.pop %v3054
          %v3056 = vmul.f32 %v3033, 1.442695
          %v3057 = vpow.pop %v3056
          %v3058 = vmul.f32 %v3034, 1.442695
          %v3059 = vpow.pop %v3058
          %v3060 = vmul.f32 %v3035, 1.442695
          %v3061 = vpow.pop %v3060
          %v3062 = vmul.f32 %v3036, 1.442695
          %v3063 = vpow.pop %v3062
          %v3064 = vmul.f32 %v3037, 1.442695
          %v3065 = vpow.pop %v3064
          %v3066 = vmul.f32 %v3038, 1.442695
          %v3067 = vpow.pop %v3066
          %v3068 = vmul.f32 %v3039, 1.442695
          %v3069 = vpow.pop %v3068
          %v3070 = vmul.f32 %v3040, 1.442695
          %v3071 = vpow.pop %v3070
          %v3072 = vmul.f32 %v3041, 1.442695
          %v3073 = vpow.pop %v3072
          %v3074 = vadd.f32 %v3043, 1.0
          %v3075 = vadd.f32 %v3045, 1.0
          %v3076 = vadd.f32 %v3047, 1.0
          %v3077 = vadd.f32 %v3049, 1.0
          %v3078 = vadd.f32 %v3051, 1.0
          %v3079 = vadd.f32 %v3053, 1.0
          %v3080 = vadd.f32 %v3055, 1.0
          %v3081 = vadd.f32 %v3057, 1.0
          %v3082 = vadd.f32 %v3059, 1.0
          %v3083 = vadd.f32 %v3061, 1.0
          %v3084 = vadd.f32 %v3063, 1.0
          %v3085 = vadd.f32 %v3065, 1.0
          %v3086 = vadd.f32 %v3067, 1.0
          %v3087 = vadd.f32 %v3069, 1.0
          %v3088 = vadd.f32 %v3071, 1.0
          %v3089 = vadd.f32 %v3073, 1.0
          %v3090 = vrcp.pop %v3074
          %v3091 = vmul.f32 1.0, %v3090
          %v3092 = vrcp.pop %v3075
          %v3093 = vmul.f32 1.0, %v3092
          %v3094 = vrcp.pop %v3076
          %v3095 = vmul.f32 1.0, %v3094
          %v3096 = vrcp.pop %v3077
          %v3097 = vmul.f32 1.0, %v3096
          %v3098 = vrcp.pop %v3078
          %v3099 = vmul.f32 1.0, %v3098
          %v3100 = vrcp.pop %v3079
          %v3101 = vmul.f32 1.0, %v3100
          %v3102 = vrcp.pop %v3080
          %v3103 = vmul.f32 1.0, %v3102
          %v3104 = vrcp.pop %v3081
          %v3105 = vmul.f32 1.0, %v3104
          %v3106 = vrcp.pop %v3082
          %v3107 = vmul.f32 1.0, %v3106
          %v3108 = vrcp.pop %v3083
          %v3109 = vmul.f32 1.0, %v3108
          %v3110 = vrcp.pop %v3084
          %v3111 = vmul.f32 1.0, %v3110
          %v3112 = vrcp.pop %v3085
          %v3113 = vmul.f32 1.0, %v3112
          %v3114 = vrcp.pop %v3086
          %v3115 = vmul.f32 1.0, %v3114
          %v3116 = vrcp.pop %v3087
          %v3117 = vmul.f32 1.0, %v3116
          %v3118 = vrcp.pop %v3088
          %v3119 = vmul.f32 1.0, %v3118
          %v3120 = vrcp.pop %v3089
          %v3121 = vmul.f32 1.0, %v3120
          %v3122 = vld [vmem:[%s581] sm:$0xff]
          %v3123 = vld [vmem:[%s581 + $0x8] sm:$0xff]
          %v3124 = vld [vmem:[%s581 + $0x10] sm:$0xff]
          %v3125 = vld [vmem:[%s581 + $0x18] sm:$0xff]
          %v3126 = vld [vmem:[%s581 + $0x20] sm:$0xff]
          %v3127 = vld [vmem:[%s581 + $0x28] sm:$0xff]
          %v3128 = vld [vmem:[%s581 + $0x30] sm:$0xff]
          %v3129 = vld [vmem:[%s581 + $0x38] sm:$0xff]
          %v3130 = vld [vmem:[%s581 + $0x40] sm:$0xff]
          %v3131 = vld [vmem:[%s581 + $0x48] sm:$0xff]
          %v3132 = vld [vmem:[%s581 + $0x50] sm:$0xff]
          %v3133 = vld [vmem:[%s581 + $0x58] sm:$0xff]
          %v3134 = vld [vmem:[%s581 + $0x60] sm:$0xff]
          %v3135 = vld [vmem:[%s581 + $0x68] sm:$0xff]
          %v3136 = vld [vmem:[%s581 + $0x70] sm:$0xff]
          %v3137 = vld [vmem:[%s581 + $0x78] sm:$0xff]
          %v3138 = vmul.f32 %v2979, %v3122
          %v3139 = vmul.f32 %v2981, %v3123
          %v3140 = vmul.f32 %v2983, %v3124
          %v3141 = vmul.f32 %v2985, %v3125
          %v3142 = vmul.f32 %v2987, %v3126
          %v3143 = vmul.f32 %v2989, %v3127
          %v3144 = vmul.f32 %v2991, %v3128
          %v3145 = vmul.f32 %v2993, %v3129
          %v3146 = vmul.f32 %v2995, %v3130
          %v3147 = vmul.f32 %v2997, %v3131
          %v3148 = vmul.f32 %v2999, %v3132
          %v3149 = vmul.f32 %v3001, %v3133
          %v3150 = vmul.f32 %v3003, %v3134
          %v3151 = vmul.f32 %v3005, %v3135
          %v3152 = vmul.f32 %v3007, %v3136
          %v3153 = vmul.f32 %v3009, %v3137
          %v3154 = vmul.f32 %v2883, %v3010
          %v3155 = vmul.f32 %v2885, %v3011
          %v3156 = vmul.f32 %v2887, %v3012
          %v3157 = vmul.f32 %v2889, %v3013
          %v3158 = vmul.f32 %v2891, %v3014
          %v3159 = vmul.f32 %v2893, %v3015
          %v3160 = vmul.f32 %v2895, %v3016
          %v3161 = vmul.f32 %v2897, %v3017
          %v3162 = vmul.f32 %v2899, %v3018
          %v3163 = vmul.f32 %v2901, %v3019
          %v3164 = vmul.f32 %v2903, %v3020
          %v3165 = vmul.f32 %v2905, %v3021
          %v3166 = vmul.f32 %v2907, %v3022
          %v3167 = vmul.f32 %v2909, %v3023
          %v3168 = vmul.f32 %v2911, %v3024
          %v3169 = vmul.f32 %v2913, %v3025
          %v3170 = vadd.f32 %v3138, %v3154
          %v3171 = vadd.f32 %v3139, %v3155
          %v3172 = vadd.f32 %v3140, %v3156
          %v3173 = vadd.f32 %v3141, %v3157
          %v3174 = vadd.f32 %v3142, %v3158
          %v3175 = vadd.f32 %v3143, %v3159
          %v3176 = vadd.f32 %v3144, %v3160
          %v3177 = vadd.f32 %v3145, %v3161
          %v3178 = vadd.f32 %v3146, %v3162
          %v3179 = vadd.f32 %v3147, %v3163
          %v3180 = vadd.f32 %v3148, %v3164
          %v3181 = vadd.f32 %v3149, %v3165
          %v3182 = vadd.f32 %v3150, %v3166
          %v3183 = vadd.f32 %v3151, %v3167
          %v3184 = vadd.f32 %v3152, %v3168
          %v3185 = vadd.f32 %v3153, %v3169
          %v3186 = vtanh.pop %v3170
          %v3187 = vtanh.pop %v3171
          %v3188 = vtanh.pop %v3172
          %v3189 = vtanh.pop %v3173
          %v3190 = vtanh.pop %v3174
          %v3191 = vtanh.pop %v3175
          %v3192 = vtanh.pop %v3176
          %v3193 = vtanh.pop %v3177
          %v3194 = vtanh.pop %v3178
          %v3195 = vtanh.pop %v3179
          %v3196 = vtanh.pop %v3180
          %v3197 = vtanh.pop %v3181
          %v3198 = vtanh.pop %v3182
          %v3199 = vtanh.pop %v3183
          %v3200 = vtanh.pop %v3184
          %v3201 = vtanh.pop %v3185
          %v3202 = vmul.f32 %v3091, %v3186
          %v3203 = vmul.f32 %v3093, %v3187
          %v3204 = vmul.f32 %v3095, %v3188
          %v3205 = vmul.f32 %v3097, %v3189
          %v3206 = vmul.f32 %v3099, %v3190
          %v3207 = vmul.f32 %v3101, %v3191
          %v3208 = vmul.f32 %v3103, %v3192
          %v3209 = vmul.f32 %v3105, %v3193
          %v3210 = vmul.f32 %v3107, %v3194
          %v3211 = vmul.f32 %v3109, %v3195
          %v3212 = vmul.f32 %v3111, %v3196
          %v3213 = vmul.f32 %v3113, %v3197
          %v3214 = vmul.f32 %v3115, %v3198
          %v3215 = vmul.f32 %v3117, %v3199
          %v3216 = vmul.f32 %v3119, %v3200
          %v3217 = vmul.f32 %v3121, %v3201
          %3218 = vst [vmem:[%s587] sm:$0xff] %v3202
          %3219 = vst [vmem:[%s587 + $0x8] sm:$0xff] %v3203
          %3220 = vst [vmem:[%s587 + $0x10] sm:$0xff] %v3204
          %3221 = vst [vmem:[%s587 + $0x18] sm:$0xff] %v3205
          %3222 = vst [vmem:[%s587 + $0x20] sm:$0xff] %v3206
          %3223 = vst [vmem:[%s587 + $0x28] sm:$0xff] %v3207
          %3224 = vst [vmem:[%s587 + $0x30] sm:$0xff] %v3208
          %3225 = vst [vmem:[%s587 + $0x38] sm:$0xff] %v3209
          %3226 = vst [vmem:[%s587 + $0x40] sm:$0xff] %v3210
          %3227 = vst [vmem:[%s587 + $0x48] sm:$0xff] %v3211
          %3228 = vst [vmem:[%s587 + $0x50] sm:$0xff] %v3212
          %3229 = vst [vmem:[%s587 + $0x58] sm:$0xff] %v3213
          %3230 = vst [vmem:[%s587 + $0x60] sm:$0xff] %v3214
          %3231 = vst [vmem:[%s587 + $0x68] sm:$0xff] %v3215
          %3232 = vst [vmem:[%s587 + $0x70] sm:$0xff] %v3216
          %3233 = vst [vmem:[%s587 + $0x78] sm:$0xff] %v3217
          %3234 = vst [vmem:[%s593] sm:$0xff] %v3170
          %3235 = vst [vmem:[%s593 + $0x8] sm:$0xff] %v3171
          %3236 = vst [vmem:[%s593 + $0x10] sm:$0xff] %v3172
          %3237 = vst [vmem:[%s593 + $0x18] sm:$0xff] %v3173
          %3238 = vst [vmem:[%s593 + $0x20] sm:$0xff] %v3174
          %3239 = vst [vmem:[%s593 + $0x28] sm:$0xff] %v3175
          %3240 = vst [vmem:[%s593 + $0x30] sm:$0xff] %v3176
          %3241 = vst [vmem:[%s593 + $0x38] sm:$0xff] %v3177
          %3242 = vst [vmem:[%s593 + $0x40] sm:$0xff] %v3178
          %3243 = vst [vmem:[%s593 + $0x48] sm:$0xff] %v3179
          %3244 = vst [vmem:[%s593 + $0x50] sm:$0xff] %v3180
          %3245 = vst [vmem:[%s593 + $0x58] sm:$0xff] %v3181
          %3246 = vst [vmem:[%s593 + $0x60] sm:$0xff] %v3182
          %3247 = vst [vmem:[%s593 + $0x68] sm:$0xff] %v3183
          %3248 = vst [vmem:[%s593 + $0x70] sm:$0xff] %v3184
          %3249 = vst [vmem:[%s593 + $0x78] sm:$0xff] %v3185
        $region110: #{geniepath_conv.1} parent=97 // pred_fallthru
          _
        %s3250 = smul.u32 16, %s28
        %p3251 = scmp.lt.s32.totalorder %s3250, 47
        %s3252 = scalar_select %p3251, %s3250, 47
        %s3253 = smul.addr %s3252, 8
        %s3254 = scalar_lea.vmem %s11, %s3253
        %s3255 = smul.u32 16, %s28
        %p3256 = scmp.lt.s32.totalorder %s3255, 47
        %s3257 = scalar_select %p3256, %s3255, 47
        %s3258 = smul.addr %s3257, 8
        %s3259 = scalar_lea.vmem %s12, %s3258
        // Predicated region
        $region111: #{geniepath_conv.1} parent=97 // pred_check
          %p3260 = pneg %p317
        $region112: #{geniepath_conv.1} parent=97 // pred_check_branch
          %3262 = sbr.rel (%p3260) target = $region114
        $region113: #{geniepath_conv.1} parent=97 // pred_region
          %s3263 = smul.u32 16, %s28
        $region114: #{geniepath_conv.1} parent=97 // pred_fallthru
          _
        // Predicated region
        $region115: #{geniepath_conv.1} parent=97 // pred_check
          %p3264 = pneg %p343
        $region116: #{geniepath_conv.1} parent=97 // pred_check_branch
          %3266 = sbr.rel (%p3264) target = $region118
        $region117: #{geniepath_conv.1} parent=97 // pred_region
          %s3267 = smul.u32 16, %s28
        $region118: #{geniepath_conv.1} parent=97 // pred_fallthru
          _
      $region98: #{geniepath_conv.1} parent=5 // pred_fallthru
        _
      %p3268 = scmp.le.s32.totalorder 2, %s19
      // Predicated region
      $region119: #{geniepath_conv.1} parent=5 // pred_check
        %p3269 = pneg %p3268
      $region120: #{geniepath_conv.1} parent=5 // pred_check_branch
        %3271 = sbr.rel (%p3269) target = $region122
      $region121: #{geniepath_conv.1} parent=5 // pred_region
        %s3272 = ssub.s32 %s19, 2
        // Predicated region
        $region123: #{geniepath_conv.1} parent=121 // pred_check
          %p3273 = pneg %p323
        $region124: #{geniepath_conv.1} parent=121 // pred_check_branch
          %3275 = sbr.rel (%p3273) target = $region126
        $region125: #{geniepath_conv.1} parent=121 // pred_region
          %s3276 = smul.u32 16, %s30
          %p3277 = scmp.lt.s32.totalorder %s3276, 47
          %s3278 = scalar_select %p3277, %s3276, 47
          %s3279 = smul.addr %s3278, 8
          %s3280 = scalar_lea.vmem %s11, %s3279
        $region126: #{geniepath_conv.1} parent=121 // pred_fallthru
          _
        // Predicated region
        $region127: #{geniepath_conv.1} parent=121 // pred_check
          %p3281 = pneg %p349
        $region128: #{geniepath_conv.1} parent=121 // pred_check_branch
          %3283 = sbr.rel (%p3281) target = $region130
        $region129: #{geniepath_conv.1} parent=121 // pred_region
          %s3284 = smul.u32 16, %s30
          %p3285 = scmp.lt.s32.totalorder %s3284, 47
          %s3286 = scalar_select %p3285, %s3284, 47
          %s3287 = smul.addr %s3286, 8
          %s3288 = scalar_lea.vmem %s12, %s3287
        $region130: #{geniepath_conv.1} parent=121 // pred_fallthru
          _
      $region122: #{geniepath_conv.1} parent=5 // pred_fallthru
        _
    $region6: #{geniepath_conv.1} parent=1 // loop_footer
      %s23 = sadd.s32 1, %s19
    $region7: #{geniepath_conv.1} parent=1 // loop_footer_branch
      %18 = sbr.rel target = $region3
    $region8: #{geniepath_conv.1} parent=1 // loop_exit
      _

</llo_original>
